<compile_context>
chip_gen: v6e
topology: v6e:2x2x1
jax: 0.10.0
libtpu: 0.0.40
codegen_flags: <defaults>
</compile_context>

<pallas_src>
import math

import jax
import jax.numpy as jnp
from jax.experimental import pallas as pl
from jax.experimental.pallas import tpu as pltpu

# ------------------------------- problem sizes -------------------------------
N = 2          # batch
CIN = 4        # in_channels
COUT = 32      # out_channels (multiple of 8 for TimeEmbedding)
H = W = 16     # spatial
KH = KW = 3    # conv kernel

# ----------------------- flat padded-slab layout constants -------------------
Wp = 24                   # padded row pitch (>= W + 2, multiple of 8)
ROWS = 20                 # padded slab rows (>= H + 2 with tap-window slack)
FLAT = ROWS * Wp          # 480 : rows of the zero-padded input slab
HWF = H * Wp              # 384 : rows of the conv-output frame (16 image rows)
RC = 2 * Wp               # 48  : row chunk = 2 image rows = 1 pooled out row
K1 = KH * KW * CIN        # 36  : conv1 im2col K (dy, dx, cin folded)
K2 = KW * COUT            # 96  : conv2 K (dx, cout folded)
P2R = HWF + 2 * Wp        # 432 : rows of the dx-expanded conv2 input / output
ZB = 32                   # halo zero-band height (8-aligned, covers Wp + 1)


def _swish(v):
    # x * sigmoid(x) == x / (1 + exp(-x)); exp + approx reciprocal -> EUP slot.
    return v * pl.reciprocal(1.0 + jnp.exp(-v), approx=True)


def res_downsample_kernel(temb_ref, xe_ref, w1_ref, b1_ref, w2_ref, b2_ref,
                          out_ref, yw1_ref, yw2_ref, p2_ref):
    f32 = jnp.float32
    C = COUT

    # conv2 halo: only the two 32-row border bands of the dx-expanded slab are
    # not fully rewritten below; re-zero them every grid step so the scratch
    # carries no state across steps (keeps the batch axis "parallel"-safe).
    p2_ref[pl.ds(0, ZB), :] = jnp.zeros((ZB, K2), f32)
    p2_ref[pl.ds(P2R - ZB, ZB), :] = jnp.zeros((ZB, K2), f32)

    # ---- conv1: full im2col, ONE bf16 matmul (384, 36) @ (36, 32) -----------
    yw1_ref[...] = jnp.dot(xe_ref[...], w1_ref[...], preferred_element_type=f32)

    # ---- conv1 epilogue: bias + swish + temb + junk-col mask; h -> dx-slab --
    col_ok = (jax.lax.broadcasted_iota(jnp.int32, (RC, 1), 0) % Wp) < W
    b1 = b1_ref[...]
    temb = temb_ref[...]
    for c in range(H // 2):
        b = RC * c                                # 2 image rows per chunk
        h = _swish(yw1_ref[pl.ds(b, RC), :] + b1) + temb
        # zero the junk columns (flat col >= W): they double as conv2's padding
        h = jnp.where(col_ok, h, 0.0)
        # dx-expanded store: p2[r, dx*C:(dx+1)*C] = h_padded[r + Wp + dx - 1]
        p2_ref[pl.ds(b + Wp + 1, RC), pl.ds(0 * C, C)] = h     # dx = 0
        p2_ref[pl.ds(b + Wp, RC), pl.ds(1 * C, C)] = h         # dx = 1
        p2_ref[pl.ds(b + Wp - 1, RC), pl.ds(2 * C, C)] = h     # dx = 2

    # ---- conv2: dx folded into K, ONE bf16 matmul (432, 96) @ (96, 96) ------
    yw2_ref[...] = jnp.dot(p2_ref[...].astype(jnp.bfloat16), w2_ref[...],
                           preferred_element_type=f32)

    # ---- conv2 epilogue: 3 aligned dy taps + bias + residual + swish + pool -
    b2 = b2_ref[...]
    for c in range(H // 2):
        b = RC * c
        acc = (yw2_ref[pl.ds(b, RC), pl.ds(0 * C, C)]
               + yw2_ref[pl.ds(b + Wp, RC), pl.ds(1 * C, C)]
               + yw2_ref[pl.ds(b + 2 * Wp, RC), pl.ds(2 * C, C)])
        resid = p2_ref[pl.ds(b + Wp, RC), pl.ds(1 * C, C)]    # h (f32, exact)
        y = _swish(acc + b2 + resid)                          # (48, C): 2 rows
        # vertical half of the 2x2 max-pool on in-register values (real cols
        # only); the horizontal pair-max is finished in the wrapper.
        out_ref[pl.ds(W * c, W), :] = jnp.maximum(y[0:W, :], y[Wp:Wp + W, :])


def res_downsample(x_nchw, t, params):
    (w1, b1, w2, b2, l1w, l1b, l2w, l2b) = params
    n = x_nchw.shape[0]

    # TimeEmbedding (sinusoidal features + 2-layer MLP) stays in the wrapper:
    # two degenerate 1-row matmuls do not belong on the MXU.
    half = COUT // 8
    scale = math.log(10000.0) / (half - 1)
    freqs = jnp.exp(jnp.arange(half, dtype=jnp.float32) * -scale)
    ang = t.astype(jnp.float32)[:, None] * freqs[None, :]
    feat = jnp.concatenate([jnp.sin(ang), jnp.cos(ang)], axis=1)  # (n, COUT//4)
    e = feat @ l1w.T + l1b
    e = e * jax.nn.sigmoid(e)
    temb = (e @ l2w.T + l2b).reshape(n, 1, COUT)                  # (n, 1, COUT)

    # NCHW -> NHWC, embedded into the zero-padded flat slab (real rows 48..431).
    x_nhwc = jnp.transpose(x_nchw, (0, 2, 3, 1)).astype(jnp.float32)
    slab = jnp.zeros((n, ROWS, Wp, CIN), jnp.float32)
    slab = slab.at[:, 2:2 + H, 0:W, :].set(x_nhwc)
    xf = slab.reshape(n, FLAT, CIN)

    # conv1 full im2col: xe[:, r, t*CIN:(t+1)*CIN] = xf[:, r + Wp*dy + dx + Wp-1]
    taps = []
    for dy in range(KH):
        for dx in range(KW):
            off = Wp * (dy + 1) + dx - 1
            taps.append(xf[:, off:off + HWF, :])
    xe = jnp.concatenate(taps, axis=2).astype(jnp.bfloat16)       # (n, 384, 36)

    # conv1 weight -> (9*CIN, COUT), rows ordered (dy, dx, cin) to match xe.
    w1w = jnp.transpose(w1, (2, 3, 1, 0)).reshape(K1, COUT).astype(jnp.bfloat16)
    # conv2 weight -> (3*COUT, 3*COUT): rows (dx, cin), cols (dy, cout).
    w2w = jnp.transpose(w2, (3, 1, 2, 0)).reshape(K2, K2).astype(jnp.bfloat16)
    b1k = b1.reshape(1, COUT)
    b2k = b2.reshape(1, COUT)

    out_v = pl.pallas_call(
        res_downsample_kernel,
        out_shape=jax.ShapeDtypeStruct((n, (H // 2) * W, COUT), jnp.float32),
        grid=(n,),
        in_specs=[
            pl.BlockSpec((None, 1, COUT), lambda b: (b, 0, 0)),    # temb
            pl.BlockSpec((None, HWF, K1), lambda b: (b, 0, 0)),    # im2col input
            pl.BlockSpec((K1, COUT), lambda b: (0, 0)),            # conv1 weight
            pl.BlockSpec((1, COUT), lambda b: (0, 0)),             # conv1 bias
            pl.BlockSpec((K2, K2), lambda b: (0, 0)),              # conv2 weight
            pl.BlockSpec((1, COUT), lambda b: (0, 0)),             # conv2 bias
        ],
        out_specs=pl.BlockSpec((None, (H // 2) * W, COUT), lambda b: (b, 0, 0)),
        scratch_shapes=[
            pltpu.VMEM((HWF, COUT), jnp.float32),   # conv1 output (pre-act)
            pltpu.VMEM((P2R, K2), jnp.float32),     # conv2 wide output
            pltpu.VMEM((P2R, K2), jnp.float32),     # dx-expanded conv2 input
        ],
        compiler_params=pltpu.CompilerParams(dimension_semantics=("parallel",)),
    )(temb, xe, w1w, b1k, w2w, b2k)

    # Kernel emits vertically pooled rows at full width W; finish the 2x2 pool
    # with the horizontal pair-max here and go back to NCHW.
    out = out_v.reshape(n, H // 2, W // 2, 2, COUT).max(axis=3)
    return jnp.transpose(out, (0, 3, 1, 2))


def _reference(x_nchw, t, params):
    """Pure-JAX reference of the PyTorch module forward (for a sanity check)."""
    (w1, b1, w2, b2, l1w, l1b, l2w, l2b) = params
    n = x_nchw.shape[0]

    half = COUT // 8
    scale = math.log(10000.0) / (half - 1)
    freqs = jnp.exp(jnp.arange(half, dtype=jnp.float32) * -scale)
    ang = t.astype(jnp.float32)[:, None] * freqs[None, :]
    feat = jnp.concatenate([jnp.sin(ang), jnp.cos(ang)], axis=1)
    e = feat @ l1w.T + l1b
    e = e * jax.nn.sigmoid(e)
    temb = e @ l2w.T + l2b

    x = jnp.transpose(x_nchw, (0, 2, 3, 1)).astype(jnp.float32)

    def conv3x3(v, w, b):
        vp = jnp.pad(v, ((0, 0), (1, 1), (1, 1), (0, 0)))
        out = jnp.zeros(v.shape[:3] + (w.shape[0],), jnp.float32) + b
        for dy in range(3):
            for dx in range(3):
                out = out + vp[:, dy:dy + H, dx:dx + W, :] @ w[:, :, dy, dx].T
        return out

    h = conv3x3(x, w1, b1)
    h = h * jax.nn.sigmoid(h)
    h = h + temb[:, None, None, :]
    y = conv3x3(h, w2, b2) + h
    y = y * jax.nn.sigmoid(y)
    y = y.reshape(n, H // 2, 2, W // 2, 2, COUT).max(axis=(2, 4))
    return jnp.transpose(y, (0, 3, 1, 2))


if __name__ == "__main__":
    key = jax.random.PRNGKey(0)
    ks = jax.random.split(key, 10)
    x = jax.random.normal(ks[0], (N, CIN, H, W), jnp.float32)
    t = jax.random.uniform(ks[1], (N,), jnp.float32, 0.0, 100.0)

    # Deterministic synthetic parameters (shapes follow the nn.Module __init__).
    w1 = jax.random.normal(ks[2], (COUT, CIN, KH, KW), jnp.float32) * 0.10
    b1 = jax.random.normal(ks[3], (COUT,), jnp.float32) * 0.10
    w2 = jax.random.normal(ks[4], (COUT, COUT, KH, KW), jnp.float32) * 0.05
    b2 = jax.random.normal(ks[5], (COUT,), jnp.float32) * 0.10
    l1w = jax.random.normal(ks[6], (COUT, COUT // 4), jnp.float32) * 0.10
    l1b = jax.random.normal(ks[7], (COUT,), jnp.float32) * 0.10
    l2w = jax.random.normal(ks[8], (COUT, COUT), jnp.float32) * 0.10
    l2b = jax.random.normal(ks[9], (COUT,), jnp.float32) * 0.10
    params = (w1, b1, w2, b2, l1w, l1b, l2w, l2b)

    out = res_downsample(x, t, params)
    jax.block_until_ready(out)
    assert out.shape == (N, COUT, H // 2, W // 2)

    ref = _reference(x, t, params)
    err = float(jnp.max(jnp.abs(out - ref)))
    assert err < 5e-2, f"max abs error vs reference = {err}"
    print("KERNEL_OK")
</pallas_src>

<mosaic_0001>
module attributes {stable_mosaic.version = 11 : i64} {
  func.func @res_downsample_kernel(%arg0: i32, %arg1: memref<1x1x32xf32, #tpu.memory_space<vmem>>, %arg2: memref<1x384x36xbf16, #tpu.memory_space<vmem>>, %arg3: memref<36x32xbf16, #tpu.memory_space<vmem>>, %arg4: memref<1x32xf32, #tpu.memory_space<vmem>>, %arg5: memref<96x96xbf16, #tpu.memory_space<vmem>>, %arg6: memref<1x32xf32, #tpu.memory_space<vmem>>, %arg7: memref<1x128x32xf32, #tpu.memory_space<vmem>>, %arg8: memref<384x32xf32, #tpu.memory_space<vmem>>, %arg9: memref<432x96xf32, #tpu.memory_space<vmem>>, %arg10: memref<432x96xf32, #tpu.memory_space<vmem>>) attributes {dimension_semantics = [#tpu.dimension_semantics<parallel>], iteration_bounds = array<i64: 2>, scalar_prefetch = 0 : i64, scratch_operands = 3 : i64, tpu.core_type = #tpu.core_type<tc>, window_params = [{transform_indices = @transform_0, window_bounds = array<i64: 1, 1, 32>}, {transform_indices = @transform_1, window_bounds = array<i64: 1, 384, 36>}, {pipeline_mode = #tpu.pipeline_mode<synchronous>, transform_indices = @transform_2, window_bounds = array<i64: 36, 32>}, {pipeline_mode = #tpu.pipeline_mode<synchronous>, transform_indices = @transform_3, window_bounds = array<i64: 1, 32>}, {pipeline_mode = #tpu.pipeline_mode<synchronous>, transform_indices = @transform_4, window_bounds = array<i64: 96, 96>}, {pipeline_mode = #tpu.pipeline_mode<synchronous>, transform_indices = @transform_5, window_bounds = array<i64: 1, 32>}, {transform_indices = @transform_6, window_bounds = array<i64: 1, 128, 32>}]} {
    %cst = arith.constant 0.000000e+00 : f32
    %0 = vector.broadcast %cst : f32 to vector<32x96xf32>
    %c0 = arith.constant 0 : index
    %c0_0 = arith.constant 0 : index
    %1 = vector.load %arg10[%c0, %c0_0] : memref<432x96xf32, #tpu.memory_space<vmem>>, vector<32x96xf32>
    tpu.vector_store %arg10[%c0, %c0_0], %0 {strides = array<i32>} : memref<432x96xf32, #tpu.memory_space<vmem>>, vector<32x96xf32>,
    %cst_1 = arith.constant 0.000000e+00 : f32
    %2 = vector.broadcast %cst_1 : f32 to vector<32x96xf32>
    %c400 = arith.constant 400 : index
    %c0_2 = arith.constant 0 : index
    %3 = vector.load %arg10[%c400, %c0_2] : memref<432x96xf32, #tpu.memory_space<vmem>>, vector<32x96xf32>
    tpu.vector_store %arg10[%c400, %c0_2], %2 {strides = array<i32>} : memref<432x96xf32, #tpu.memory_space<vmem>>, vector<32x96xf32>,
    %c0_3 = arith.constant 0 : index
    %c0_4 = arith.constant 0 : index
    %c0_5 = arith.constant 0 : index
    %4 = vector.load %arg2[%c0_3, %c0_4, %c0_5] : memref<1x384x36xbf16, #tpu.memory_space<vmem>>, vector<1x384x36xbf16>
    %5 = vector.shape_cast %4 : vector<1x384x36xbf16> to vector<384x36xbf16>
    %c0_6 = arith.constant 0 : index
    %c0_7 = arith.constant 0 : index
    %6 = vector.load %arg3[%c0_6, %c0_7] : memref<36x32xbf16, #tpu.memory_space<vmem>>, vector<36x32xbf16>
    %cst_8 = arith.constant dense<0.000000e+00> : vector<384x32xf32>
    %7 = tpu.matmul %5, %6, %cst_8 {dimension_numbers = #tpu.dot_dimension_numbers<[1], [0], [0], [1], [0, 0, 1, 1], [], []>} : vector<384x36xbf16>, vector<36x32xbf16>, vector<384x32xf32> -> vector<384x32xf32>
    %c0_9 = arith.constant 0 : index
    %c0_10 = arith.constant 0 : index
    %8 = vector.load %arg8[%c0_9, %c0_10] : memref<384x32xf32, #tpu.memory_space<vmem>>, vector<384x32xf32>
    tpu.vector_store %arg8[%c0_9, %c0_10], %7 {strides = array<i32>} : memref<384x32xf32, #tpu.memory_space<vmem>>, vector<384x32xf32>,
    %9 = tpu.iota {dimensions = array<i32: 0>} : vector<48x1xi32>
    %c24_i32 = arith.constant 24 : i32
    %c0_i32 = arith.constant 0 : i32
    %10 = arith.cmpi eq, %c24_i32, %c0_i32 : i32
    %c1_i32 = arith.constant 1 : i32
    %11 = arith.select %10, %c1_i32, %c24_i32 : i32
    %12 = vector.broadcast %11 : i32 to vector<48x1xi32>
    %13 = arith.remsi %9, %12 : vector<48x1xi32>
    %c0_i32_11 = arith.constant 0 : i32
    %14 = vector.broadcast %c0_i32_11 : i32 to vector<48x1xi32>
    %15 = arith.cmpi ne, %13, %14 : vector<48x1xi32>
    %c0_i32_12 = arith.constant 0 : i32
    %16 = vector.broadcast %c0_i32_12 : i32 to vector<48x1xi32>
    %17 = arith.cmpi slt, %13, %16 : vector<48x1xi32>
    %c0_i32_13 = arith.constant 0 : i32
    %18 = arith.cmpi slt, %11, %c0_i32_13 : i32
    %19 = vector.broadcast %18 : i1 to vector<48x1xi1>
    %20 = vector.broadcast %19 : vector<48x1xi1> to vector<48x1xi1>
    %21 = arith.xori %17, %20 : vector<48x1xi1>
    %22 = arith.andi %21, %15 : vector<48x1xi1>
    %23 = vector.broadcast %11 : i32 to vector<48x1xi32>
    %24 = arith.addi %13, %23 : vector<48x1xi32>
    %25 = arith.select %22, %24, %13 : vector<48x1xi1>, vector<48x1xi32>
    %c16_i32 = arith.constant 16 : i32
    %26 = vector.broadcast %c16_i32 : i32 to vector<48x1xi32>
    %27 = arith.cmpi slt, %25, %26 : vector<48x1xi32>
    %c0_14 = arith.constant 0 : index
    %c0_15 = arith.constant 0 : index
    %28 = vector.load %arg4[%c0_14, %c0_15] : memref<1x32xf32, #tpu.memory_space<vmem>>, vector<1x32xf32>
    %c0_16 = arith.constant 0 : index
    %c0_17 = arith.constant 0 : index
    %c0_18 = arith.constant 0 : index
    %29 = vector.load %arg1[%c0_16, %c0_17, %c0_18] : memref<1x1x32xf32, #tpu.memory_space<vmem>>, vector<1x1x32xf32>
    %30 = vector.shape_cast %29 : vector<1x1x32xf32> to vector<1x32xf32>
    %c0_19 = arith.constant 0 : index
    %c0_20 = arith.constant 0 : index
    %31 = vector.load %arg8[%c0_19, %c0_20] : memref<384x32xf32, #tpu.memory_space<vmem>>, vector<48x32xf32>
    %32 = vector.broadcast %28 : vector<1x32xf32> to vector<48x32xf32>
    %33 = arith.addf %31, %32 : vector<48x32xf32>
    %cst_21 = arith.constant 0.000000e+00 : f32
    %34 = vector.broadcast %cst_21 : f32 to vector<48x32xf32>
    %35 = arith.subf %34, %33 : vector<48x32xf32>
    %36 = math.exp %35 : vector<48x32xf32>
    %cst_22 = arith.constant 1.000000e+00 : f32
    %37 = vector.broadcast %cst_22 : f32 to vector<48x32xf32>
    %38 = arith.addf %37, %36 : vector<48x32xf32>
    %39 = tpu.reciprocal %38 {approx = true} : vector<48x32xf32> -> vector<48x32xf32>
    %40 = arith.mulf %33, %39 : vector<48x32xf32>
    %41 = vector.broadcast %30 : vector<1x32xf32> to vector<48x32xf32>
    %42 = arith.addf %40, %41 : vector<48x32xf32>
    %cst_23 = arith.constant 0.000000e+00 : f32
    %43 = vector.shape_cast %27 : vector<48x1xi1> to vector<48x1xi1>
    %44 = vector.broadcast %43 : vector<48x1xi1> to vector<48x32xi1>
    %45 = vector.broadcast %cst_23 : f32 to vector<48x32xf32>
    %46 = arith.select %44, %42, %45 : vector<48x32xi1>, vector<48x32xf32>
    %c25 = arith.constant 25 : index
    %c0_24 = arith.constant 0 : index
    %47 = vector.load %arg10[%c25, %c0_24] : memref<432x96xf32, #tpu.memory_space<vmem>>, vector<48x32xf32>
    tpu.vector_store %arg10[%c25, %c0_24], %46 {strides = array<i32>} : memref<432x96xf32, #tpu.memory_space<vmem>>, vector<48x32xf32>,
    %c24 = arith.constant 24 : index
    %c32 = arith.constant 32 : index
    %48 = vector.load %arg10[%c24, %c32] : memref<432x96xf32, #tpu.memory_space<vmem>>, vector<48x32xf32>
    tpu.vector_store %arg10[%c24, %c32], %46 {strides = array<i32>} : memref<432x96xf32, #tpu.memory_space<vmem>>, vector<48x32xf32>,
    %c23 = arith.constant 23 : index
    %c64 = arith.constant 64 : index
    %49 = vector.load %arg10[%c23, %c64] : memref<432x96xf32, #tpu.memory_space<vmem>>, vector<48x32xf32>
    tpu.vector_store %arg10[%c23, %c64], %46 {strides = array<i32>} : memref<432x96xf32, #tpu.memory_space<vmem>>, vector<48x32xf32>,
    %c48 = arith.constant 48 : index
    %c0_25 = arith.constant 0 : index
    %50 = vector.load %arg8[%c48, %c0_25] : memref<384x32xf32, #tpu.memory_space<vmem>>, vector<48x32xf32>
    %51 = vector.broadcast %28 : vector<1x32xf32> to vector<48x32xf32>
    %52 = arith.addf %50, %51 : vector<48x32xf32>
    %cst_26 = arith.constant 0.000000e+00 : f32
    %53 = vector.broadcast %cst_26 : f32 to vector<48x32xf32>
    %54 = arith.subf %53, %52 : vector<48x32xf32>
    %55 = math.exp %54 : vector<48x32xf32>
    %cst_27 = arith.constant 1.000000e+00 : f32
    %56 = vector.broadcast %cst_27 : f32 to vector<48x32xf32>
    %57 = arith.addf %56, %55 : vector<48x32xf32>
    %58 = tpu.reciprocal %57 {approx = true} : vector<48x32xf32> -> vector<48x32xf32>
    %59 = arith.mulf %52, %58 : vector<48x32xf32>
    %60 = vector.broadcast %30 : vector<1x32xf32> to vector<48x32xf32>
    %61 = arith.addf %59, %60 : vector<48x32xf32>
    %cst_28 = arith.constant 0.000000e+00 : f32
    %62 = vector.shape_cast %27 : vector<48x1xi1> to vector<48x1xi1>
    %63 = vector.broadcast %62 : vector<48x1xi1> to vector<48x32xi1>
    %64 = vector.broadcast %cst_28 : f32 to vector<48x32xf32>
    %65 = arith.select %63, %61, %64 : vector<48x32xi1>, vector<48x32xf32>
    %c73 = arith.constant 73 : index
    %c0_29 = arith.constant 0 : index
    %66 = vector.load %arg10[%c73, %c0_29] : memref<432x96xf32, #tpu.memory_space<vmem>>, vector<48x32xf32>
    tpu.vector_store %arg10[%c73, %c0_29], %65 {strides = array<i32>} : memref<432x96xf32, #tpu.memory_space<vmem>>, vector<48x32xf32>,
    %c72 = arith.constant 72 : index
    %c32_30 = arith.constant 32 : index
    %67 = vector.load %arg10[%c72, %c32_30] : memref<432x96xf32, #tpu.memory_space<vmem>>, vector<48x32xf32>
    tpu.vector_store %arg10[%c72, %c32_30], %65 {strides = array<i32>} : memref<432x96xf32, #tpu.memory_space<vmem>>, vector<48x32xf32>,
    %c71 = arith.constant 71 : index
    %c64_31 = arith.constant 64 : index
    %68 = vector.load %arg10[%c71, %c64_31] : memref<432x96xf32, #tpu.memory_space<vmem>>, vector<48x32xf32>
    tpu.vector_store %arg10[%c71, %c64_31], %65 {strides = array<i32>} : memref<432x96xf32, #tpu.memory_space<vmem>>, vector<48x32xf32>,
    %c96 = arith.constant 96 : index
    %c0_32 = arith.constant 0 : index
    %69 = vector.load %arg8[%c96, %c0_32] : memref<384x32xf32, #tpu.memory_space<vmem>>, vector<48x32xf32>
    %70 = vector.broadcast %28 : vector<1x32xf32> to vector<48x32xf32>
    %71 = arith.addf %69, %70 : vector<48x32xf32>
    %cst_33 = arith.constant 0.000000e+00 : f32
    %72 = vector.broadcast %cst_33 : f32 to vector<48x32xf32>
    %73 = arith.subf %72, %71 : vector<48x32xf32>
    %74 = math.exp %73 : vector<48x32xf32>
    %cst_34 = arith.constant 1.000000e+00 : f32
    %75 = vector.broadcast %cst_34 : f32 to vector<48x32xf32>
    %76 = arith.addf %75, %74 : vector<48x32xf32>
    %77 = tpu.reciprocal %76 {approx = true} : vector<48x32xf32> -> vector<48x32xf32>
    %78 = arith.mulf %71, %77 : vector<48x32xf32>
    %79 = vector.broadcast %30 : vector<1x32xf32> to vector<48x32xf32>
    %80 = arith.addf %78, %79 : vector<48x32xf32>
    %cst_35 = arith.constant 0.000000e+00 : f32
    %81 = vector.shape_cast %27 : vector<48x1xi1> to vector<48x1xi1>
    %82 = vector.broadcast %81 : vector<48x1xi1> to vector<48x32xi1>
    %83 = vector.broadcast %cst_35 : f32 to vector<48x32xf32>
    %84 = arith.select %82, %80, %83 : vector<48x32xi1>, vector<48x32xf32>
    %c121 = arith.constant 121 : index
    %c0_36 = arith.constant 0 : index
    %85 = vector.load %arg10[%c121, %c0_36] : memref<432x96xf32, #tpu.memory_space<vmem>>, vector<48x32xf32>
    tpu.vector_store %arg10[%c121, %c0_36], %84 {strides = array<i32>} : memref<432x96xf32, #tpu.memory_space<vmem>>, vector<48x32xf32>,
    %c120 = arith.constant 120 : index
    %c32_37 = arith.constant 32 : index
    %86 = vector.load %arg10[%c120, %c32_37] : memref<432x96xf32, #tpu.memory_space<vmem>>, vector<48x32xf32>
    tpu.vector_store %arg10[%c120, %c32_37], %84 {strides = array<i32>} : memref<432x96xf32, #tpu.memory_space<vmem>>, vector<48x32xf32>,
    %c119 = arith.constant 119 : index
    %c64_38 = arith.constant 64 : index
    %87 = vector.load %arg10[%c119, %c64_38] : memref<432x96xf32, #tpu.memory_space<vmem>>, vector<48x32xf32>
    tpu.vector_store %arg10[%c119, %c64_38], %84 {strides = array<i32>} : memref<432x96xf32, #tpu.memory_space<vmem>>, vector<48x32xf32>,
    %c144 = arith.constant 144 : index
    %c0_39 = arith.constant 0 : index
    %88 = vector.load %arg8[%c144, %c0_39] : memref<384x32xf32, #tpu.memory_space<vmem>>, vector<48x32xf32>
    %89 = vector.broadcast %28 : vector<1x32xf32> to vector<48x32xf32>
    %90 = arith.addf %88, %89 : vector<48x32xf32>
    %cst_40 = arith.constant 0.000000e+00 : f32
    %91 = vector.broadcast %cst_40 : f32 to vector<48x32xf32>
    %92 = arith.subf %91, %90 : vector<48x32xf32>
    %93 = math.exp %92 : vector<48x32xf32>
    %cst_41 = arith.constant 1.000000e+00 : f32
    %94 = vector.broadcast %cst_41 : f32 to vector<48x32xf32>
    %95 = arith.addf %94, %93 : vector<48x32xf32>
    %96 = tpu.reciprocal %95 {approx = true} : vector<48x32xf32> -> vector<48x32xf32>
    %97 = arith.mulf %90, %96 : vector<48x32xf32>
    %98 = vector.broadcast %30 : vector<1x32xf32> to vector<48x32xf32>
    %99 = arith.addf %97, %98 : vector<48x32xf32>
    %cst_42 = arith.constant 0.000000e+00 : f32
    %100 = vector.shape_cast %27 : vector<48x1xi1> to vector<48x1xi1>
    %101 = vector.broadcast %100 : vector<48x1xi1> to vector<48x32xi1>
    %102 = vector.broadcast %cst_42 : f32 to vector<48x32xf32>
    %103 = arith.select %101, %99, %102 : vector<48x32xi1>, vector<48x32xf32>
    %c169 = arith.constant 169 : index
    %c0_43 = arith.constant 0 : index
    %104 = vector.load %arg10[%c169, %c0_43] : memref<432x96xf32, #tpu.memory_space<vmem>>, vector<48x32xf32>
    tpu.vector_store %arg10[%c169, %c0_43], %103 {strides = array<i32>} : memref<432x96xf32, #tpu.memory_space<vmem>>, vector<48x32xf32>,
    %c168 = arith.constant 168 : index
    %c32_44 = arith.constant 32 : index
    %105 = vector.load %arg10[%c168, %c32_44] : memref<432x96xf32, #tpu.memory_space<vmem>>, vector<48x32xf32>
    tpu.vector_store %arg10[%c168, %c32_44], %103 {strides = array<i32>} : memref<432x96xf32, #tpu.memory_space<vmem>>, vector<48x32xf32>,
    %c167 = arith.constant 167 : index
    %c64_45 = arith.constant 64 : index
    %106 = vector.load %arg10[%c167, %c64_45] : memref<432x96xf32, #tpu.memory_space<vmem>>, vector<48x32xf32>
    tpu.vector_store %arg10[%c167, %c64_45], %103 {strides = array<i32>} : memref<432x96xf32, #tpu.memory_space<vmem>>, vector<48x32xf32>,
    %c192 = arith.constant 192 : index
    %c0_46 = arith.constant 0 : index
    %107 = vector.load %arg8[%c192, %c0_46] : memref<384x32xf32, #tpu.memory_space<vmem>>, vector<48x32xf32>
    %108 = vector.broadcast %28 : vector<1x32xf32> to vector<48x32xf32>
    %109 = arith.addf %107, %108 : vector<48x32xf32>
    %cst_47 = arith.constant 0.000000e+00 : f32
    %110 = vector.broadcast %cst_47 : f32 to vector<48x32xf32>
    %111 = arith.subf %110, %109 : vector<48x32xf32>
    %112 = math.exp %111 : vector<48x32xf32>
    %cst_48 = arith.constant 1.000000e+00 : f32
    %113 = vector.broadcast %cst_48 : f32 to vector<48x32xf32>
    %114 = arith.addf %113, %112 : vector<48x32xf32>
    %115 = tpu.reciprocal %114 {approx = true} : vector<48x32xf32> -> vector<48x32xf32>
    %116 = arith.mulf %109, %115 : vector<48x32xf32>
    %117 = vector.broadcast %30 : vector<1x32xf32> to vector<48x32xf32>
    %118 = arith.addf %116, %117 : vector<48x32xf32>
    %cst_49 = arith.constant 0.000000e+00 : f32
    %119 = vector.shape_cast %27 : vector<48x1xi1> to vector<48x1xi1>
    %120 = vector.broadcast %119 : vector<48x1xi1> to vector<48x32xi1>
    %121 = vector.broadcast %cst_49 : f32 to vector<48x32xf32>
    %122 = arith.select %120, %118, %121 : vector<48x32xi1>, vector<48x32xf32>
    %c217 = arith.constant 217 : index
    %c0_50 = arith.constant 0 : index
    %123 = vector.load %arg10[%c217, %c0_50] : memref<432x96xf32, #tpu.memory_space<vmem>>, vector<48x32xf32>
    tpu.vector_store %arg10[%c217, %c0_50], %122 {strides = array<i32>} : memref<432x96xf32, #tpu.memory_space<vmem>>, vector<48x32xf32>,
    %c216 = arith.constant 216 : index
    %c32_51 = arith.constant 32 : index
    %124 = vector.load %arg10[%c216, %c32_51] : memref<432x96xf32, #tpu.memory_space<vmem>>, vector<48x32xf32>
    tpu.vector_store %arg10[%c216, %c32_51], %122 {strides = array<i32>} : memref<432x96xf32, #tpu.memory_space<vmem>>, vector<48x32xf32>,
    %c215 = arith.constant 215 : index
    %c64_52 = arith.constant 64 : index
    %125 = vector.load %arg10[%c215, %c64_52] : memref<432x96xf32, #tpu.memory_space<vmem>>, vector<48x32xf32>
    tpu.vector_store %arg10[%c215, %c64_52], %122 {strides = array<i32>} : memref<432x96xf32, #tpu.memory_space<vmem>>, vector<48x32xf32>,
    %c240 = arith.constant 240 : index
    %c0_53 = arith.constant 0 : index
    %126 = vector.load %arg8[%c240, %c0_53] : memref<384x32xf32, #tpu.memory_space<vmem>>, vector<48x32xf32>
    %127 = vector.broadcast %28 : vector<1x32xf32> to vector<48x32xf32>
    %128 = arith.addf %126, %127 : vector<48x32xf32>
    %cst_54 = arith.constant 0.000000e+00 : f32
    %129 = vector.broadcast %cst_54 : f32 to vector<48x32xf32>
    %130 = arith.subf %129, %128 : vector<48x32xf32>
    %131 = math.exp %130 : vector<48x32xf32>
    %cst_55 = arith.constant 1.000000e+00 : f32
    %132 = vector.broadcast %cst_55 : f32 to vector<48x32xf32>
    %133 = arith.addf %132, %131 : vector<48x32xf32>
    %134 = tpu.reciprocal %133 {approx = true} : vector<48x32xf32> -> vector<48x32xf32>
    %135 = arith.mulf %128, %134 : vector<48x32xf32>
    %136 = vector.broadcast %30 : vector<1x32xf32> to vector<48x32xf32>
    %137 = arith.addf %135, %136 : vector<48x32xf32>
    %cst_56 = arith.constant 0.000000e+00 : f32
    %138 = vector.shape_cast %27 : vector<48x1xi1> to vector<48x1xi1>
    %139 = vector.broadcast %138 : vector<48x1xi1> to vector<48x32xi1>
    %140 = vector.broadcast %cst_56 : f32 to vector<48x32xf32>
    %141 = arith.select %139, %137, %140 : vector<48x32xi1>, vector<48x32xf32>
    %c265 = arith.constant 265 : index
    %c0_57 = arith.constant 0 : index
    %142 = vector.load %arg10[%c265, %c0_57] : memref<432x96xf32, #tpu.memory_space<vmem>>, vector<48x32xf32>
    tpu.vector_store %arg10[%c265, %c0_57], %141 {strides = array<i32>} : memref<432x96xf32, #tpu.memory_space<vmem>>, vector<48x32xf32>,
    %c264 = arith.constant 264 : index
    %c32_58 = arith.constant 32 : index
    %143 = vector.load %arg10[%c264, %c32_58] : memref<432x96xf32, #tpu.memory_space<vmem>>, vector<48x32xf32>
    tpu.vector_store %arg10[%c264, %c32_58], %141 {strides = array<i32>} : memref<432x96xf32, #tpu.memory_space<vmem>>, vector<48x32xf32>,
    %c263 = arith.constant 263 : index
    %c64_59 = arith.constant 64 : index
    %144 = vector.load %arg10[%c263, %c64_59] : memref<432x96xf32, #tpu.memory_space<vmem>>, vector<48x32xf32>
    tpu.vector_store %arg10[%c263, %c64_59], %141 {strides = array<i32>} : memref<432x96xf32, #tpu.memory_space<vmem>>, vector<48x32xf32>,
    %c288 = arith.constant 288 : index
    %c0_60 = arith.constant 0 : index
    %145 = vector.load %arg8[%c288, %c0_60] : memref<384x32xf32, #tpu.memory_space<vmem>>, vector<48x32xf32>
    %146 = vector.broadcast %28 : vector<1x32xf32> to vector<48x32xf32>
    %147 = arith.addf %145, %146 : vector<48x32xf32>
    %cst_61 = arith.constant 0.000000e+00 : f32
    %148 = vector.broadcast %cst_61 : f32 to vector<48x32xf32>
    %149 = arith.subf %148, %147 : vector<48x32xf32>
    %150 = math.exp %149 : vector<48x32xf32>
    %cst_62 = arith.constant 1.000000e+00 : f32
    %151 = vector.broadcast %cst_62 : f32 to vector<48x32xf32>
    %152 = arith.addf %151, %150 : vector<48x32xf32>
    %153 = tpu.reciprocal %152 {approx = true} : vector<48x32xf32> -> vector<48x32xf32>
    %154 = arith.mulf %147, %153 : vector<48x32xf32>
    %155 = vector.broadcast %30 : vector<1x32xf32> to vector<48x32xf32>
    %156 = arith.addf %154, %155 : vector<48x32xf32>
    %cst_63 = arith.constant 0.000000e+00 : f32
    %157 = vector.shape_cast %27 : vector<48x1xi1> to vector<48x1xi1>
    %158 = vector.broadcast %157 : vector<48x1xi1> to vector<48x32xi1>
    %159 = vector.broadcast %cst_63 : f32 to vector<48x32xf32>
    %160 = arith.select %158, %156, %159 : vector<48x32xi1>, vector<48x32xf32>
    %c313 = arith.constant 313 : index
    %c0_64 = arith.constant 0 : index
    %161 = vector.load %arg10[%c313, %c0_64] : memref<432x96xf32, #tpu.memory_space<vmem>>, vector<48x32xf32>
    tpu.vector_store %arg10[%c313, %c0_64], %160 {strides = array<i32>} : memref<432x96xf32, #tpu.memory_space<vmem>>, vector<48x32xf32>,
    %c312 = arith.constant 312 : index
    %c32_65 = arith.constant 32 : index
    %162 = vector.load %arg10[%c312, %c32_65] : memref<432x96xf32, #tpu.memory_space<vmem>>, vector<48x32xf32>
    tpu.vector_store %arg10[%c312, %c32_65], %160 {strides = array<i32>} : memref<432x96xf32, #tpu.memory_space<vmem>>, vector<48x32xf32>,
    %c311 = arith.constant 311 : index
    %c64_66 = arith.constant 64 : index
    %163 = vector.load %arg10[%c311, %c64_66] : memref<432x96xf32, #tpu.memory_space<vmem>>, vector<48x32xf32>
    tpu.vector_store %arg10[%c311, %c64_66], %160 {strides = array<i32>} : memref<432x96xf32, #tpu.memory_space<vmem>>, vector<48x32xf32>,
    %c336 = arith.constant 336 : index
    %c0_67 = arith.constant 0 : index
    %164 = vector.load %arg8[%c336, %c0_67] : memref<384x32xf32, #tpu.memory_space<vmem>>, vector<48x32xf32>
    %165 = vector.broadcast %28 : vector<1x32xf32> to vector<48x32xf32>
    %166 = arith.addf %164, %165 : vector<48x32xf32>
    %cst_68 = arith.constant 0.000000e+00 : f32
    %167 = vector.broadcast %cst_68 : f32 to vector<48x32xf32>
    %168 = arith.subf %167, %166 : vector<48x32xf32>
    %169 = math.exp %168 : vector<48x32xf32>
    %cst_69 = arith.constant 1.000000e+00 : f32
    %170 = vector.broadcast %cst_69 : f32 to vector<48x32xf32>
    %171 = arith.addf %170, %169 : vector<48x32xf32>
    %172 = tpu.reciprocal %171 {approx = true} : vector<48x32xf32> -> vector<48x32xf32>
    %173 = arith.mulf %166, %172 : vector<48x32xf32>
    %174 = vector.broadcast %30 : vector<1x32xf32> to vector<48x32xf32>
    %175 = arith.addf %173, %174 : vector<48x32xf32>
    %cst_70 = arith.constant 0.000000e+00 : f32
    %176 = vector.shape_cast %27 : vector<48x1xi1> to vector<48x1xi1>
    %177 = vector.broadcast %176 : vector<48x1xi1> to vector<48x32xi1>
    %178 = vector.broadcast %cst_70 : f32 to vector<48x32xf32>
    %179 = arith.select %177, %175, %178 : vector<48x32xi1>, vector<48x32xf32>
    %c361 = arith.constant 361 : index
    %c0_71 = arith.constant 0 : index
    %180 = vector.load %arg10[%c361, %c0_71] : memref<432x96xf32, #tpu.memory_space<vmem>>, vector<48x32xf32>
    tpu.vector_store %arg10[%c361, %c0_71], %179 {strides = array<i32>} : memref<432x96xf32, #tpu.memory_space<vmem>>, vector<48x32xf32>,
    %c360 = arith.constant 360 : index
    %c32_72 = arith.constant 32 : index
    %181 = vector.load %arg10[%c360, %c32_72] : memref<432x96xf32, #tpu.memory_space<vmem>>, vector<48x32xf32>
    tpu.vector_store %arg10[%c360, %c32_72], %179 {strides = array<i32>} : memref<432x96xf32, #tpu.memory_space<vmem>>, vector<48x32xf32>,
    %c359 = arith.constant 359 : index
    %c64_73 = arith.constant 64 : index
    %182 = vector.load %arg10[%c359, %c64_73] : memref<432x96xf32, #tpu.memory_space<vmem>>, vector<48x32xf32>
    tpu.vector_store %arg10[%c359, %c64_73], %179 {strides = array<i32>} : memref<432x96xf32, #tpu.memory_space<vmem>>, vector<48x32xf32>,
    %c0_74 = arith.constant 0 : index
    %c0_75 = arith.constant 0 : index
    %183 = vector.load %arg10[%c0_74, %c0_75] : memref<432x96xf32, #tpu.memory_space<vmem>>, vector<432x96xf32>
    %184 = arith.truncf %183 : vector<432x96xf32> to vector<432x96xbf16>
    %c0_76 = arith.constant 0 : index
    %c0_77 = arith.constant 0 : index
    %185 = vector.load %arg5[%c0_76, %c0_77] : memref<96x96xbf16, #tpu.memory_space<vmem>>, vector<96x96xbf16>
    %cst_78 = arith.constant dense<0.000000e+00> : vector<432x96xf32>
    %186 = tpu.matmul %184, %185, %cst_78 {dimension_numbers = #tpu.dot_dimension_numbers<[1], [0], [0], [1], [0, 0, 1, 1], [], []>} : vector<432x96xbf16>, vector<96x96xbf16>, vector<432x96xf32> -> vector<432x96xf32>
    %c0_79 = arith.constant 0 : index
    %c0_80 = arith.constant 0 : index
    %187 = vector.load %arg9[%c0_79, %c0_80] : memref<432x96xf32, #tpu.memory_space<vmem>>, vector<432x96xf32>
    tpu.vector_store %arg9[%c0_79, %c0_80], %186 {strides = array<i32>} : memref<432x96xf32, #tpu.memory_space<vmem>>, vector<432x96xf32>,
    %c0_81 = arith.constant 0 : index
    %c0_82 = arith.constant 0 : index
    %188 = vector.load %arg6[%c0_81, %c0_82] : memref<1x32xf32, #tpu.memory_space<vmem>>, vector<1x32xf32>
    %c0_83 = arith.constant 0 : index
    %c0_84 = arith.constant 0 : index
    %189 = vector.load %arg9[%c0_83, %c0_84] : memref<432x96xf32, #tpu.memory_space<vmem>>, vector<48x32xf32>
    %c24_85 = arith.constant 24 : index
    %c32_86 = arith.constant 32 : index
    %190 = vector.load %arg9[%c24_85, %c32_86] : memref<432x96xf32, #tpu.memory_space<vmem>>, vector<48x32xf32>
    %191 = arith.addf %189, %190 : vector<48x32xf32>
    %c48_87 = arith.constant 48 : index
    %c64_88 = arith.constant 64 : index
    %192 = vector.load %arg9[%c48_87, %c64_88] : memref<432x96xf32, #tpu.memory_space<vmem>>, vector<48x32xf32>
    %193 = arith.addf %191, %192 : vector<48x32xf32>
    %c24_89 = arith.constant 24 : index
    %c32_90 = arith.constant 32 : index
    %194 = vector.load %arg10[%c24_89, %c32_90] : memref<432x96xf32, #tpu.memory_space<vmem>>, vector<48x32xf32>
    %195 = vector.broadcast %188 : vector<1x32xf32> to vector<48x32xf32>
    %196 = arith.addf %193, %195 : vector<48x32xf32>
    %197 = arith.addf %196, %194 : vector<48x32xf32>
    %cst_91 = arith.constant 0.000000e+00 : f32
    %198 = vector.broadcast %cst_91 : f32 to vector<48x32xf32>
    %199 = arith.subf %198, %197 : vector<48x32xf32>
    %200 = math.exp %199 : vector<48x32xf32>
    %cst_92 = arith.constant 1.000000e+00 : f32
    %201 = vector.broadcast %cst_92 : f32 to vector<48x32xf32>
    %202 = arith.addf %201, %200 : vector<48x32xf32>
    %203 = tpu.reciprocal %202 {approx = true} : vector<48x32xf32> -> vector<48x32xf32>
    %204 = arith.mulf %197, %203 : vector<48x32xf32>
    %205 = vector.extract_strided_slice %204 {offsets = [0, 0], sizes = [16, 32], strides = [1, 1]} : vector<48x32xf32> to vector<16x32xf32>
    %206 = vector.extract_strided_slice %204 {offsets = [24, 0], sizes = [16, 32], strides = [1, 1]} : vector<48x32xf32> to vector<16x32xf32>
    %207 = arith.maximumf %205, %206 : vector<16x32xf32>
    %c0_93 = arith.constant 0 : index
    %c0_94 = arith.constant 0 : index
    %c0_95 = arith.constant 0 : index
    %208 = vector.load %arg7[%c0_93, %c0_94, %c0_95] : memref<1x128x32xf32, #tpu.memory_space<vmem>>, vector<1x16x32xf32>
    %209 = vector.shape_cast %208 : vector<1x16x32xf32> to vector<16x32xf32>
    %210 = vector.shape_cast %207 : vector<16x32xf32> to vector<1x16x32xf32>
    tpu.vector_store %arg7[%c0_93, %c0_94, %c0_95], %210 {strides = array<i32>} : memref<1x128x32xf32, #tpu.memory_space<vmem>>, vector<1x16x32xf32>,
    %c48_96 = arith.constant 48 : index
    %c0_97 = arith.constant 0 : index
    %211 = vector.load %arg9[%c48_96, %c0_97] : memref<432x96xf32, #tpu.memory_space<vmem>>, vector<48x32xf32>
    %c72_98 = arith.constant 72 : index
    %c32_99 = arith.constant 32 : index
    %212 = vector.load %arg9[%c72_98, %c32_99] : memref<432x96xf32, #tpu.memory_space<vmem>>, vector<48x32xf32>
    %213 = arith.addf %211, %212 : vector<48x32xf32>
    %c96_100 = arith.constant 96 : index
    %c64_101 = arith.constant 64 : index
    %214 = vector.load %arg9[%c96_100, %c64_101] : memref<432x96xf32, #tpu.memory_space<vmem>>, vector<48x32xf32>
    %215 = arith.addf %213, %214 : vector<48x32xf32>
    %c72_102 = arith.constant 72 : index
    %c32_103 = arith.constant 32 : index
    %216 = vector.load %arg10[%c72_102, %c32_103] : memref<432x96xf32, #tpu.memory_space<vmem>>, vector<48x32xf32>
    %217 = vector.broadcast %188 : vector<1x32xf32> to vector<48x32xf32>
    %218 = arith.addf %215, %217 : vector<48x32xf32>
    %219 = arith.addf %218, %216 : vector<48x32xf32>
    %cst_104 = arith.constant 0.000000e+00 : f32
    %220 = vector.broadcast %cst_104 : f32 to vector<48x32xf32>
    %221 = arith.subf %220, %219 : vector<48x32xf32>
    %222 = math.exp %221 : vector<48x32xf32>
    %cst_105 = arith.constant 1.000000e+00 : f32
    %223 = vector.broadcast %cst_105 : f32 to vector<48x32xf32>
    %224 = arith.addf %223, %222 : vector<48x32xf32>
    %225 = tpu.reciprocal %224 {approx = true} : vector<48x32xf32> -> vector<48x32xf32>
    %226 = arith.mulf %219, %225 : vector<48x32xf32>
    %227 = vector.extract_strided_slice %226 {offsets = [0, 0], sizes = [16, 32], strides = [1, 1]} : vector<48x32xf32> to vector<16x32xf32>
    %228 = vector.extract_strided_slice %226 {offsets = [24, 0], sizes = [16, 32], strides = [1, 1]} : vector<48x32xf32> to vector<16x32xf32>
    %229 = arith.maximumf %227, %228 : vector<16x32xf32>
    %c0_106 = arith.constant 0 : index
    %c16 = arith.constant 16 : index
    %c0_107 = arith.constant 0 : index
    %230 = vector.load %arg7[%c0_106, %c16, %c0_107] : memref<1x128x32xf32, #tpu.memory_space<vmem>>, vector<1x16x32xf32>
    %231 = vector.shape_cast %230 : vector<1x16x32xf32> to vector<16x32xf32>
    %232 = vector.shape_cast %229 : vector<16x32xf32> to vector<1x16x32xf32>
    tpu.vector_store %arg7[%c0_106, %c16, %c0_107], %232 {strides = array<i32>} : memref<1x128x32xf32, #tpu.memory_space<vmem>>, vector<1x16x32xf32>,
    %c96_108 = arith.constant 96 : index
    %c0_109 = arith.constant 0 : index
    %233 = vector.load %arg9[%c96_108, %c0_109] : memref<432x96xf32, #tpu.memory_space<vmem>>, vector<48x32xf32>
    %c120_110 = arith.constant 120 : index
    %c32_111 = arith.constant 32 : index
    %234 = vector.load %arg9[%c120_110, %c32_111] : memref<432x96xf32, #tpu.memory_space<vmem>>, vector<48x32xf32>
    %235 = arith.addf %233, %234 : vector<48x32xf32>
    %c144_112 = arith.constant 144 : index
    %c64_113 = arith.constant 64 : index
    %236 = vector.load %arg9[%c144_112, %c64_113] : memref<432x96xf32, #tpu.memory_space<vmem>>, vector<48x32xf32>
    %237 = arith.addf %235, %236 : vector<48x32xf32>
    %c120_114 = arith.constant 120 : index
    %c32_115 = arith.constant 32 : index
    %238 = vector.load %arg10[%c120_114, %c32_115] : memref<432x96xf32, #tpu.memory_space<vmem>>, vector<48x32xf32>
    %239 = vector.broadcast %188 : vector<1x32xf32> to vector<48x32xf32>
    %240 = arith.addf %237, %239 : vector<48x32xf32>
    %241 = arith.addf %240, %238 : vector<48x32xf32>
    %cst_116 = arith.constant 0.000000e+00 : f32
    %242 = vector.broadcast %cst_116 : f32 to vector<48x32xf32>
    %243 = arith.subf %242, %241 : vector<48x32xf32>
    %244 = math.exp %243 : vector<48x32xf32>
    %cst_117 = arith.constant 1.000000e+00 : f32
    %245 = vector.broadcast %cst_117 : f32 to vector<48x32xf32>
    %246 = arith.addf %245, %244 : vector<48x32xf32>
    %247 = tpu.reciprocal %246 {approx = true} : vector<48x32xf32> -> vector<48x32xf32>
    %248 = arith.mulf %241, %247 : vector<48x32xf32>
    %249 = vector.extract_strided_slice %248 {offsets = [0, 0], sizes = [16, 32], strides = [1, 1]} : vector<48x32xf32> to vector<16x32xf32>
    %250 = vector.extract_strided_slice %248 {offsets = [24, 0], sizes = [16, 32], strides = [1, 1]} : vector<48x32xf32> to vector<16x32xf32>
    %251 = arith.maximumf %249, %250 : vector<16x32xf32>
    %c0_118 = arith.constant 0 : index
    %c32_119 = arith.constant 32 : index
    %c0_120 = arith.constant 0 : index
    %252 = vector.load %arg7[%c0_118, %c32_119, %c0_120] : memref<1x128x32xf32, #tpu.memory_space<vmem>>, vector<1x16x32xf32>
    %253 = vector.shape_cast %252 : vector<1x16x32xf32> to vector<16x32xf32>
    %254 = vector.shape_cast %251 : vector<16x32xf32> to vector<1x16x32xf32>
    tpu.vector_store %arg7[%c0_118, %c32_119, %c0_120], %254 {strides = array<i32>} : memref<1x128x32xf32, #tpu.memory_space<vmem>>, vector<1x16x32xf32>,
    %c144_121 = arith.constant 144 : index
    %c0_122 = arith.constant 0 : index
    %255 = vector.load %arg9[%c144_121, %c0_122] : memref<432x96xf32, #tpu.memory_space<vmem>>, vector<48x32xf32>
    %c168_123 = arith.constant 168 : index
    %c32_124 = arith.constant 32 : index
    %256 = vector.load %arg9[%c168_123, %c32_124] : memref<432x96xf32, #tpu.memory_space<vmem>>, vector<48x32xf32>
    %257 = arith.addf %255, %256 : vector<48x32xf32>
    %c192_125 = arith.constant 192 : index
    %c64_126 = arith.constant 64 : index
    %258 = vector.load %arg9[%c192_125, %c64_126] : memref<432x96xf32, #tpu.memory_space<vmem>>, vector<48x32xf32>
    %259 = arith.addf %257, %258 : vector<48x32xf32>
    %c168_127 = arith.constant 168 : index
    %c32_128 = arith.constant 32 : index
    %260 = vector.load %arg10[%c168_127, %c32_128] : memref<432x96xf32, #tpu.memory_space<vmem>>, vector<48x32xf32>
    %261 = vector.broadcast %188 : vector<1x32xf32> to vector<48x32xf32>
    %262 = arith.addf %259, %261 : vector<48x32xf32>
    %263 = arith.addf %262, %260 : vector<48x32xf32>
    %cst_129 = arith.constant 0.000000e+00 : f32
    %264 = vector.broadcast %cst_129 : f32 to vector<48x32xf32>
    %265 = arith.subf %264, %263 : vector<48x32xf32>
    %266 = math.exp %265 : vector<48x32xf32>
    %cst_130 = arith.constant 1.000000e+00 : f32
    %267 = vector.broadcast %cst_130 : f32 to vector<48x32xf32>
    %268 = arith.addf %267, %266 : vector<48x32xf32>
    %269 = tpu.reciprocal %268 {approx = true} : vector<48x32xf32> -> vector<48x32xf32>
    %270 = arith.mulf %263, %269 : vector<48x32xf32>
    %271 = vector.extract_strided_slice %270 {offsets = [0, 0], sizes = [16, 32], strides = [1, 1]} : vector<48x32xf32> to vector<16x32xf32>
    %272 = vector.extract_strided_slice %270 {offsets = [24, 0], sizes = [16, 32], strides = [1, 1]} : vector<48x32xf32> to vector<16x32xf32>
    %273 = arith.maximumf %271, %272 : vector<16x32xf32>
    %c0_131 = arith.constant 0 : index
    %c48_132 = arith.constant 48 : index
    %c0_133 = arith.constant 0 : index
    %274 = vector.load %arg7[%c0_131, %c48_132, %c0_133] : memref<1x128x32xf32, #tpu.memory_space<vmem>>, vector<1x16x32xf32>
    %275 = vector.shape_cast %274 : vector<1x16x32xf32> to vector<16x32xf32>
    %276 = vector.shape_cast %273 : vector<16x32xf32> to vector<1x16x32xf32>
    tpu.vector_store %arg7[%c0_131, %c48_132, %c0_133], %276 {strides = array<i32>} : memref<1x128x32xf32, #tpu.memory_space<vmem>>, vector<1x16x32xf32>,
    %c192_134 = arith.constant 192 : index
    %c0_135 = arith.constant 0 : index
    %277 = vector.load %arg9[%c192_134, %c0_135] : memref<432x96xf32, #tpu.memory_space<vmem>>, vector<48x32xf32>
    %c216_136 = arith.constant 216 : index
    %c32_137 = arith.constant 32 : index
    %278 = vector.load %arg9[%c216_136, %c32_137] : memref<432x96xf32, #tpu.memory_space<vmem>>, vector<48x32xf32>
    %279 = arith.addf %277, %278 : vector<48x32xf32>
    %c240_138 = arith.constant 240 : index
    %c64_139 = arith.constant 64 : index
    %280 = vector.load %arg9[%c240_138, %c64_139] : memref<432x96xf32, #tpu.memory_space<vmem>>, vector<48x32xf32>
    %281 = arith.addf %279, %280 : vector<48x32xf32>
    %c216_140 = arith.constant 216 : index
    %c32_141 = arith.constant 32 : index
    %282 = vector.load %arg10[%c216_140, %c32_141] : memref<432x96xf32, #tpu.memory_space<vmem>>, vector<48x32xf32>
    %283 = vector.broadcast %188 : vector<1x32xf32> to vector<48x32xf32>
    %284 = arith.addf %281, %283 : vector<48x32xf32>
    %285 = arith.addf %284, %282 : vector<48x32xf32>
    %cst_142 = arith.constant 0.000000e+00 : f32
    %286 = vector.broadcast %cst_142 : f32 to vector<48x32xf32>
    %287 = arith.subf %286, %285 : vector<48x32xf32>
    %288 = math.exp %287 : vector<48x32xf32>
    %cst_143 = arith.constant 1.000000e+00 : f32
    %289 = vector.broadcast %cst_143 : f32 to vector<48x32xf32>
    %290 = arith.addf %289, %288 : vector<48x32xf32>
    %291 = tpu.reciprocal %290 {approx = true} : vector<48x32xf32> -> vector<48x32xf32>
    %292 = arith.mulf %285, %291 : vector<48x32xf32>
    %293 = vector.extract_strided_slice %292 {offsets = [0, 0], sizes = [16, 32], strides = [1, 1]} : vector<48x32xf32> to vector<16x32xf32>
    %294 = vector.extract_strided_slice %292 {offsets = [24, 0], sizes = [16, 32], strides = [1, 1]} : vector<48x32xf32> to vector<16x32xf32>
    %295 = arith.maximumf %293, %294 : vector<16x32xf32>
    %c0_144 = arith.constant 0 : index
    %c64_145 = arith.constant 64 : index
    %c0_146 = arith.constant 0 : index
    %296 = vector.load %arg7[%c0_144, %c64_145, %c0_146] : memref<1x128x32xf32, #tpu.memory_space<vmem>>, vector<1x16x32xf32>
    %297 = vector.shape_cast %296 : vector<1x16x32xf32> to vector<16x32xf32>
    %298 = vector.shape_cast %295 : vector<16x32xf32> to vector<1x16x32xf32>
    tpu.vector_store %arg7[%c0_144, %c64_145, %c0_146], %298 {strides = array<i32>} : memref<1x128x32xf32, #tpu.memory_space<vmem>>, vector<1x16x32xf32>,
    %c240_147 = arith.constant 240 : index
    %c0_148 = arith.constant 0 : index
    %299 = vector.load %arg9[%c240_147, %c0_148] : memref<432x96xf32, #tpu.memory_space<vmem>>, vector<48x32xf32>
    %c264_149 = arith.constant 264 : index
    %c32_150 = arith.constant 32 : index
    %300 = vector.load %arg9[%c264_149, %c32_150] : memref<432x96xf32, #tpu.memory_space<vmem>>, vector<48x32xf32>
    %301 = arith.addf %299, %300 : vector<48x32xf32>
    %c288_151 = arith.constant 288 : index
    %c64_152 = arith.constant 64 : index
    %302 = vector.load %arg9[%c288_151, %c64_152] : memref<432x96xf32, #tpu.memory_space<vmem>>, vector<48x32xf32>
    %303 = arith.addf %301, %302 : vector<48x32xf32>
    %c264_153 = arith.constant 264 : index
    %c32_154 = arith.constant 32 : index
    %304 = vector.load %arg10[%c264_153, %c32_154] : memref<432x96xf32, #tpu.memory_space<vmem>>, vector<48x32xf32>
    %305 = vector.broadcast %188 : vector<1x32xf32> to vector<48x32xf32>
    %306 = arith.addf %303, %305 : vector<48x32xf32>
    %307 = arith.addf %306, %304 : vector<48x32xf32>
    %cst_155 = arith.constant 0.000000e+00 : f32
    %308 = vector.broadcast %cst_155 : f32 to vector<48x32xf32>
    %309 = arith.subf %308, %307 : vector<48x32xf32>
    %310 = math.exp %309 : vector<48x32xf32>
    %cst_156 = arith.constant 1.000000e+00 : f32
    %311 = vector.broadcast %cst_156 : f32 to vector<48x32xf32>
    %312 = arith.addf %311, %310 : vector<48x32xf32>
    %313 = tpu.reciprocal %312 {approx = true} : vector<48x32xf32> -> vector<48x32xf32>
    %314 = arith.mulf %307, %313 : vector<48x32xf32>
    %315 = vector.extract_strided_slice %314 {offsets = [0, 0], sizes = [16, 32], strides = [1, 1]} : vector<48x32xf32> to vector<16x32xf32>
    %316 = vector.extract_strided_slice %314 {offsets = [24, 0], sizes = [16, 32], strides = [1, 1]} : vector<48x32xf32> to vector<16x32xf32>
    %317 = arith.maximumf %315, %316 : vector<16x32xf32>
    %c0_157 = arith.constant 0 : index
    %c80 = arith.constant 80 : index
    %c0_158 = arith.constant 0 : index
    %318 = vector.load %arg7[%c0_157, %c80, %c0_158] : memref<1x128x32xf32, #tpu.memory_space<vmem>>, vector<1x16x32xf32>
    %319 = vector.shape_cast %318 : vector<1x16x32xf32> to vector<16x32xf32>
    %320 = vector.shape_cast %317 : vector<16x32xf32> to vector<1x16x32xf32>
    tpu.vector_store %arg7[%c0_157, %c80, %c0_158], %320 {strides = array<i32>} : memref<1x128x32xf32, #tpu.memory_space<vmem>>, vector<1x16x32xf32>,
    %c288_159 = arith.constant 288 : index
    %c0_160 = arith.constant 0 : index
    %321 = vector.load %arg9[%c288_159, %c0_160] : memref<432x96xf32, #tpu.memory_space<vmem>>, vector<48x32xf32>
    %c312_161 = arith.constant 312 : index
    %c32_162 = arith.constant 32 : index
    %322 = vector.load %arg9[%c312_161, %c32_162] : memref<432x96xf32, #tpu.memory_space<vmem>>, vector<48x32xf32>
    %323 = arith.addf %321, %322 : vector<48x32xf32>
    %c336_163 = arith.constant 336 : index
    %c64_164 = arith.constant 64 : index
    %324 = vector.load %arg9[%c336_163, %c64_164] : memref<432x96xf32, #tpu.memory_space<vmem>>, vector<48x32xf32>
    %325 = arith.addf %323, %324 : vector<48x32xf32>
    %c312_165 = arith.constant 312 : index
    %c32_166 = arith.constant 32 : index
    %326 = vector.load %arg10[%c312_165, %c32_166] : memref<432x96xf32, #tpu.memory_space<vmem>>, vector<48x32xf32>
    %327 = vector.broadcast %188 : vector<1x32xf32> to vector<48x32xf32>
    %328 = arith.addf %325, %327 : vector<48x32xf32>
    %329 = arith.addf %328, %326 : vector<48x32xf32>
    %cst_167 = arith.constant 0.000000e+00 : f32
    %330 = vector.broadcast %cst_167 : f32 to vector<48x32xf32>
    %331 = arith.subf %330, %329 : vector<48x32xf32>
    %332 = math.exp %331 : vector<48x32xf32>
    %cst_168 = arith.constant 1.000000e+00 : f32
    %333 = vector.broadcast %cst_168 : f32 to vector<48x32xf32>
    %334 = arith.addf %333, %332 : vector<48x32xf32>
    %335 = tpu.reciprocal %334 {approx = true} : vector<48x32xf32> -> vector<48x32xf32>
    %336 = arith.mulf %329, %335 : vector<48x32xf32>
    %337 = vector.extract_strided_slice %336 {offsets = [0, 0], sizes = [16, 32], strides = [1, 1]} : vector<48x32xf32> to vector<16x32xf32>
    %338 = vector.extract_strided_slice %336 {offsets = [24, 0], sizes = [16, 32], strides = [1, 1]} : vector<48x32xf32> to vector<16x32xf32>
    %339 = arith.maximumf %337, %338 : vector<16x32xf32>
    %c0_169 = arith.constant 0 : index
    %c96_170 = arith.constant 96 : index
    %c0_171 = arith.constant 0 : index
    %340 = vector.load %arg7[%c0_169, %c96_170, %c0_171] : memref<1x128x32xf32, #tpu.memory_space<vmem>>, vector<1x16x32xf32>
    %341 = vector.shape_cast %340 : vector<1x16x32xf32> to vector<16x32xf32>
    %342 = vector.shape_cast %339 : vector<16x32xf32> to vector<1x16x32xf32>
    tpu.vector_store %arg7[%c0_169, %c96_170, %c0_171], %342 {strides = array<i32>} : memref<1x128x32xf32, #tpu.memory_space<vmem>>, vector<1x16x32xf32>,
    %c336_172 = arith.constant 336 : index
    %c0_173 = arith.constant 0 : index
    %343 = vector.load %arg9[%c336_172, %c0_173] : memref<432x96xf32, #tpu.memory_space<vmem>>, vector<48x32xf32>
    %c360_174 = arith.constant 360 : index
    %c32_175 = arith.constant 32 : index
    %344 = vector.load %arg9[%c360_174, %c32_175] : memref<432x96xf32, #tpu.memory_space<vmem>>, vector<48x32xf32>
    %345 = arith.addf %343, %344 : vector<48x32xf32>
    %c384 = arith.constant 384 : index
    %c64_176 = arith.constant 64 : index
    %346 = vector.load %arg9[%c384, %c64_176] : memref<432x96xf32, #tpu.memory_space<vmem>>, vector<48x32xf32>
    %347 = arith.addf %345, %346 : vector<48x32xf32>
    %c360_177 = arith.constant 360 : index
    %c32_178 = arith.constant 32 : index
    %348 = vector.load %arg10[%c360_177, %c32_178] : memref<432x96xf32, #tpu.memory_space<vmem>>, vector<48x32xf32>
    %349 = vector.broadcast %188 : vector<1x32xf32> to vector<48x32xf32>
    %350 = arith.addf %347, %349 : vector<48x32xf32>
    %351 = arith.addf %350, %348 : vector<48x32xf32>
    %cst_179 = arith.constant 0.000000e+00 : f32
    %352 = vector.broadcast %cst_179 : f32 to vector<48x32xf32>
    %353 = arith.subf %352, %351 : vector<48x32xf32>
    %354 = math.exp %353 : vector<48x32xf32>
    %cst_180 = arith.constant 1.000000e+00 : f32
    %355 = vector.broadcast %cst_180 : f32 to vector<48x32xf32>
    %356 = arith.addf %355, %354 : vector<48x32xf32>
    %357 = tpu.reciprocal %356 {approx = true} : vector<48x32xf32> -> vector<48x32xf32>
    %358 = arith.mulf %351, %357 : vector<48x32xf32>
    %359 = vector.extract_strided_slice %358 {offsets = [0, 0], sizes = [16, 32], strides = [1, 1]} : vector<48x32xf32> to vector<16x32xf32>
    %360 = vector.extract_strided_slice %358 {offsets = [24, 0], sizes = [16, 32], strides = [1, 1]} : vector<48x32xf32> to vector<16x32xf32>
    %361 = arith.maximumf %359, %360 : vector<16x32xf32>
    %c0_181 = arith.constant 0 : index
    %c112 = arith.constant 112 : index
    %c0_182 = arith.constant 0 : index
    %362 = vector.load %arg7[%c0_181, %c112, %c0_182] : memref<1x128x32xf32, #tpu.memory_space<vmem>>, vector<1x16x32xf32>
    %363 = vector.shape_cast %362 : vector<1x16x32xf32> to vector<16x32xf32>
    %364 = vector.shape_cast %361 : vector<16x32xf32> to vector<1x16x32xf32>
    tpu.vector_store %arg7[%c0_181, %c112, %c0_182], %364 {strides = array<i32>} : memref<1x128x32xf32, #tpu.memory_space<vmem>>, vector<1x16x32xf32>,
    return
  }
  func.func @transform_0(%arg0: i32) -> (i32, i32, i32) {
    %c0_i32 = arith.constant 0 : i32
    %c0_i32_0 = arith.constant 0 : i32
    %c0_i32_1 = arith.constant 0 : i32
    return %arg0, %c0_i32, %c0_i32_0 : i32, i32, i32
  }
  func.func @transform_1(%arg0: i32) -> (i32, i32, i32) {
    %c0_i32 = arith.constant 0 : i32
    %c0_i32_0 = arith.constant 0 : i32
    %c0_i32_1 = arith.constant 0 : i32
    return %arg0, %c0_i32, %c0_i32_0 : i32, i32, i32
  }
  func.func @transform_2(%arg0: i32) -> (i32, i32) {
    %c0_i32 = arith.constant 0 : i32
    %c0_i32_0 = arith.constant 0 : i32
    %c0_i32_1 = arith.constant 0 : i32
    return %c0_i32, %c0_i32_0 : i32, i32
  }
  func.func @transform_3(%arg0: i32) -> (i32, i32) {
    %c0_i32 = arith.constant 0 : i32
    %c0_i32_0 = arith.constant 0 : i32
    %c0_i32_1 = arith.constant 0 : i32
    return %c0_i32, %c0_i32_0 : i32, i32
  }
  func.func @transform_4(%arg0: i32) -> (i32, i32) {
    %c0_i32 = arith.constant 0 : i32
    %c0_i32_0 = arith.constant 0 : i32
    %c0_i32_1 = arith.constant 0 : i32
    return %c0_i32, %c0_i32_0 : i32, i32
  }
  func.func @transform_5(%arg0: i32) -> (i32, i32) {
    %c0_i32 = arith.constant 0 : i32
    %c0_i32_0 = arith.constant 0 : i32
    %c0_i32_1 = arith.constant 0 : i32
    return %c0_i32, %c0_i32_0 : i32, i32
  }
  func.func @transform_6(%arg0: i32) -> (i32, i32, i32) {
    %c0_i32 = arith.constant 0 : i32
    %c0_i32_0 = arith.constant 0 : i32
    %c0_i32_1 = arith.constant 0 : i32
    return %arg0, %c0_i32, %c0_i32_0 : i32, i32, i32
  }
}

</mosaic_0001>

<llo_original>
// kernel: tpu_custom_call.1
$region0: #{tpu_custom_call.1}
  #allocation0 [shape = 'u32[]', space=smem, size = 0x4, offset = 0x4, fixed_abs, tag = 'smem constant byte address 0x4 - core index']
  #allocation1 [shape = 'u32[144,128]{1,0:T(1,128)}', space=vmem, size = 0x12000, scoped, tag = 'internal scratch']
  #allocation2 [shape = 'f32[384,32]{1,0:T(8,128)}', space=vmem, size = 0x30000, scoped, tag = 'scratch operand']
  #allocation3 [shape = 'f32[432,96]{1,0:T(8,128)}', space=vmem, size = 0x36000, scoped, tag = 'scratch operand']
  #allocation4 [shape = 'f32[432,96]{1,0:T(8,128)}', space=vmem, size = 0x36000, scoped, tag = 'scratch operand']
  %s0 = inlined_call_operand.vmem [shape: f32[2,1,32], index: 0, kind: input, shape index: {}]
  %s1 = inlined_call_operand.vmem [shape: bf16[2,384,36], index: 1, kind: input, shape index: {}]
  %s2 = inlined_call_operand.vmem [shape: bf16[36,32], index: 2, kind: input, shape index: {}]
  %s3 = inlined_call_operand.vmem [shape: f32[1,32], index: 3, kind: input, shape index: {}]
  %s4 = inlined_call_operand.vmem [shape: bf16[96,96], index: 4, kind: input, shape index: {}]
  %s5 = inlined_call_operand.vmem [shape: f32[1,32], index: 5, kind: input, shape index: {}]
  %s6 = inlined_call_operand.vmem [shape: f32[2,128,32], index: 6, kind: output, shape index: {}]
  %s7 = sld [smem:[#allocation0]]
  $region57: #{tpu_custom_call.1} parent=0
    _
  %s9 = ssub.s32 1, %s7
  %s10 = scalar_select 0, %s9, %s7
  loop: start=0, step=1, limit=4
  $region2: #{tpu_custom_call.1} parent=0 // loop_pre_header
    _
  $region3: #{tpu_custom_call.1} parent=0 // loop_header
    %s12 = sphi 0, %s16
    %p13 = scmp.ge.s32.totalorder %s12, 4
    %s22 = sphi 0, %s24
    %s25 = sphi 0, %s22
    %s26 = sphi 0, %s25
    %s42 = sphi 0, %s26
    %s48 = sphi 0, %s50
    %s51 = sphi 0, %s48
    %s52 = sphi 0, %s51
    %s68 = sphi 0, %s52
    %s72 = sphi 0, %s72
    %s74 = sphi 0, %s72
    %s75 = sphi 0, %s74
    %s89 = sphi 0, %s75
    %s93 = sphi 0, %s93
    %s95 = sphi 0, %s93
    %s96 = sphi 0, %s95
    %s110 = sphi 0, %s96
    %s114 = sphi 0, %s114
    %s116 = sphi 0, %s114
    %s117 = sphi 0, %s116
    %s131 = sphi 0, %s117
    %s135 = sphi 0, %s135
    %s137 = sphi 0, %s135
    %s138 = sphi 0, %s137
    %s152 = sphi 0, %s138
    %s158 = sphi 0, %s160
    %s161 = sphi 0, %s158
    %s162 = sphi 0, %s161
    %s178 = sphi 0, %s162
  $region4: #{tpu_custom_call.1} parent=0 // loop_header_branch
    %15 = sbr.rel (%p13) target = $region8
  $region5: #{tpu_custom_call.1} parent=0 // loop_body
    %s17 = ssub.s32 %s12, 1
    %s18 = ssub.s32 %s12, 2
    %s19 = sadd.s32 %s12, 1
    %s20 = ssub.s32 %s12, %s19
    %p21 = scmp.eq.s32.totalorder %s20, 0
    %s23 = sadd.s32 %s22, 1
    %s24 = scalar_select %p21, %s22, %s23
    %p27 = pneg %p21
    %p28 = scmp.eq.s32.totalorder %s12, 1
    %p29 = por %p27, %p28
    %p30 = scmp.ne.s32.totalorder %s22, %s25
    %p31 = scmp.eq.s32.totalorder %s12, 0
    %p32 = por %p30, %p31
    %p33 = scmp.ne.s32.totalorder %s22, %s25
    %p34 = scmp.eq.s32.totalorder %s17, 1
    %p35 = por %p33, %p34
    %p36 = scmp.ne.s32.totalorder %s25, %s26
    %p37 = scmp.eq.s32.totalorder %s17, 0
    %p38 = por %p36, %p37
    %p39 = scmp.ne.s32.totalorder %s25, %s26
    %p40 = scmp.eq.s32.totalorder %s18, 1
    %p41 = por %p39, %p40
    %p43 = scmp.ne.s32.totalorder %s26, %s42
    %p44 = scmp.eq.s32.totalorder %s18, 0
    %p45 = por %p43, %p44
    %s46 = ssub.s32 %s12, %s19
    %p47 = scmp.eq.s32.totalorder %s46, 0
    %s49 = sadd.s32 %s48, 1
    %s50 = scalar_select %p47, %s48, %s49
    %p53 = pneg %p47
    %p54 = scmp.eq.s32.totalorder %s12, 1
    %p55 = por %p53, %p54
    %p56 = scmp.ne.s32.totalorder %s48, %s51
    %p57 = scmp.eq.s32.totalorder %s12, 0
    %p58 = por %p56, %p57
    %p59 = scmp.ne.s32.totalorder %s48, %s51
    %p60 = scmp.eq.s32.totalorder %s17, 1
    %p61 = por %p59, %p60
    %p62 = scmp.ne.s32.totalorder %s51, %s52
    %p63 = scmp.eq.s32.totalorder %s17, 0
    %p64 = por %p62, %p63
    %p65 = scmp.ne.s32.totalorder %s51, %s52
    %p66 = scmp.eq.s32.totalorder %s18, 1
    %p67 = por %p65, %p66
    %p69 = scmp.ne.s32.totalorder %s52, %s68
    %p70 = scmp.eq.s32.totalorder %s18, 0
    %p71 = por %p69, %p70
    %s73 = sadd.s32 %s72, 1
    %p76 = scmp.eq.s32.totalorder %s12, 1
    %p77 = scmp.ne.s32.totalorder %s72, %s74
    %p78 = scmp.eq.s32.totalorder %s12, 0
    %p79 = por %p77, %p78
    %p80 = scmp.ne.s32.totalorder %s72, %s74
    %p81 = scmp.eq.s32.totalorder %s17, 1
    %p82 = por %p80, %p81
    %p83 = scmp.ne.s32.totalorder %s74, %s75
    %p84 = scmp.eq.s32.totalorder %s17, 0
    %p85 = por %p83, %p84
    %p86 = scmp.ne.s32.totalorder %s74, %s75
    %p87 = scmp.eq.s32.totalorder %s18, 1
    %p88 = por %p86, %p87
    %p90 = scmp.ne.s32.totalorder %s75, %s89
    %p91 = scmp.eq.s32.totalorder %s18, 0
    %p92 = por %p90, %p91
    %s94 = sadd.s32 %s93, 1
    %p97 = scmp.eq.s32.totalorder %s12, 1
    %p98 = scmp.ne.s32.totalorder %s93, %s95
    %p99 = scmp.eq.s32.totalorder %s12, 0
    %p100 = por %p98, %p99
    %p101 = scmp.ne.s32.totalorder %s93, %s95
    %p102 = scmp.eq.s32.totalorder %s17, 1
    %p103 = por %p101, %p102
    %p104 = scmp.ne.s32.totalorder %s95, %s96
    %p105 = scmp.eq.s32.totalorder %s17, 0
    %p106 = por %p104, %p105
    %p107 = scmp.ne.s32.totalorder %s95, %s96
    %p108 = scmp.eq.s32.totalorder %s18, 1
    %p109 = por %p107, %p108
    %p111 = scmp.ne.s32.totalorder %s96, %s110
    %p112 = scmp.eq.s32.totalorder %s18, 0
    %p113 = por %p111, %p112
    %s115 = sadd.s32 %s114, 1
    %p118 = scmp.eq.s32.totalorder %s12, 1
    %p119 = scmp.ne.s32.totalorder %s114, %s116
    %p120 = scmp.eq.s32.totalorder %s12, 0
    %p121 = por %p119, %p120
    %p122 = scmp.ne.s32.totalorder %s114, %s116
    %p123 = scmp.eq.s32.totalorder %s17, 1
    %p124 = por %p122, %p123
    %p125 = scmp.ne.s32.totalorder %s116, %s117
    %p126 = scmp.eq.s32.totalorder %s17, 0
    %p127 = por %p125, %p126
    %p128 = scmp.ne.s32.totalorder %s116, %s117
    %p129 = scmp.eq.s32.totalorder %s18, 1
    %p130 = por %p128, %p129
    %p132 = scmp.ne.s32.totalorder %s117, %s131
    %p133 = scmp.eq.s32.totalorder %s18, 0
    %p134 = por %p132, %p133
    %s136 = sadd.s32 %s135, 1
    %p139 = scmp.eq.s32.totalorder %s12, 1
    %p140 = scmp.ne.s32.totalorder %s135, %s137
    %p141 = scmp.eq.s32.totalorder %s12, 0
    %p142 = por %p140, %p141
    %p143 = scmp.ne.s32.totalorder %s135, %s137
    %p144 = scmp.eq.s32.totalorder %s17, 1
    %p145 = por %p143, %p144
    %p146 = scmp.ne.s32.totalorder %s137, %s138
    %p147 = scmp.eq.s32.totalorder %s17, 0
    %p148 = por %p146, %p147
    %p149 = scmp.ne.s32.totalorder %s137, %s138
    %p150 = scmp.eq.s32.totalorder %s18, 1
    %p151 = por %p149, %p150
    %p153 = scmp.ne.s32.totalorder %s138, %s152
    %p154 = scmp.eq.s32.totalorder %s18, 0
    %p155 = por %p153, %p154
    %s156 = ssub.s32 %s12, %s19
    %p157 = scmp.eq.s32.totalorder %s156, 0
    %s159 = sadd.s32 %s158, 1
    %s160 = scalar_select %p157, %s158, %s159
    %p163 = pneg %p157
    %p164 = scmp.eq.s32.totalorder %s12, 1
    %p165 = por %p163, %p164
    %p166 = scmp.ne.s32.totalorder %s158, %s161
    %p167 = scmp.eq.s32.totalorder %s12, 0
    %p168 = por %p166, %p167
    %p169 = scmp.ne.s32.totalorder %s158, %s161
    %p170 = scmp.eq.s32.totalorder %s17, 1
    %p171 = por %p169, %p170
    %p172 = scmp.ne.s32.totalorder %s161, %s162
    %p173 = scmp.eq.s32.totalorder %s17, 0
    %p174 = por %p172, %p173
    %p175 = scmp.ne.s32.totalorder %s161, %s162
    %p176 = scmp.eq.s32.totalorder %s18, 1
    %p177 = por %p175, %p176
    %p179 = scmp.ne.s32.totalorder %s162, %s178
    %p180 = scmp.eq.s32.totalorder %s18, 0
    %p181 = por %p179, %p180
    %p182 = scmp.le.s32.totalorder 1, %s12
    %p183 = scmp.lt.s32.totalorder %s12, 3
    %p184 = pnand %p182, %p183
    %p185 = pneg %p184
    // Predicated region
    $region9: #{tpu_custom_call.1} parent=5 // pred_check
      _
    $region10: #{tpu_custom_call.1} parent=5 // pred_check_branch
      %187 = sbr.rel (%p184) target = $region12
    $region11: #{tpu_custom_call.1} parent=5 // pred_region
      %s188 = ssub.s32 %s12, 1
      // Predicated region
      $region13: #{tpu_custom_call.1} parent=11 // pred_check
        %p189 = pneg %p85
      $region14: #{tpu_custom_call.1} parent=11 // pred_check_branch
        %191 = sbr.rel (%p189) target = $region16
      $region15: #{tpu_custom_call.1} parent=11 // pred_region
        _
      $region16: #{tpu_custom_call.1} parent=11 // pred_fallthru
        _
      // Predicated region
      $region17: #{tpu_custom_call.1} parent=11 // pred_check
        %p192 = pneg %p106
      $region18: #{tpu_custom_call.1} parent=11 // pred_check_branch
        %194 = sbr.rel (%p192) target = $region20
      $region19: #{tpu_custom_call.1} parent=11 // pred_region
        _
      $region20: #{tpu_custom_call.1} parent=11 // pred_fallthru
        _
      // Predicated region
      $region21: #{tpu_custom_call.1} parent=11 // pred_check
        %p195 = pneg %p127
      $region22: #{tpu_custom_call.1} parent=11 // pred_check_branch
        %197 = sbr.rel (%p195) target = $region24
      $region23: #{tpu_custom_call.1} parent=11 // pred_region
        _
      $region24: #{tpu_custom_call.1} parent=11 // pred_fallthru
        _
      // Predicated region
      $region25: #{tpu_custom_call.1} parent=11 // pred_check
        %p198 = pneg %p148
      $region26: #{tpu_custom_call.1} parent=11 // pred_check_branch
        %200 = sbr.rel (%p198) target = $region28
      $region27: #{tpu_custom_call.1} parent=11 // pred_region
        _
      $region28: #{tpu_custom_call.1} parent=11 // pred_fallthru
        _
    $region12: #{tpu_custom_call.1} parent=5 // pred_fallthru
      _
    %p201 = scmp.lt.s32.totalorder %s12, 2
    // Predicated region
    $region29: #{tpu_custom_call.1} parent=5 // pred_check
      %p202 = pneg %p201
    $region30: #{tpu_custom_call.1} parent=5 // pred_check_branch
      %204 = sbr.rel (%p202) target = $region32
    $region31: #{tpu_custom_call.1} parent=5 // pred_region
      // Predicated region
      $region33: #{tpu_custom_call.1} parent=31 // pred_check
        %p205 = pneg %p32
      $region34: #{tpu_custom_call.1} parent=31 // pred_check_branch
        %207 = sbr.rel (%p205) target = $region36
      $region35: #{tpu_custom_call.1} parent=31 // pred_region
        %p208 = scmp.lt.s32.totalorder %s12, 1
        %s209 = scalar_select %p208, %s12, 1
        %s210 = scalar_lea.vmem %s0, %s209
      $region36: #{tpu_custom_call.1} parent=31 // pred_fallthru
        _
      // Predicated region
      $region37: #{tpu_custom_call.1} parent=31 // pred_check
        %p211 = pneg %p58
      $region38: #{tpu_custom_call.1} parent=31 // pred_check_branch
        %213 = sbr.rel (%p211) target = $region40
      $region39: #{tpu_custom_call.1} parent=31 // pred_region
        %p214 = scmp.lt.s32.totalorder %s12, 1
        %s215 = scalar_select %p214, %s12, 1
        %s216 = smul.addr %s215, 48
        %s217 = smul.addr %s216, 4
        %s218 = scalar_lea.vmem %s1, %s217
      $region40: #{tpu_custom_call.1} parent=31 // pred_fallthru
        _
    $region32: #{tpu_custom_call.1} parent=5 // pred_fallthru
      _
    %p219 = scmp.le.s32.totalorder 1, %s12
    %p220 = scmp.lt.s32.totalorder %s12, 3
    %p221 = pnand %p219, %p220
    %p222 = pneg %p221
    // Predicated region
    $region41: #{tpu_custom_call.1} parent=5 // pred_check
      _
    $region42: #{tpu_custom_call.1} parent=5 // pred_check_branch
      %224 = sbr.rel (%p221) target = $region44
    $region43: #{tpu_custom_call.1} parent=5 // pred_region
      %s225 = ssub.s32 %s12, 1
      %p226 = scmp.lt.s32.totalorder %s17, 1
      %s227 = scalar_select %p226, %s17, 1
      %s228 = scalar_lea.vmem %s0, %s227
      %p229 = pneg %p38
      %p230 = pneg %p35
      %p231 = scmp.lt.s32.totalorder %s17, 1
      %s232 = scalar_select %p231, %s17, 1
      %s233 = smul.addr %s232, 48
      %s234 = smul.addr %s233, 4
      %s235 = scalar_lea.vmem %s1, %s234
      %p236 = pneg %p64
      %p237 = pneg %p61
      %p238 = pneg %p85
      %p239 = pneg %p82
      %p240 = pneg %p106
      %p241 = pneg %p103
      %p242 = pneg %p127
      %p243 = pneg %p124
      %p244 = pneg %p148
      %p245 = pneg %p145
      %p246 = pneg %p174
      %p247 = pneg %p171
      %p248 = scmp.lt.s32.totalorder %s17, 1
      %s249 = scalar_select %p248, %s17, 1
      %s250 = smul.addr %s249, 16
      %s251 = smul.addr %s250, 8
      %s252 = scalar_lea.vmem %s6, %s251
      %p253 = scmp.lt.s32.totalorder %s17, 1
      %s254 = scalar_select %p253, %s17, 1
      %s255 = scalar_lea.vmem %s0, %s254
      %p256 = scmp.lt.s32.totalorder %s17, 1
      %s257 = scalar_select %p256, %s17, 1
      %s258 = smul.addr %s257, 48
      %s259 = smul.addr %s258, 4
      %s260 = scalar_lea.vmem %s1, %s259
      %p261 = scmp.lt.s32.totalorder %s17, 1
      %s262 = scalar_select %p261, %s17, 1
      %s263 = smul.addr %s262, 16
      %s264 = smul.addr %s263, 8
      %s265 = scalar_lea.vmem %s6, %s264
      %vm267 = vcmask 785408
      %268 = vst.msk [vmem:[#allocation4] sm:$0xff] %vm267, 0.0
      %269 = vst.msk [vmem:[#allocation4 + $0x8] sm:$0xff] %vm267, 0.0
      %270 = vst.msk [vmem:[#allocation4 + $0x10] sm:$0xff] %vm267, 0.0
      %271 = vst.msk [vmem:[#allocation4 + $0x18] sm:$0xff] %vm267, 0.0
      %272 = vst.msk [vmem:[#allocation4 + $0x190] sm:$0xff] %vm267, 0.0
      %273 = vst.msk [vmem:[#allocation4 + $0x198] sm:$0xff] %vm267, 0.0
      %274 = vst.msk [vmem:[#allocation4 + $0x1a0] sm:$0xff] %vm267, 0.0
      %275 = vst.msk [vmem:[#allocation4 + $0x1a8] sm:$0xff] %vm267, 0.0
      %v276 = vld [vmem:[%s260] sm:$0xf]
      %v277 = vld [vmem:[%s260 + $0x4] sm:$0xf]
      %v278 = vld [vmem:[%s260 + $0x8] sm:$0xf]
      %v279 = vld [vmem:[%s260 + $0xc] sm:$0xf]
      %v280 = vld [vmem:[%s260 + $0x10] sm:$0xf]
      %v281 = vld [vmem:[%s260 + $0x14] sm:$0xf]
      %v282 = vld [vmem:[%s260 + $0x18] sm:$0xf]
      %v283 = vld [vmem:[%s260 + $0x1c] sm:$0xf]
      %v284 = vld [vmem:[%s260 + $0x20] sm:$0xf]
      %v285 = vld [vmem:[%s260 + $0x24] sm:$0xf]
      %v286 = vld [vmem:[%s260 + $0x28] sm:$0xf]
      %v287 = vld [vmem:[%s260 + $0x2c] sm:$0xf]
      %v288 = vld [vmem:[%s260 + $0x30] sm:$0xf]
      %v289 = vld [vmem:[%s260 + $0x34] sm:$0xf]
      %v290 = vld [vmem:[%s260 + $0x38] sm:$0xf]
      %v291 = vld [vmem:[%s260 + $0x3c] sm:$0xf]
      %v292 = vld [vmem:[%s260 + $0x40] sm:$0xf]
      %v293 = vld [vmem:[%s260 + $0x44] sm:$0xf]
      %v294 = vld [vmem:[%s260 + $0x48] sm:$0xf]
      %v295 = vld [vmem:[%s260 + $0x4c] sm:$0xf]
      %v296 = vld [vmem:[%s260 + $0x50] sm:$0xf]
      %v297 = vld [vmem:[%s260 + $0x54] sm:$0xf]
      %v298 = vld [vmem:[%s260 + $0x58] sm:$0xf]
      %v299 = vld [vmem:[%s260 + $0x5c] sm:$0xf]
      %v300 = vld [vmem:[%s260 + $0x60] sm:$0xf]
      %v301 = vld [vmem:[%s260 + $0x64] sm:$0xf]
      %v302 = vld [vmem:[%s260 + $0x68] sm:$0xf]
      %v303 = vld [vmem:[%s260 + $0x6c] sm:$0xf]
      %v304 = vld [vmem:[%s260 + $0x70] sm:$0xf]
      %v305 = vld [vmem:[%s260 + $0x74] sm:$0xf]
      %v306 = vld [vmem:[%s260 + $0x78] sm:$0xf]
      %v307 = vld [vmem:[%s260 + $0x7c] sm:$0xf]
      %v308 = vld [vmem:[%s260 + $0x80] sm:$0xf]
      %v309 = vld [vmem:[%s260 + $0x84] sm:$0xf]
      %v310 = vld [vmem:[%s260 + $0x88] sm:$0xf]
      %v311 = vld [vmem:[%s260 + $0x8c] sm:$0xf]
      %v312 = vld [vmem:[%s260 + $0x90] sm:$0xf]
      %v313 = vld [vmem:[%s260 + $0x94] sm:$0xf]
      %v314 = vld [vmem:[%s260 + $0x98] sm:$0xf]
      %v315 = vld [vmem:[%s260 + $0x9c] sm:$0xf]
      %v316 = vld [vmem:[%s260 + $0xa0] sm:$0xf]
      %v317 = vld [vmem:[%s260 + $0xa4] sm:$0xf]
      %v318 = vld [vmem:[%s260 + $0xa8] sm:$0xf]
      %v319 = vld [vmem:[%s260 + $0xac] sm:$0xf]
      %v320 = vld [vmem:[%s260 + $0xb0] sm:$0xf]
      %v321 = vld [vmem:[%s260 + $0xb4] sm:$0xf]
      %v322 = vld [vmem:[%s260 + $0xb8] sm:$0xf]
      %v323 = vld [vmem:[%s260 + $0xbc] sm:$0xf]
      %v324 = vld [vmem:[%s2] sm:$0xf]
      %v325 = vld [vmem:[%s2 + $0x4] sm:$0xf]
      %v326 = vld [vmem:[%s2 + $0x8] sm:$0xf]
      %v327 = vld [vmem:[%s2 + $0xc] sm:$0xf]
      %v328 = vld [vmem:[%s2 + $0x10] sm:$0x3]
      %v377 = vunpack.c.l.b16 %v276
      %v378 = vunpack.c.l.b16 %v277
      %v379 = vunpack.c.l.b16 %v278
      %v380 = vunpack.c.l.b16 %v279
      %v381 = vunpack.c.l.b16 %v280
      %v382 = vunpack.c.l.b16 %v281
      %v383 = vunpack.c.l.b16 %v282
      %v384 = vunpack.c.l.b16 %v283
      %v385 = vunpack.c.l.b16 %v284
      %v386 = vunpack.c.l.b16 %v285
      %v387 = vunpack.c.l.b16 %v286
      %v388 = vunpack.c.l.b16 %v287
      %v389 = vunpack.c.l.b16 %v288
      %v390 = vunpack.c.l.b16 %v289
      %v391 = vunpack.c.l.b16 %v290
      %v392 = vunpack.c.l.b16 %v291
      %v393 = vunpack.c.l.b16 %v292
      %v394 = vunpack.c.l.b16 %v293
      %v395 = vunpack.c.l.b16 %v294
      %v396 = vunpack.c.l.b16 %v295
      %v397 = vunpack.c.l.b16 %v296
      %v398 = vunpack.c.l.b16 %v297
      %v399 = vunpack.c.l.b16 %v298
      %v400 = vunpack.c.l.b16 %v299
      %v401 = vunpack.c.l.b16 %v300
      %v402 = vunpack.c.l.b16 %v301
      %v403 = vunpack.c.l.b16 %v302
      %v404 = vunpack.c.l.b16 %v303
      %v405 = vunpack.c.l.b16 %v304
      %v406 = vunpack.c.l.b16 %v305
      %v407 = vunpack.c.l.b16 %v306
      %v408 = vunpack.c.l.b16 %v307
      %v409 = vunpack.c.l.b16 %v308
      %v410 = vunpack.c.l.b16 %v309
      %v411 = vunpack.c.l.b16 %v310
      %v412 = vunpack.c.l.b16 %v311
      %v413 = vunpack.c.l.b16 %v312
      %v414 = vunpack.c.l.b16 %v313
      %v415 = vunpack.c.l.b16 %v314
      %v416 = vunpack.c.l.b16 %v315
      %v417 = vunpack.c.l.b16 %v316
      %v418 = vunpack.c.l.b16 %v317
      %v419 = vunpack.c.l.b16 %v318
      %v420 = vunpack.c.l.b16 %v319
      %v421 = vunpack.c.l.b16 %v320
      %v422 = vunpack.c.l.b16 %v321
      %v423 = vunpack.c.l.b16 %v322
      %v424 = vunpack.c.l.b16 %v323
      %v425 = vpack.c.b16 %v378, %v377
      %v426 = vpack.c.b16 %v380, %v379
      %v427 = vpack.c.b16 %v382, %v381
      %v428 = vpack.c.b16 %v384, %v383
      %v429 = vpack.c.b16 %v386, %v385
      %v430 = vpack.c.b16 %v388, %v387
      %v431 = vpack.c.b16 %v390, %v389
      %v432 = vpack.c.b16 %v392, %v391
      %v433 = vpack.c.b16 %v394, %v393
      %v434 = vpack.c.b16 %v396, %v395
      %v435 = vpack.c.b16 %v398, %v397
      %v436 = vpack.c.b16 %v400, %v399
      %v437 = vpack.c.b16 %v402, %v401
      %v438 = vpack.c.b16 %v404, %v403
      %v439 = vpack.c.b16 %v406, %v405
      %v440 = vpack.c.b16 %v408, %v407
      %v441 = vpack.c.b16 %v410, %v409
      %v442 = vpack.c.b16 %v412, %v411
      %v443 = vpack.c.b16 %v414, %v413
      %v444 = vpack.c.b16 %v416, %v415
      %v445 = vpack.c.b16 %v418, %v417
      %v446 = vpack.c.b16 %v420, %v419
      %v447 = vpack.c.b16 %v422, %v421
      %v448 = vpack.c.b16 %v424, %v423
      %v454 = vunpack.c.l.b16 %v324
      %v455 = vunpack.c.l.b16 %v325
      %v456 = vunpack.c.l.b16 %v326
      %v457 = vunpack.c.l.b16 %v327
      %v458 = vunpack.c.l.b16 %v328
      %v459 = vpack.c.b16 %v455, %v454
      %v460 = vpack.c.b16 %v457, %v456
      %v461 = vpack.c.b16 %v458, %v458
      %vm464 = vcmask 293888
      %v466 = vsel %vm464, %v425, 0
      %v469 = vsel %vm464, %v426, 0
      %v472 = vsel %vm464, %v427, 0
      %v475 = vsel %vm464, %v428, 0
      %v478 = vsel %vm464, %v429, 0
      %v481 = vsel %vm464, %v430, 0
      %v484 = vsel %vm464, %v431, 0
      %v487 = vsel %vm464, %v432, 0
      %v490 = vsel %vm464, %v433, 0
      %v493 = vsel %vm464, %v434, 0
      %v496 = vsel %vm464, %v435, 0
      %v499 = vsel %vm464, %v436, 0
      %v502 = vsel %vm464, %v437, 0
      %v505 = vsel %vm464, %v438, 0
      %v508 = vsel %vm464, %v439, 0
      %v511 = vsel %vm464, %v440, 0
      %v514 = vsel %vm464, %v441, 0
      %v517 = vsel %vm464, %v442, 0
      %v520 = vsel %vm464, %v443, 0
      %v523 = vsel %vm464, %v444, 0
      %v526 = vsel %vm464, %v445, 0
      %v529 = vsel %vm464, %v446, 0
      %v532 = vsel %vm464, %v447, 0
      %v535 = vsel %vm464, %v448, 0
      %vm537 = vcmask 1041408
      %v539 = vsel %vm537, %v461, 0
      %541 = vmatprep.subr.bf16.mxu0 0
      %542 = vmatpush1.bf16.msra.mxu0 0
      %543 = vmatprep.subr.bf16.mxu0 0
      %544 = vmatpush1.bf16.msra.mxu0 0
      %545 = vmatprep.subr.bf16.mxu0 0
      %546 = vmatpush1.bf16.msra.mxu0 0
      %547 = vmatprep.subr.bf16.mxu0 0
      %548 = vmatpush1.bf16.msra.mxu0 0
      %549 = vmatprep.subr.bf16.mxu0 0
      %550 = vmatpush1.bf16.msra.mxu0 0
      %551 = vmatprep.subr.bf16.mxu0 0
      %552 = vmatpush1.bf16.msra.mxu0 %v539
      %553 = vmatprep.subr.bf16.mxu0 0
      %554 = vmatpush1.bf16.msra.mxu0 %v460
      %555 = vmatprep.subr.bf16.mxu0 0
      %556 = vmatpush1.bf16.msra.mxu0 %v459
      %557 = vmatprep.subr.bf16.mxu0 0
      %558 = vmatpush2.bf16.msra.mxu0 0
      %559 = vmatprep.subr.bf16.mxu0 0
      %560 = vmatpush2.bf16.msra.mxu0 0
      %561 = vmatprep.subr.bf16.mxu0 0
      %562 = vmatpush2.bf16.msra.mxu0 0
      %563 = vmatprep.subr.bf16.mxu0 0
      %564 = vmatpush2.bf16.msra.mxu0 0
      %565 = vmatprep.subr.bf16.mxu0 0
      %566 = vmatpush2.bf16.msra.mxu0 0
      %567 = vmatprep.subr.bf16.mxu0 0
      %568 = vmatpush2.bf16.msra.mxu0 0
      %569 = vmatprep.subr.bf16.mxu0 0
      %570 = vmatpush2.bf16.msra.mxu0 0
      %571 = vmatprep.subr.bf16.mxu0 0
      %572 = vmatpush2.bf16.msra.mxu0 0
      %573 = vmatprep.mubr.bf16.mxu0 0
      %574 = vmatmul.mubr.bf16.gmra.mxu0 %v466
      %v575 = vpop.f32.mrf.mxu0
      %v576 = vadd.f32 0.0, %v575
      %v577 = vpop.f32.mrf.mxu0
      %v578 = vpop.f32.mrf.mxu0
      %v579 = vadd.f32 0.0, %v578
      %v580 = vpop.f32.mrf.mxu0
      %581 = vmatprep.mubr.bf16.mxu0 0
      %582 = vmatmul.mubr.bf16.gmra.mxu0 %v469
      %v583 = vpop.f32.mrf.mxu0
      %v584 = vadd.f32 0.0, %v583
      %v585 = vpop.f32.mrf.mxu0
      %v586 = vpop.f32.mrf.mxu0
      %v587 = vadd.f32 0.0, %v586
      %v588 = vpop.f32.mrf.mxu0
      %589 = vmatprep.mubr.bf16.mxu0 0
      %590 = vmatmul.mubr.bf16.gmra.mxu0 %v472
      %v591 = vpop.f32.mrf.mxu0
      %v592 = vadd.f32 0.0, %v591
      %v593 = vpop.f32.mrf.mxu0
      %v594 = vpop.f32.mrf.mxu0
      %v595 = vadd.f32 0.0, %v594
      %v596 = vpop.f32.mrf.mxu0
      %597 = vmatprep.mubr.bf16.mxu0 0
      %598 = vmatmul.mubr.bf16.gmra.mxu0 %v475
      %v599 = vpop.f32.mrf.mxu0
      %v600 = vadd.f32 0.0, %v599
      %v601 = vpop.f32.mrf.mxu0
      %v602 = vpop.f32.mrf.mxu0
      %v603 = vadd.f32 0.0, %v602
      %v604 = vpop.f32.mrf.mxu0
      %605 = vmatprep.mubr.bf16.mxu0 0
      %606 = vmatmul.mubr.bf16.gmra.mxu0 %v478
      %v607 = vpop.f32.mrf.mxu0
      %v608 = vadd.f32 0.0, %v607
      %v609 = vpop.f32.mrf.mxu0
      %v610 = vpop.f32.mrf.mxu0
      %v611 = vadd.f32 0.0, %v610
      %v612 = vpop.f32.mrf.mxu0
      %613 = vmatprep.mubr.bf16.mxu0 0
      %614 = vmatmul.mubr.bf16.gmra.mxu0 %v481
      %v615 = vpop.f32.mrf.mxu0
      %v616 = vadd.f32 0.0, %v615
      %v617 = vpop.f32.mrf.mxu0
      %v618 = vpop.f32.mrf.mxu0
      %v619 = vadd.f32 0.0, %v618
      %v620 = vpop.f32.mrf.mxu0
      %621 = vmatprep.mubr.bf16.mxu0 0
      %622 = vmatmul.mubr.bf16.gmra.mxu0 %v484
      %v623 = vpop.f32.mrf.mxu0
      %v624 = vadd.f32 0.0, %v623
      %v625 = vpop.f32.mrf.mxu0
      %v626 = vpop.f32.mrf.mxu0
      %v627 = vadd.f32 0.0, %v626
      %v628 = vpop.f32.mrf.mxu0
      %629 = vmatprep.mubr.bf16.mxu0 0
      %630 = vmatmul.mubr.bf16.gmra.mxu0 %v487
      %v631 = vpop.f32.mrf.mxu0
      %v632 = vadd.f32 0.0, %v631
      %v633 = vpop.f32.mrf.mxu0
      %v634 = vpop.f32.mrf.mxu0
      %v635 = vadd.f32 0.0, %v634
      %v636 = vpop.f32.mrf.mxu0
      %637 = vmatprep.mubr.bf16.mxu0 0
      %638 = vmatmul.mubr.bf16.gmra.mxu0 %v490
      %v639 = vpop.f32.mrf.mxu0
      %v640 = vadd.f32 0.0, %v639
      %v641 = vpop.f32.mrf.mxu0
      %v642 = vpop.f32.mrf.mxu0
      %v643 = vadd.f32 0.0, %v642
      %v644 = vpop.f32.mrf.mxu0
      %645 = vmatprep.mubr.bf16.mxu0 0
      %646 = vmatmul.mubr.bf16.gmra.mxu0 %v493
      %v647 = vpop.f32.mrf.mxu0
      %v648 = vadd.f32 0.0, %v647
      %v649 = vpop.f32.mrf.mxu0
      %v650 = vpop.f32.mrf.mxu0
      %v651 = vadd.f32 0.0, %v650
      %v652 = vpop.f32.mrf.mxu0
      %653 = vmatprep.mubr.bf16.mxu0 0
      %654 = vmatmul.mubr.bf16.gmra.mxu0 %v496
      %v655 = vpop.f32.mrf.mxu0
      %v656 = vadd.f32 0.0, %v655
      %v657 = vpop.f32.mrf.mxu0
      %v658 = vpop.f32.mrf.mxu0
      %v659 = vadd.f32 0.0, %v658
      %v660 = vpop.f32.mrf.mxu0
      %661 = vmatprep.mubr.bf16.mxu0 0
      %662 = vmatmul.mubr.bf16.gmra.mxu0 %v499
      %v663 = vpop.f32.mrf.mxu0
      %v664 = vadd.f32 0.0, %v663
      %v665 = vpop.f32.mrf.mxu0
      %v666 = vpop.f32.mrf.mxu0
      %v667 = vadd.f32 0.0, %v666
      %v668 = vpop.f32.mrf.mxu0
      %669 = vmatprep.mubr.bf16.mxu0 0
      %670 = vmatmul.mubr.bf16.gmra.mxu0 %v502
      %v671 = vpop.f32.mrf.mxu0
      %v672 = vadd.f32 0.0, %v671
      %v673 = vpop.f32.mrf.mxu0
      %v674 = vpop.f32.mrf.mxu0
      %v675 = vadd.f32 0.0, %v674
      %v676 = vpop.f32.mrf.mxu0
      %677 = vmatprep.mubr.bf16.mxu0 0
      %678 = vmatmul.mubr.bf16.gmra.mxu0 %v505
      %v679 = vpop.f32.mrf.mxu0
      %v680 = vadd.f32 0.0, %v679
      %v681 = vpop.f32.mrf.mxu0
      %v682 = vpop.f32.mrf.mxu0
      %v683 = vadd.f32 0.0, %v682
      %v684 = vpop.f32.mrf.mxu0
      %685 = vmatprep.mubr.bf16.mxu0 0
      %686 = vmatmul.mubr.bf16.gmra.mxu0 %v508
      %v687 = vpop.f32.mrf.mxu0
      %v688 = vadd.f32 0.0, %v687
      %v689 = vpop.f32.mrf.mxu0
      %v690 = vpop.f32.mrf.mxu0
      %v691 = vadd.f32 0.0, %v690
      %v692 = vpop.f32.mrf.mxu0
      %693 = vmatprep.mubr.bf16.mxu0 0
      %694 = vmatmul.mubr.bf16.gmra.mxu0 %v511
      %v695 = vpop.f32.mrf.mxu0
      %v696 = vadd.f32 0.0, %v695
      %v697 = vpop.f32.mrf.mxu0
      %v698 = vpop.f32.mrf.mxu0
      %v699 = vadd.f32 0.0, %v698
      %v700 = vpop.f32.mrf.mxu0
      %701 = vmatprep.mubr.bf16.mxu0 0
      %702 = vmatmul.mubr.bf16.gmra.mxu0 %v514
      %v703 = vpop.f32.mrf.mxu0
      %v704 = vadd.f32 0.0, %v703
      %v705 = vpop.f32.mrf.mxu0
      %v706 = vpop.f32.mrf.mxu0
      %v707 = vadd.f32 0.0, %v706
      %v708 = vpop.f32.mrf.mxu0
      %709 = vmatprep.mubr.bf16.mxu0 0
      %710 = vmatmul.mubr.bf16.gmra.mxu0 %v517
      %v711 = vpop.f32.mrf.mxu0
      %v712 = vadd.f32 0.0, %v711
      %v713 = vpop.f32.mrf.mxu0
      %v714 = vpop.f32.mrf.mxu0
      %v715 = vadd.f32 0.0, %v714
      %v716 = vpop.f32.mrf.mxu0
      %717 = vmatprep.mubr.bf16.mxu0 0
      %718 = vmatmul.mubr.bf16.gmra.mxu0 %v520
      %v719 = vpop.f32.mrf.mxu0
      %v720 = vadd.f32 0.0, %v719
      %v721 = vpop.f32.mrf.mxu0
      %v722 = vpop.f32.mrf.mxu0
      %v723 = vadd.f32 0.0, %v722
      %v724 = vpop.f32.mrf.mxu0
      %725 = vmatprep.mubr.bf16.mxu0 0
      %726 = vmatmul.mubr.bf16.gmra.mxu0 %v523
      %v727 = vpop.f32.mrf.mxu0
      %v728 = vadd.f32 0.0, %v727
      %v729 = vpop.f32.mrf.mxu0
      %v730 = vpop.f32.mrf.mxu0
      %v731 = vadd.f32 0.0, %v730
      %v732 = vpop.f32.mrf.mxu0
      %733 = vmatprep.mubr.bf16.mxu0 0
      %734 = vmatmul.mubr.bf16.gmra.mxu0 %v526
      %v735 = vpop.f32.mrf.mxu0
      %v736 = vadd.f32 0.0, %v735
      %v737 = vpop.f32.mrf.mxu0
      %v738 = vpop.f32.mrf.mxu0
      %v739 = vadd.f32 0.0, %v738
      %v740 = vpop.f32.mrf.mxu0
      %741 = vmatprep.mubr.bf16.mxu0 0
      %742 = vmatmul.mubr.bf16.gmra.mxu0 %v529
      %v743 = vpop.f32.mrf.mxu0
      %v744 = vadd.f32 0.0, %v743
      %v745 = vpop.f32.mrf.mxu0
      %v746 = vpop.f32.mrf.mxu0
      %v747 = vadd.f32 0.0, %v746
      %v748 = vpop.f32.mrf.mxu0
      %749 = vmatprep.mubr.bf16.mxu0 0
      %750 = vmatmul.mubr.bf16.gmra.mxu0 %v532
      %v751 = vpop.f32.mrf.mxu0
      %v752 = vadd.f32 0.0, %v751
      %v753 = vpop.f32.mrf.mxu0
      %v754 = vpop.f32.mrf.mxu0
      %v755 = vadd.f32 0.0, %v754
      %v756 = vpop.f32.mrf.mxu0
      %757 = vmatprep.mubr.bf16.mxu0 0
      %758 = vmatmul.mubr.bf16.gmra.mxu0 %v535
      %v759 = vpop.f32.mrf.mxu0
      %v760 = vadd.f32 0.0, %v759
      %v761 = vpop.f32.mrf.mxu0
      %v762 = vpop.f32.mrf.mxu0
      %v763 = vadd.f32 0.0, %v762
      %v764 = vpop.f32.mrf.mxu0
      %765 = vdwg.mxu0
      %vm766 = vcmask 261120
      %767 = vst.msk [vmem:[#allocation2] sm:$0xff] %vm766, %v576
      %768 = vst.msk [vmem:[#allocation2 + $0x8] sm:$0xff] %vm766, %v579
      %769 = vst.msk [vmem:[#allocation2 + $0x10] sm:$0xff] %vm766, %v584
      %770 = vst.msk [vmem:[#allocation2 + $0x18] sm:$0xff] %vm766, %v587
      %771 = vst.msk [vmem:[#allocation2 + $0x20] sm:$0xff] %vm766, %v592
      %772 = vst.msk [vmem:[#allocation2 + $0x28] sm:$0xff] %vm766, %v595
      %773 = vst.msk [vmem:[#allocation2 + $0x30] sm:$0xff] %vm766, %v600
      %774 = vst.msk [vmem:[#allocation2 + $0x38] sm:$0xff] %vm766, %v603
      %775 = vst.msk [vmem:[#allocation2 + $0x40] sm:$0xff] %vm766, %v608
      %776 = vst.msk [vmem:[#allocation2 + $0x48] sm:$0xff] %vm766, %v611
      %777 = vst.msk [vmem:[#allocation2 + $0x50] sm:$0xff] %vm766, %v616
      %778 = vst.msk [vmem:[#allocation2 + $0x58] sm:$0xff] %vm766, %v619
      %779 = vst.msk [vmem:[#allocation2 + $0x60] sm:$0xff] %vm766, %v624
      %780 = vst.msk [vmem:[#allocation2 + $0x68] sm:$0xff] %vm766, %v627
      %781 = vst.msk [vmem:[#allocation2 + $0x70] sm:$0xff] %vm766, %v632
      %782 = vst.msk [vmem:[#allocation2 + $0x78] sm:$0xff] %vm766, %v635
      %783 = vst.msk [vmem:[#allocation2 + $0x80] sm:$0xff] %vm766, %v640
      %784 = vst.msk [vmem:[#allocation2 + $0x88] sm:$0xff] %vm766, %v643
      %785 = vst.msk [vmem:[#allocation2 + $0x90] sm:$0xff] %vm766, %v648
      %786 = vst.msk [vmem:[#allocation2 + $0x98] sm:$0xff] %vm766, %v651
      %787 = vst.msk [vmem:[#allocation2 + $0xa0] sm:$0xff] %vm766, %v656
      %788 = vst.msk [vmem:[#allocation2 + $0xa8] sm:$0xff] %vm766, %v659
      %789 = vst.msk [vmem:[#allocation2 + $0xb0] sm:$0xff] %vm766, %v664
      %790 = vst.msk [vmem:[#allocation2 + $0xb8] sm:$0xff] %vm766, %v667
      %791 = vst.msk [vmem:[#allocation2 + $0xc0] sm:$0xff] %vm766, %v672
      %792 = vst.msk [vmem:[#allocation2 + $0xc8] sm:$0xff] %vm766, %v675
      %793 = vst.msk [vmem:[#allocation2 + $0xd0] sm:$0xff] %vm766, %v680
      %794 = vst.msk [vmem:[#allocation2 + $0xd8] sm:$0xff] %vm766, %v683
      %795 = vst.msk [vmem:[#allocation2 + $0xe0] sm:$0xff] %vm766, %v688
      %796 = vst.msk [vmem:[#allocation2 + $0xe8] sm:$0xff] %vm766, %v691
      %797 = vst.msk [vmem:[#allocation2 + $0xf0] sm:$0xff] %vm766, %v696
      %798 = vst.msk [vmem:[#allocation2 + $0xf8] sm:$0xff] %vm766, %v699
      %799 = vst.msk [vmem:[#allocation2 + $0x100] sm:$0xff] %vm766, %v704
      %800 = vst.msk [vmem:[#allocation2 + $0x108] sm:$0xff] %vm766, %v707
      %801 = vst.msk [vmem:[#allocation2 + $0x110] sm:$0xff] %vm766, %v712
      %802 = vst.msk [vmem:[#allocation2 + $0x118] sm:$0xff] %vm766, %v715
      %803 = vst.msk [vmem:[#allocation2 + $0x120] sm:$0xff] %vm766, %v720
      %804 = vst.msk [vmem:[#allocation2 + $0x128] sm:$0xff] %vm766, %v723
      %805 = vst.msk [vmem:[#allocation2 + $0x130] sm:$0xff] %vm766, %v728
      %806 = vst.msk [vmem:[#allocation2 + $0x138] sm:$0xff] %vm766, %v731
      %807 = vst.msk [vmem:[#allocation2 + $0x140] sm:$0xff] %vm766, %v736
      %808 = vst.msk [vmem:[#allocation2 + $0x148] sm:$0xff] %vm766, %v739
      %809 = vst.msk [vmem:[#allocation2 + $0x150] sm:$0xff] %vm766, %v744
      %810 = vst.msk [vmem:[#allocation2 + $0x158] sm:$0xff] %vm766, %v747
      %811 = vst.msk [vmem:[#allocation2 + $0x160] sm:$0xff] %vm766, %v752
      %812 = vst.msk [vmem:[#allocation2 + $0x168] sm:$0xff] %vm766, %v755
      %813 = vst.msk [vmem:[#allocation2 + $0x170] sm:$0xff] %vm766, %v760
      %814 = vst.msk [vmem:[#allocation2 + $0x178] sm:$0xff] %vm766, %v763
      %v815 = vlaneseq
      %v816 = vshrl.u32 %v815, 7
      %v817 = vadd.s32 %v816, 8
      %v818 = vadd.s32 %v816, 16
      %v819 = vadd.s32 %v816, 24
      %v820 = vadd.s32 %v816, 32
      %v821 = vadd.s32 %v816, 40
      %vm822 = vcmp.lt.s32.totalorder %v816, 0
      %v823 = vsub.s32 0, %v816
      %v824 = vsel %vm822, %v823, %v816
      %v825 = vmul.u32.u64.compose %v824, 2863311531
      %v826 = vextract.low.u32 %v825
      %v827 = vextract.high.u32 %v825
      %v828 = vshrl.u32 %v827, 4
      %v829 = vmul.u32 %v828, 24
      %v830 = vsub.s32 %v824, %v829
      %v831 = vsub.s32 0, %v830
      %v832 = vsel %vm822, %v831, %v830
      %vm833 = vcmp.lt.s32.totalorder %v817, 0
      %v834 = vsub.s32 0, %v817
      %v835 = vsel %vm833, %v834, %v817
      %v836 = vmul.u32.u64.compose %v835, 2863311531
      %v837 = vextract.low.u32 %v836
      %v838 = vextract.high.u32 %v836
      %v839 = vshrl.u32 %v838, 4
      %v840 = vmul.u32 %v839, 24
      %v841 = vsub.s32 %v835, %v840
      %v842 = vsub.s32 0, %v841
      %v843 = vsel %vm833, %v842, %v841
      %vm844 = vcmp.lt.s32.totalorder %v818, 0
      %v845 = vsub.s32 0, %v818
      %v846 = vsel %vm844, %v845, %v818
      %v847 = vmul.u32.u64.compose %v846, 2863311531
      %v848 = vextract.low.u32 %v847
      %v849 = vextract.high.u32 %v847
      %v850 = vshrl.u32 %v849, 4
      %v851 = vmul.u32 %v850, 24
      %v852 = vsub.s32 %v846, %v851
      %v853 = vsub.s32 0, %v852
      %v854 = vsel %vm844, %v853, %v852
      %vm855 = vcmp.lt.s32.totalorder %v819, 0
      %v856 = vsub.s32 0, %v819
      %v857 = vsel %vm855, %v856, %v819
      %v858 = vmul.u32.u64.compose %v857, 2863311531
      %v859 = vextract.low.u32 %v858
      %v860 = vextract.high.u32 %v858
      %v861 = vshrl.u32 %v860, 4
      %v862 = vmul.u32 %v861, 24
      %v863 = vsub.s32 %v857, %v862
      %v864 = vsub.s32 0, %v863
      %v865 = vsel %vm855, %v864, %v863
      %vm866 = vcmp.lt.s32.totalorder %v820, 0
      %v867 = vsub.s32 0, %v820
      %v868 = vsel %vm866, %v867, %v820
      %v869 = vmul.u32.u64.compose %v868, 2863311531
      %v870 = vextract.low.u32 %v869
      %v871 = vextract.high.u32 %v869
      %v872 = vshrl.u32 %v871, 4
      %v873 = vmul.u32 %v872, 24
      %v874 = vsub.s32 %v868, %v873
      %v875 = vsub.s32 0, %v874
      %v876 = vsel %vm866, %v875, %v874
      %vm877 = vcmp.lt.s32.totalorder %v821, 0
      %v878 = vsub.s32 0, %v821
      %v879 = vsel %vm877, %v878, %v821
      %v880 = vmul.u32.u64.compose %v879, 2863311531
      %v881 = vextract.low.u32 %v880
      %v882 = vextract.high.u32 %v880
      %v883 = vshrl.u32 %v882, 4
      %v884 = vmul.u32 %v883, 24
      %v885 = vsub.s32 %v879, %v884
      %v886 = vsub.s32 0, %v885
      %v887 = vsel %vm877, %v886, %v885
      %vm888 = vcmp.ne.s32.totalorder %v832, 0
      %vm889 = vcmp.ne.s32.totalorder %v843, 0
      %vm890 = vcmp.ne.s32.totalorder %v854, 0
      %vm891 = vcmp.ne.s32.totalorder %v865, 0
      %vm892 = vcmp.ne.s32.totalorder %v876, 0
      %vm893 = vcmp.ne.s32.totalorder %v887, 0
      %vm894 = vcmp.lt.s32.totalorder %v832, 0
      %vm895 = vcmp.lt.s32.totalorder %v843, 0
      %vm896 = vcmp.lt.s32.totalorder %v854, 0
      %vm897 = vcmp.lt.s32.totalorder %v865, 0
      %vm898 = vcmp.lt.s32.totalorder %v876, 0
      %vm899 = vcmp.lt.s32.totalorder %v887, 0
      %vm900 = vmand %vm894, %vm888
      %vm901 = vmand %vm895, %vm889
      %vm902 = vmand %vm896, %vm890
      %vm903 = vmand %vm897, %vm891
      %vm904 = vmand %vm898, %vm892
      %vm905 = vmand %vm899, %vm893
      %v906 = vadd.s32 %v832, 24
      %v907 = vadd.s32 %v843, 24
      %v908 = vadd.s32 %v854, 24
      %v909 = vadd.s32 %v865, 24
      %v910 = vadd.s32 %v876, 24
      %v911 = vadd.s32 %v887, 24
      %v912 = vsel %vm900, %v906, %v832
      %v913 = vsel %vm901, %v907, %v843
      %v914 = vsel %vm902, %v908, %v854
      %v915 = vsel %vm903, %v909, %v865
      %v916 = vsel %vm904, %v910, %v876
      %v917 = vsel %vm905, %v911, %v887
      %vm918 = vcmp.lt.s32.totalorder %v912, 16
      %vm919 = vcmp.lt.s32.totalorder %v913, 16
      %vm920 = vcmp.lt.s32.totalorder %v914, 16
      %vm921 = vcmp.lt.s32.totalorder %v915, 16
      %vm922 = vcmp.lt.s32.totalorder %v916, 16
      %vm923 = vcmp.lt.s32.totalorder %v917, 16
      %v924 = vld [vmem:[%s3] sm:$0x1]
      %v925 = vld [vmem:[%s255] sm:$0x1]
      %v926 = vld [vmem:[#allocation2] sm:$0xff]
      %v927 = vld [vmem:[#allocation2 + $0x8] sm:$0xff]
      %v928 = vld [vmem:[#allocation2 + $0x10] sm:$0xff]
      %v929 = vld [vmem:[#allocation2 + $0x18] sm:$0xff]
      %v930 = vld [vmem:[#allocation2 + $0x20] sm:$0xff]
      %v931 = vld [vmem:[#allocation2 + $0x28] sm:$0xff]
      %v933 = vlaneseq
      %v934 = vshrl.u32 %v933, 7
      %v935 = vsub.s32 0, %v934
      %v936 = vrot.slane %v924, %v935
      %v938 = vadd.f32 %v926, %v936
      %v939 = vadd.f32 %v927, %v936
      %v940 = vadd.f32 %v928, %v936
      %v941 = vadd.f32 %v929, %v936
      %v942 = vadd.f32 %v930, %v936
      %v943 = vadd.f32 %v931, %v936
      %v944 = vsub.f32 0.0, %v938
      %v945 = vsub.f32 0.0, %v939
      %v946 = vsub.f32 0.0, %v940
      %v947 = vsub.f32 0.0, %v941
      %v948 = vsub.f32 0.0, %v942
      %v949 = vsub.f32 0.0, %v943
      %v950 = vmul.f32 %v944, 1.442695
      %v951 = vpow.pop %v950
      %v952 = vmul.f32 %v945, 1.442695
      %v953 = vpow.pop %v952
      %v954 = vmul.f32 %v946, 1.442695
      %v955 = vpow.pop %v954
      %v956 = vmul.f32 %v947, 1.442695
      %v957 = vpow.pop %v956
      %v958 = vmul.f32 %v948, 1.442695
      %v959 = vpow.pop %v958
      %v960 = vmul.f32 %v949, 1.442695
      %v961 = vpow.pop %v960
      %v962 = vadd.f32 %v951, 1.0
      %v963 = vadd.f32 %v953, 1.0
      %v964 = vadd.f32 %v955, 1.0
      %v965 = vadd.f32 %v957, 1.0
      %v966 = vadd.f32 %v959, 1.0
      %v967 = vadd.f32 %v961, 1.0
      %v968 = vrcp.pop %v962
      %v969 = vrcp.pop %v963
      %v970 = vrcp.pop %v964
      %v971 = vrcp.pop %v965
      %v972 = vrcp.pop %v966
      %v973 = vrcp.pop %v967
      %v974 = vmul.f32 %v938, %v968
      %v975 = vmul.f32 %v939, %v969
      %v976 = vmul.f32 %v940, %v970
      %v977 = vmul.f32 %v941, %v971
      %v978 = vmul.f32 %v942, %v972
      %v979 = vmul.f32 %v943, %v973
      %v981 = vlaneseq
      %v982 = vshrl.u32 %v981, 7
      %v983 = vsub.s32 0, %v982
      %v984 = vrot.slane %v925, %v983
      %v986 = vadd.f32 %v974, %v984
      %v987 = vadd.f32 %v975, %v984
      %v988 = vadd.f32 %v976, %v984
      %v989 = vadd.f32 %v977, %v984
      %v990 = vadd.f32 %v978, %v984
      %v991 = vadd.f32 %v979, %v984
      %v992 = vsel %vm918, 1, 0
      %v993 = vsel %vm919, 1, 0
      %v994 = vsel %vm920, 1, 0
      %v995 = vsel %vm921, 1, 0
      %v996 = vsel %vm922, 1, 0
      %v997 = vsel %vm923, 1, 0
      %vm998 = vcmp.eq.s32.totalorder %v992, 1
      %vm999 = vcmp.eq.s32.totalorder %v993, 1
      %vm1000 = vcmp.eq.s32.totalorder %v994, 1
      %vm1001 = vcmp.eq.s32.totalorder %v995, 1
      %vm1002 = vcmp.eq.s32.totalorder %v996, 1
      %vm1003 = vcmp.eq.s32.totalorder %v997, 1
      %v1004 = vsel %vm998, %v986, 0.0
      %v1005 = vsel %vm999, %v987, 0.0
      %v1006 = vsel %vm1000, %v988, 0.0
      %v1007 = vsel %vm1001, %v989, 0.0
      %v1008 = vsel %vm1002, %v990, 0.0
      %v1009 = vsel %vm1003, %v991, 0.0
      %1010 = vst.msk [vmem:[#allocation4 + $0x19] sm:$0xff] %vm766, %v1004
      %1011 = vst.msk [vmem:[#allocation4 + $0x21] sm:$0xff] %vm766, %v1005
      %1012 = vst.msk [vmem:[#allocation4 + $0x29] sm:$0xff] %vm766, %v1006
      %1013 = vst.msk [vmem:[#allocation4 + $0x31] sm:$0xff] %vm766, %v1007
      %1014 = vst.msk [vmem:[#allocation4 + $0x39] sm:$0xff] %vm766, %v1008
      %1015 = vst.msk [vmem:[#allocation4 + $0x41] sm:$0xff] %vm766, %v1009
      %1022 = vrot.lane.b32.xlu0 %v1004, 32
      %v1023 = vpop.permute.xlu0 %1022
      %1024 = vrot.lane.b32.xlu0 %v1005, 32
      %v1025 = vpop.permute.xlu0 %1024
      %1026 = vrot.lane.b32.xlu0 %v1006, 32
      %v1027 = vpop.permute.xlu0 %1026
      %1028 = vrot.lane.b32.xlu0 %v1007, 32
      %v1029 = vpop.permute.xlu0 %1028
      %1030 = vrot.lane.b32.xlu0 %v1008, 32
      %v1031 = vpop.permute.xlu0 %1030
      %1032 = vrot.lane.b32.xlu0 %v1009, 32
      %v1033 = vpop.permute.xlu0 %1032
      %vm1040 = vcmask 523520
      %1041 = vst.msk [vmem:[#allocation4 + $0x18] sm:$0xff] %vm1040, %v1023
      %1042 = vst.msk [vmem:[#allocation4 + $0x20] sm:$0xff] %vm1040, %v1025
      %1043 = vst.msk [vmem:[#allocation4 + $0x28] sm:$0xff] %vm1040, %v1027
      %1044 = vst.msk [vmem:[#allocation4 + $0x30] sm:$0xff] %vm1040, %v1029
      %1045 = vst.msk [vmem:[#allocation4 + $0x38] sm:$0xff] %vm1040, %v1031
      %1046 = vst.msk [vmem:[#allocation4 + $0x40] sm:$0xff] %vm1040, %v1033
      %1047 = vrot.lane.b32.xlu0 %v1004, 64
      %v1048 = vpop.permute.xlu0 %1047
      %1049 = vrot.lane.b32.xlu0 %v1005, 64
      %v1050 = vpop.permute.xlu0 %1049
      %1051 = vrot.lane.b32.xlu0 %v1006, 64
      %v1052 = vpop.permute.xlu0 %1051
      %1053 = vrot.lane.b32.xlu0 %v1007, 64
      %v1054 = vpop.permute.xlu0 %1053
      %1055 = vrot.lane.b32.xlu0 %v1008, 64
      %v1056 = vpop.permute.xlu0 %1055
      %1057 = vrot.lane.b32.xlu0 %v1009, 64
      %v1058 = vpop.permute.xlu0 %1057
      %vm1065 = vcmask 785920
      %1066 = vst.msk [vmem:[#allocation4 + $0x17] sm:$0xff] %vm1065, %v1048
      %1067 = vst.msk [vmem:[#allocation4 + $0x1f] sm:$0xff] %vm1065, %v1050
      %1068 = vst.msk [vmem:[#allocation4 + $0x27] sm:$0xff] %vm1065, %v1052
      %1069 = vst.msk [vmem:[#allocation4 + $0x2f] sm:$0xff] %vm1065, %v1054
      %1070 = vst.msk [vmem:[#allocation4 + $0x37] sm:$0xff] %vm1065, %v1056
      %1071 = vst.msk [vmem:[#allocation4 + $0x3f] sm:$0xff] %vm1065, %v1058
      %v1072 = vld [vmem:[#allocation2 + $0x30] sm:$0xff]
      %v1073 = vld [vmem:[#allocation2 + $0x38] sm:$0xff]
      %v1074 = vld [vmem:[#allocation2 + $0x40] sm:$0xff]
      %v1075 = vld [vmem:[#allocation2 + $0x48] sm:$0xff]
      %v1076 = vld [vmem:[#allocation2 + $0x50] sm:$0xff]
      %v1077 = vld [vmem:[#allocation2 + $0x58] sm:$0xff]
      %v1078 = vadd.f32 %v1072, %v936
      %v1079 = vadd.f32 %v1073, %v936
      %v1080 = vadd.f32 %v1074, %v936
      %v1081 = vadd.f32 %v1075, %v936
      %v1082 = vadd.f32 %v1076, %v936
      %v1083 = vadd.f32 %v1077, %v936
      %v1084 = vsub.f32 0.0, %v1078
      %v1085 = vsub.f32 0.0, %v1079
      %v1086 = vsub.f32 0.0, %v1080
      %v1087 = vsub.f32 0.0, %v1081
      %v1088 = vsub.f32 0.0, %v1082
      %v1089 = vsub.f32 0.0, %v1083
      %v1090 = vmul.f32 %v1084, 1.442695
      %v1091 = vpow.pop %v1090
      %v1092 = vmul.f32 %v1085, 1.442695
      %v1093 = vpow.pop %v1092
      %v1094 = vmul.f32 %v1086, 1.442695
      %v1095 = vpow.pop %v1094
      %v1096 = vmul.f32 %v1087, 1.442695
      %v1097 = vpow.pop %v1096
      %v1098 = vmul.f32 %v1088, 1.442695
      %v1099 = vpow.pop %v1098
      %v1100 = vmul.f32 %v1089, 1.442695
      %v1101 = vpow.pop %v1100
      %v1102 = vadd.f32 %v1091, 1.0
      %v1103 = vadd.f32 %v1093, 1.0
      %v1104 = vadd.f32 %v1095, 1.0
      %v1105 = vadd.f32 %v1097, 1.0
      %v1106 = vadd.f32 %v1099, 1.0
      %v1107 = vadd.f32 %v1101, 1.0
      %v1108 = vrcp.pop %v1102
      %v1109 = vrcp.pop %v1103
      %v1110 = vrcp.pop %v1104
      %v1111 = vrcp.pop %v1105
      %v1112 = vrcp.pop %v1106
      %v1113 = vrcp.pop %v1107
      %v1114 = vmul.f32 %v1078, %v1108
      %v1115 = vmul.f32 %v1079, %v1109
      %v1116 = vmul.f32 %v1080, %v1110
      %v1117 = vmul.f32 %v1081, %v1111
      %v1118 = vmul.f32 %v1082, %v1112
      %v1119 = vmul.f32 %v1083, %v1113
      %v1120 = vadd.f32 %v1114, %v984
      %v1121 = vadd.f32 %v1115, %v984
      %v1122 = vadd.f32 %v1116, %v984
      %v1123 = vadd.f32 %v1117, %v984
      %v1124 = vadd.f32 %v1118, %v984
      %v1125 = vadd.f32 %v1119, %v984
      %v1126 = vsel %vm998, %v1120, 0.0
      %v1127 = vsel %vm999, %v1121, 0.0
      %v1128 = vsel %vm1000, %v1122, 0.0
      %v1129 = vsel %vm1001, %v1123, 0.0
      %v1130 = vsel %vm1002, %v1124, 0.0
      %v1131 = vsel %vm1003, %v1125, 0.0
      %1132 = vst.msk [vmem:[#allocation4 + $0x49] sm:$0xff] %vm766, %v1126
      %1133 = vst.msk [vmem:[#allocation4 + $0x51] sm:$0xff] %vm766, %v1127
      %1134 = vst.msk [vmem:[#allocation4 + $0x59] sm:$0xff] %vm766, %v1128
      %1135 = vst.msk [vmem:[#allocation4 + $0x61] sm:$0xff] %vm766, %v1129
      %1136 = vst.msk [vmem:[#allocation4 + $0x69] sm:$0xff] %vm766, %v1130
      %1137 = vst.msk [vmem:[#allocation4 + $0x71] sm:$0xff] %vm766, %v1131
      %1144 = vrot.lane.b32.xlu0 %v1126, 32
      %v1145 = vpop.permute.xlu0 %1144
      %1146 = vrot.lane.b32.xlu0 %v1127, 32
      %v1147 = vpop.permute.xlu0 %1146
      %1148 = vrot.lane.b32.xlu0 %v1128, 32
      %v1149 = vpop.permute.xlu0 %1148
      %1150 = vrot.lane.b32.xlu0 %v1129, 32
      %v1151 = vpop.permute.xlu0 %1150
      %1152 = vrot.lane.b32.xlu0 %v1130, 32
      %v1153 = vpop.permute.xlu0 %1152
      %1154 = vrot.lane.b32.xlu0 %v1131, 32
      %v1155 = vpop.permute.xlu0 %1154
      %1162 = vst.msk [vmem:[#allocation4 + $0x48] sm:$0xff] %vm1040, %v1145
      %1163 = vst.msk [vmem:[#allocation4 + $0x50] sm:$0xff] %vm1040, %v1147
      %1164 = vst.msk [vmem:[#allocation4 + $0x58] sm:$0xff] %vm1040, %v1149
      %1165 = vst.msk [vmem:[#allocation4 + $0x60] sm:$0xff] %vm1040, %v1151
      %1166 = vst.msk [vmem:[#allocation4 + $0x68] sm:$0xff] %vm1040, %v1153
      %1167 = vst.msk [vmem:[#allocation4 + $0x70] sm:$0xff] %vm1040, %v1155
      %1168 = vrot.lane.b32.xlu0 %v1126, 64
      %v1169 = vpop.permute.xlu0 %1168
      %1170 = vrot.lane.b32.xlu0 %v1127, 64
      %v1171 = vpop.permute.xlu0 %1170
      %1172 = vrot.lane.b32.xlu0 %v1128, 64
      %v1173 = vpop.permute.xlu0 %1172
      %1174 = vrot.lane.b32.xlu0 %v1129, 64
      %v1175 = vpop.permute.xlu0 %1174
      %1176 = vrot.lane.b32.xlu0 %v1130, 64
      %v1177 = vpop.permute.xlu0 %1176
      %1178 = vrot.lane.b32.xlu0 %v1131, 64
      %v1179 = vpop.permute.xlu0 %1178
      %1186 = vst.msk [vmem:[#allocation4 + $0x47] sm:$0xff] %vm1065, %v1169
      %1187 = vst.msk [vmem:[#allocation4 + $0x4f] sm:$0xff] %vm1065, %v1171
      %1188 = vst.msk [vmem:[#allocation4 + $0x57] sm:$0xff] %vm1065, %v1173
      %1189 = vst.msk [vmem:[#allocation4 + $0x5f] sm:$0xff] %vm1065, %v1175
      %1190 = vst.msk [vmem:[#allocation4 + $0x67] sm:$0xff] %vm1065, %v1177
      %1191 = vst.msk [vmem:[#allocation4 + $0x6f] sm:$0xff] %vm1065, %v1179
      %v1192 = vld [vmem:[#allocation2 + $0x60] sm:$0xff]
      %v1193 = vld [vmem:[#allocation2 + $0x68] sm:$0xff]
      %v1194 = vld [vmem:[#allocation2 + $0x70] sm:$0xff]
      %v1195 = vld [vmem:[#allocation2 + $0x78] sm:$0xff]
      %v1196 = vld [vmem:[#allocation2 + $0x80] sm:$0xff]
      %v1197 = vld [vmem:[#allocation2 + $0x88] sm:$0xff]
      %v1198 = vadd.f32 %v1192, %v936
      %v1199 = vadd.f32 %v1193, %v936
      %v1200 = vadd.f32 %v1194, %v936
      %v1201 = vadd.f32 %v1195, %v936
      %v1202 = vadd.f32 %v1196, %v936
      %v1203 = vadd.f32 %v1197, %v936
      %v1204 = vsub.f32 0.0, %v1198
      %v1205 = vsub.f32 0.0, %v1199
      %v1206 = vsub.f32 0.0, %v1200
      %v1207 = vsub.f32 0.0, %v1201
      %v1208 = vsub.f32 0.0, %v1202
      %v1209 = vsub.f32 0.0, %v1203
      %v1210 = vmul.f32 %v1204, 1.442695
      %v1211 = vpow.pop %v1210
      %v1212 = vmul.f32 %v1205, 1.442695
      %v1213 = vpow.pop %v1212
      %v1214 = vmul.f32 %v1206, 1.442695
      %v1215 = vpow.pop %v1214
      %v1216 = vmul.f32 %v1207, 1.442695
      %v1217 = vpow.pop %v1216
      %v1218 = vmul.f32 %v1208, 1.442695
      %v1219 = vpow.pop %v1218
      %v1220 = vmul.f32 %v1209, 1.442695
      %v1221 = vpow.pop %v1220
      %v1222 = vadd.f32 %v1211, 1.0
      %v1223 = vadd.f32 %v1213, 1.0
      %v1224 = vadd.f32 %v1215, 1.0
      %v1225 = vadd.f32 %v1217, 1.0
      %v1226 = vadd.f32 %v1219, 1.0
      %v1227 = vadd.f32 %v1221, 1.0
      %v1228 = vrcp.pop %v1222
      %v1229 = vrcp.pop %v1223
      %v1230 = vrcp.pop %v1224
      %v1231 = vrcp.pop %v1225
      %v1232 = vrcp.pop %v1226
      %v1233 = vrcp.pop %v1227
      %v1234 = vmul.f32 %v1198, %v1228
      %v1235 = vmul.f32 %v1199, %v1229
      %v1236 = vmul.f32 %v1200, %v1230
      %v1237 = vmul.f32 %v1201, %v1231
      %v1238 = vmul.f32 %v1202, %v1232
      %v1239 = vmul.f32 %v1203, %v1233
      %v1240 = vadd.f32 %v1234, %v984
      %v1241 = vadd.f32 %v1235, %v984
      %v1242 = vadd.f32 %v1236, %v984
      %v1243 = vadd.f32 %v1237, %v984
      %v1244 = vadd.f32 %v1238, %v984
      %v1245 = vadd.f32 %v1239, %v984
      %v1246 = vsel %vm998, %v1240, 0.0
      %v1247 = vsel %vm999, %v1241, 0.0
      %v1248 = vsel %vm1000, %v1242, 0.0
      %v1249 = vsel %vm1001, %v1243, 0.0
      %v1250 = vsel %vm1002, %v1244, 0.0
      %v1251 = vsel %vm1003, %v1245, 0.0
      %1252 = vst.msk [vmem:[#allocation4 + $0x79] sm:$0xff] %vm766, %v1246
      %1253 = vst.msk [vmem:[#allocation4 + $0x81] sm:$0xff] %vm766, %v1247
      %1254 = vst.msk [vmem:[#allocation4 + $0x89] sm:$0xff] %vm766, %v1248
      %1255 = vst.msk [vmem:[#allocation4 + $0x91] sm:$0xff] %vm766, %v1249
      %1256 = vst.msk [vmem:[#allocation4 + $0x99] sm:$0xff] %vm766, %v1250
      %1257 = vst.msk [vmem:[#allocation4 + $0xa1] sm:$0xff] %vm766, %v1251
      %1264 = vrot.lane.b32.xlu0 %v1246, 32
      %v1265 = vpop.permute.xlu0 %1264
      %1266 = vrot.lane.b32.xlu0 %v1247, 32
      %v1267 = vpop.permute.xlu0 %1266
      %1268 = vrot.lane.b32.xlu0 %v1248, 32
      %v1269 = vpop.permute.xlu0 %1268
      %1270 = vrot.lane.b32.xlu0 %v1249, 32
      %v1271 = vpop.permute.xlu0 %1270
      %1272 = vrot.lane.b32.xlu0 %v1250, 32
      %v1273 = vpop.permute.xlu0 %1272
      %1274 = vrot.lane.b32.xlu0 %v1251, 32
      %v1275 = vpop.permute.xlu0 %1274
      %1282 = vst.msk [vmem:[#allocation4 + $0x78] sm:$0xff] %vm1040, %v1265
      %1283 = vst.msk [vmem:[#allocation4 + $0x80] sm:$0xff] %vm1040, %v1267
      %1284 = vst.msk [vmem:[#allocation4 + $0x88] sm:$0xff] %vm1040, %v1269
      %1285 = vst.msk [vmem:[#allocation4 + $0x90] sm:$0xff] %vm1040, %v1271
      %1286 = vst.msk [vmem:[#allocation4 + $0x98] sm:$0xff] %vm1040, %v1273
      %1287 = vst.msk [vmem:[#allocation4 + $0xa0] sm:$0xff] %vm1040, %v1275
      %1288 = vrot.lane.b32.xlu0 %v1246, 64
      %v1289 = vpop.permute.xlu0 %1288
      %1290 = vrot.lane.b32.xlu0 %v1247, 64
      %v1291 = vpop.permute.xlu0 %1290
      %1292 = vrot.lane.b32.xlu0 %v1248, 64
      %v1293 = vpop.permute.xlu0 %1292
      %1294 = vrot.lane.b32.xlu0 %v1249, 64
      %v1295 = vpop.permute.xlu0 %1294
      %1296 = vrot.lane.b32.xlu0 %v1250, 64
      %v1297 = vpop.permute.xlu0 %1296
      %1298 = vrot.lane.b32.xlu0 %v1251, 64
      %v1299 = vpop.permute.xlu0 %1298
      %1306 = vst.msk [vmem:[#allocation4 + $0x77] sm:$0xff] %vm1065, %v1289
      %1307 = vst.msk [vmem:[#allocation4 + $0x7f] sm:$0xff] %vm1065, %v1291
      %1308 = vst.msk [vmem:[#allocation4 + $0x87] sm:$0xff] %vm1065, %v1293
      %1309 = vst.msk [vmem:[#allocation4 + $0x8f] sm:$0xff] %vm1065, %v1295
      %1310 = vst.msk [vmem:[#allocation4 + $0x97] sm:$0xff] %vm1065, %v1297
      %1311 = vst.msk [vmem:[#allocation4 + $0x9f] sm:$0xff] %vm1065, %v1299
      %v1312 = vld [vmem:[#allocation2 + $0x90] sm:$0xff]
      %v1313 = vld [vmem:[#allocation2 + $0x98] sm:$0xff]
      %v1314 = vld [vmem:[#allocation2 + $0xa0] sm:$0xff]
      %v1315 = vld [vmem:[#allocation2 + $0xa8] sm:$0xff]
      %v1316 = vld [vmem:[#allocation2 + $0xb0] sm:$0xff]
      %v1317 = vld [vmem:[#allocation2 + $0xb8] sm:$0xff]
      %v1318 = vadd.f32 %v1312, %v936
      %v1319 = vadd.f32 %v1313, %v936
      %v1320 = vadd.f32 %v1314, %v936
      %v1321 = vadd.f32 %v1315, %v936
      %v1322 = vadd.f32 %v1316, %v936
      %v1323 = vadd.f32 %v1317, %v936
      %v1324 = vsub.f32 0.0, %v1318
      %v1325 = vsub.f32 0.0, %v1319
      %v1326 = vsub.f32 0.0, %v1320
      %v1327 = vsub.f32 0.0, %v1321
      %v1328 = vsub.f32 0.0, %v1322
      %v1329 = vsub.f32 0.0, %v1323
      %v1330 = vmul.f32 %v1324, 1.442695
      %v1331 = vpow.pop %v1330
      %v1332 = vmul.f32 %v1325, 1.442695
      %v1333 = vpow.pop %v1332
      %v1334 = vmul.f32 %v1326, 1.442695
      %v1335 = vpow.pop %v1334
      %v1336 = vmul.f32 %v1327, 1.442695
      %v1337 = vpow.pop %v1336
      %v1338 = vmul.f32 %v1328, 1.442695
      %v1339 = vpow.pop %v1338
      %v1340 = vmul.f32 %v1329, 1.442695
      %v1341 = vpow.pop %v1340
      %v1342 = vadd.f32 %v1331, 1.0
      %v1343 = vadd.f32 %v1333, 1.0
      %v1344 = vadd.f32 %v1335, 1.0
      %v1345 = vadd.f32 %v1337, 1.0
      %v1346 = vadd.f32 %v1339, 1.0
      %v1347 = vadd.f32 %v1341, 1.0
      %v1348 = vrcp.pop %v1342
      %v1349 = vrcp.pop %v1343
      %v1350 = vrcp.pop %v1344
      %v1351 = vrcp.pop %v1345
      %v1352 = vrcp.pop %v1346
      %v1353 = vrcp.pop %v1347
      %v1354 = vmul.f32 %v1318, %v1348
      %v1355 = vmul.f32 %v1319, %v1349
      %v1356 = vmul.f32 %v1320, %v1350
      %v1357 = vmul.f32 %v1321, %v1351
      %v1358 = vmul.f32 %v1322, %v1352
      %v1359 = vmul.f32 %v1323, %v1353
      %v1360 = vadd.f32 %v1354, %v984
      %v1361 = vadd.f32 %v1355, %v984
      %v1362 = vadd.f32 %v1356, %v984
      %v1363 = vadd.f32 %v1357, %v984
      %v1364 = vadd.f32 %v1358, %v984
      %v1365 = vadd.f32 %v1359, %v984
      %v1366 = vsel %vm998, %v1360, 0.0
      %v1367 = vsel %vm999, %v1361, 0.0
      %v1368 = vsel %vm1000, %v1362, 0.0
      %v1369 = vsel %vm1001, %v1363, 0.0
      %v1370 = vsel %vm1002, %v1364, 0.0
      %v1371 = vsel %vm1003, %v1365, 0.0
      %1372 = vst.msk [vmem:[#allocation4 + $0xa9] sm:$0xff] %vm766, %v1366
      %1373 = vst.msk [vmem:[#allocation4 + $0xb1] sm:$0xff] %vm766, %v1367
      %1374 = vst.msk [vmem:[#allocation4 + $0xb9] sm:$0xff] %vm766, %v1368
      %1375 = vst.msk [vmem:[#allocation4 + $0xc1] sm:$0xff] %vm766, %v1369
      %1376 = vst.msk [vmem:[#allocation4 + $0xc9] sm:$0xff] %vm766, %v1370
      %1377 = vst.msk [vmem:[#allocation4 + $0xd1] sm:$0xff] %vm766, %v1371
      %1384 = vrot.lane.b32.xlu0 %v1366, 32
      %v1385 = vpop.permute.xlu0 %1384
      %1386 = vrot.lane.b32.xlu0 %v1367, 32
      %v1387 = vpop.permute.xlu0 %1386
      %1388 = vrot.lane.b32.xlu0 %v1368, 32
      %v1389 = vpop.permute.xlu0 %1388
      %1390 = vrot.lane.b32.xlu0 %v1369, 32
      %v1391 = vpop.permute.xlu0 %1390
      %1392 = vrot.lane.b32.xlu0 %v1370, 32
      %v1393 = vpop.permute.xlu0 %1392
      %1394 = vrot.lane.b32.xlu0 %v1371, 32
      %v1395 = vpop.permute.xlu0 %1394
      %1402 = vst.msk [vmem:[#allocation4 + $0xa8] sm:$0xff] %vm1040, %v1385
      %1403 = vst.msk [vmem:[#allocation4 + $0xb0] sm:$0xff] %vm1040, %v1387
      %1404 = vst.msk [vmem:[#allocation4 + $0xb8] sm:$0xff] %vm1040, %v1389
      %1405 = vst.msk [vmem:[#allocation4 + $0xc0] sm:$0xff] %vm1040, %v1391
      %1406 = vst.msk [vmem:[#allocation4 + $0xc8] sm:$0xff] %vm1040, %v1393
      %1407 = vst.msk [vmem:[#allocation4 + $0xd0] sm:$0xff] %vm1040, %v1395
      %1408 = vrot.lane.b32.xlu0 %v1366, 64
      %v1409 = vpop.permute.xlu0 %1408
      %1410 = vrot.lane.b32.xlu0 %v1367, 64
      %v1411 = vpop.permute.xlu0 %1410
      %1412 = vrot.lane.b32.xlu0 %v1368, 64
      %v1413 = vpop.permute.xlu0 %1412
      %1414 = vrot.lane.b32.xlu0 %v1369, 64
      %v1415 = vpop.permute.xlu0 %1414
      %1416 = vrot.lane.b32.xlu0 %v1370, 64
      %v1417 = vpop.permute.xlu0 %1416
      %1418 = vrot.lane.b32.xlu0 %v1371, 64
      %v1419 = vpop.permute.xlu0 %1418
      %1426 = vst.msk [vmem:[#allocation4 + $0xa7] sm:$0xff] %vm1065, %v1409
      %1427 = vst.msk [vmem:[#allocation4 + $0xaf] sm:$0xff] %vm1065, %v1411
      %1428 = vst.msk [vmem:[#allocation4 + $0xb7] sm:$0xff] %vm1065, %v1413
      %1429 = vst.msk [vmem:[#allocation4 + $0xbf] sm:$0xff] %vm1065, %v1415
      %1430 = vst.msk [vmem:[#allocation4 + $0xc7] sm:$0xff] %vm1065, %v1417
      %1431 = vst.msk [vmem:[#allocation4 + $0xcf] sm:$0xff] %vm1065, %v1419
      %v1432 = vld [vmem:[#allocation2 + $0xc0] sm:$0xff]
      %v1433 = vld [vmem:[#allocation2 + $0xc8] sm:$0xff]
      %v1434 = vld [vmem:[#allocation2 + $0xd0] sm:$0xff]
      %v1435 = vld [vmem:[#allocation2 + $0xd8] sm:$0xff]
      %v1436 = vld [vmem:[#allocation2 + $0xe0] sm:$0xff]
      %v1437 = vld [vmem:[#allocation2 + $0xe8] sm:$0xff]
      %v1438 = vadd.f32 %v1432, %v936
      %v1439 = vadd.f32 %v1433, %v936
      %v1440 = vadd.f32 %v1434, %v936
      %v1441 = vadd.f32 %v1435, %v936
      %v1442 = vadd.f32 %v1436, %v936
      %v1443 = vadd.f32 %v1437, %v936
      %v1444 = vsub.f32 0.0, %v1438
      %v1445 = vsub.f32 0.0, %v1439
      %v1446 = vsub.f32 0.0, %v1440
      %v1447 = vsub.f32 0.0, %v1441
      %v1448 = vsub.f32 0.0, %v1442
      %v1449 = vsub.f32 0.0, %v1443
      %v1450 = vmul.f32 %v1444, 1.442695
      %v1451 = vpow.pop %v1450
      %v1452 = vmul.f32 %v1445, 1.442695
      %v1453 = vpow.pop %v1452
      %v1454 = vmul.f32 %v1446, 1.442695
      %v1455 = vpow.pop %v1454
      %v1456 = vmul.f32 %v1447, 1.442695
      %v1457 = vpow.pop %v1456
      %v1458 = vmul.f32 %v1448, 1.442695
      %v1459 = vpow.pop %v1458
      %v1460 = vmul.f32 %v1449, 1.442695
      %v1461 = vpow.pop %v1460
      %v1462 = vadd.f32 %v1451, 1.0
      %v1463 = vadd.f32 %v1453, 1.0
      %v1464 = vadd.f32 %v1455, 1.0
      %v1465 = vadd.f32 %v1457, 1.0
      %v1466 = vadd.f32 %v1459, 1.0
      %v1467 = vadd.f32 %v1461, 1.0
      %v1468 = vrcp.pop %v1462
      %v1469 = vrcp.pop %v1463
      %v1470 = vrcp.pop %v1464
      %v1471 = vrcp.pop %v1465
      %v1472 = vrcp.pop %v1466
      %v1473 = vrcp.pop %v1467
      %v1474 = vmul.f32 %v1438, %v1468
      %v1475 = vmul.f32 %v1439, %v1469
      %v1476 = vmul.f32 %v1440, %v1470
      %v1477 = vmul.f32 %v1441, %v1471
      %v1478 = vmul.f32 %v1442, %v1472
      %v1479 = vmul.f32 %v1443, %v1473
      %v1480 = vadd.f32 %v1474, %v984
      %v1481 = vadd.f32 %v1475, %v984
      %v1482 = vadd.f32 %v1476, %v984
      %v1483 = vadd.f32 %v1477, %v984
      %v1484 = vadd.f32 %v1478, %v984
      %v1485 = vadd.f32 %v1479, %v984
      %v1486 = vsel %vm998, %v1480, 0.0
      %v1487 = vsel %vm999, %v1481, 0.0
      %v1488 = vsel %vm1000, %v1482, 0.0
      %v1489 = vsel %vm1001, %v1483, 0.0
      %v1490 = vsel %vm1002, %v1484, 0.0
      %v1491 = vsel %vm1003, %v1485, 0.0
      %1492 = vst.msk [vmem:[#allocation4 + $0xd9] sm:$0xff] %vm766, %v1486
      %1493 = vst.msk [vmem:[#allocation4 + $0xe1] sm:$0xff] %vm766, %v1487
      %1494 = vst.msk [vmem:[#allocation4 + $0xe9] sm:$0xff] %vm766, %v1488
      %1495 = vst.msk [vmem:[#allocation4 + $0xf1] sm:$0xff] %vm766, %v1489
      %1496 = vst.msk [vmem:[#allocation4 + $0xf9] sm:$0xff] %vm766, %v1490
      %1497 = vst.msk [vmem:[#allocation4 + $0x101] sm:$0xff] %vm766, %v1491
      %1504 = vrot.lane.b32.xlu0 %v1486, 32
      %v1505 = vpop.permute.xlu0 %1504
      %1506 = vrot.lane.b32.xlu0 %v1487, 32
      %v1507 = vpop.permute.xlu0 %1506
      %1508 = vrot.lane.b32.xlu0 %v1488, 32
      %v1509 = vpop.permute.xlu0 %1508
      %1510 = vrot.lane.b32.xlu0 %v1489, 32
      %v1511 = vpop.permute.xlu0 %1510
      %1512 = vrot.lane.b32.xlu0 %v1490, 32
      %v1513 = vpop.permute.xlu0 %1512
      %1514 = vrot.lane.b32.xlu0 %v1491, 32
      %v1515 = vpop.permute.xlu0 %1514
      %1522 = vst.msk [vmem:[#allocation4 + $0xd8] sm:$0xff] %vm1040, %v1505
      %1523 = vst.msk [vmem:[#allocation4 + $0xe0] sm:$0xff] %vm1040, %v1507
      %1524 = vst.msk [vmem:[#allocation4 + $0xe8] sm:$0xff] %vm1040, %v1509
      %1525 = vst.msk [vmem:[#allocation4 + $0xf0] sm:$0xff] %vm1040, %v1511
      %1526 = vst.msk [vmem:[#allocation4 + $0xf8] sm:$0xff] %vm1040, %v1513
      %1527 = vst.msk [vmem:[#allocation4 + $0x100] sm:$0xff] %vm1040, %v1515
      %1528 = vrot.lane.b32.xlu0 %v1486, 64
      %v1529 = vpop.permute.xlu0 %1528
      %1530 = vrot.lane.b32.xlu0 %v1487, 64
      %v1531 = vpop.permute.xlu0 %1530
      %1532 = vrot.lane.b32.xlu0 %v1488, 64
      %v1533 = vpop.permute.xlu0 %1532
      %1534 = vrot.lane.b32.xlu0 %v1489, 64
      %v1535 = vpop.permute.xlu0 %1534
      %1536 = vrot.lane.b32.xlu0 %v1490, 64
      %v1537 = vpop.permute.xlu0 %1536
      %1538 = vrot.lane.b32.xlu0 %v1491, 64
      %v1539 = vpop.permute.xlu0 %1538
      %1546 = vst.msk [vmem:[#allocation4 + $0xd7] sm:$0xff] %vm1065, %v1529
      %1547 = vst.msk [vmem:[#allocation4 + $0xdf] sm:$0xff] %vm1065, %v1531
      %1548 = vst.msk [vmem:[#allocation4 + $0xe7] sm:$0xff] %vm1065, %v1533
      %1549 = vst.msk [vmem:[#allocation4 + $0xef] sm:$0xff] %vm1065, %v1535
      %1550 = vst.msk [vmem:[#allocation4 + $0xf7] sm:$0xff] %vm1065, %v1537
      %1551 = vst.msk [vmem:[#allocation4 + $0xff] sm:$0xff] %vm1065, %v1539
      %v1552 = vld [vmem:[#allocation2 + $0xf0] sm:$0xff]
      %v1553 = vld [vmem:[#allocation2 + $0xf8] sm:$0xff]
      %v1554 = vld [vmem:[#allocation2 + $0x100] sm:$0xff]
      %v1555 = vld [vmem:[#allocation2 + $0x108] sm:$0xff]
      %v1556 = vld [vmem:[#allocation2 + $0x110] sm:$0xff]
      %v1557 = vld [vmem:[#allocation2 + $0x118] sm:$0xff]
      %v1558 = vadd.f32 %v1552, %v936
      %v1559 = vadd.f32 %v1553, %v936
      %v1560 = vadd.f32 %v1554, %v936
      %v1561 = vadd.f32 %v1555, %v936
      %v1562 = vadd.f32 %v1556, %v936
      %v1563 = vadd.f32 %v1557, %v936
      %v1564 = vsub.f32 0.0, %v1558
      %v1565 = vsub.f32 0.0, %v1559
      %v1566 = vsub.f32 0.0, %v1560
      %v1567 = vsub.f32 0.0, %v1561
      %v1568 = vsub.f32 0.0, %v1562
      %v1569 = vsub.f32 0.0, %v1563
      %v1570 = vmul.f32 %v1564, 1.442695
      %v1571 = vpow.pop %v1570
      %v1572 = vmul.f32 %v1565, 1.442695
      %v1573 = vpow.pop %v1572
      %v1574 = vmul.f32 %v1566, 1.442695
      %v1575 = vpow.pop %v1574
      %v1576 = vmul.f32 %v1567, 1.442695
      %v1577 = vpow.pop %v1576
      %v1578 = vmul.f32 %v1568, 1.442695
      %v1579 = vpow.pop %v1578
      %v1580 = vmul.f32 %v1569, 1.442695
      %v1581 = vpow.pop %v1580
      %v1582 = vadd.f32 %v1571, 1.0
      %v1583 = vadd.f32 %v1573, 1.0
      %v1584 = vadd.f32 %v1575, 1.0
      %v1585 = vadd.f32 %v1577, 1.0
      %v1586 = vadd.f32 %v1579, 1.0
      %v1587 = vadd.f32 %v1581, 1.0
      %v1588 = vrcp.pop %v1582
      %v1589 = vrcp.pop %v1583
      %v1590 = vrcp.pop %v1584
      %v1591 = vrcp.pop %v1585
      %v1592 = vrcp.pop %v1586
      %v1593 = vrcp.pop %v1587
      %v1594 = vmul.f32 %v1558, %v1588
      %v1595 = vmul.f32 %v1559, %v1589
      %v1596 = vmul.f32 %v1560, %v1590
      %v1597 = vmul.f32 %v1561, %v1591
      %v1598 = vmul.f32 %v1562, %v1592
      %v1599 = vmul.f32 %v1563, %v1593
      %v1600 = vadd.f32 %v1594, %v984
      %v1601 = vadd.f32 %v1595, %v984
      %v1602 = vadd.f32 %v1596, %v984
      %v1603 = vadd.f32 %v1597, %v984
      %v1604 = vadd.f32 %v1598, %v984
      %v1605 = vadd.f32 %v1599, %v984
      %v1606 = vsel %vm998, %v1600, 0.0
      %v1607 = vsel %vm999, %v1601, 0.0
      %v1608 = vsel %vm1000, %v1602, 0.0
      %v1609 = vsel %vm1001, %v1603, 0.0
      %v1610 = vsel %vm1002, %v1604, 0.0
      %v1611 = vsel %vm1003, %v1605, 0.0
      %1612 = vst.msk [vmem:[#allocation4 + $0x109] sm:$0xff] %vm766, %v1606
      %1613 = vst.msk [vmem:[#allocation4 + $0x111] sm:$0xff] %vm766, %v1607
      %1614 = vst.msk [vmem:[#allocation4 + $0x119] sm:$0xff] %vm766, %v1608
      %1615 = vst.msk [vmem:[#allocation4 + $0x121] sm:$0xff] %vm766, %v1609
      %1616 = vst.msk [vmem:[#allocation4 + $0x129] sm:$0xff] %vm766, %v1610
      %1617 = vst.msk [vmem:[#allocation4 + $0x131] sm:$0xff] %vm766, %v1611
      %1624 = vrot.lane.b32.xlu0 %v1606, 32
      %v1625 = vpop.permute.xlu0 %1624
      %1626 = vrot.lane.b32.xlu0 %v1607, 32
      %v1627 = vpop.permute.xlu0 %1626
      %1628 = vrot.lane.b32.xlu0 %v1608, 32
      %v1629 = vpop.permute.xlu0 %1628
      %1630 = vrot.lane.b32.xlu0 %v1609, 32
      %v1631 = vpop.permute.xlu0 %1630
      %1632 = vrot.lane.b32.xlu0 %v1610, 32
      %v1633 = vpop.permute.xlu0 %1632
      %1634 = vrot.lane.b32.xlu0 %v1611, 32
      %v1635 = vpop.permute.xlu0 %1634
      %1642 = vst.msk [vmem:[#allocation4 + $0x108] sm:$0xff] %vm1040, %v1625
      %1643 = vst.msk [vmem:[#allocation4 + $0x110] sm:$0xff] %vm1040, %v1627
      %1644 = vst.msk [vmem:[#allocation4 + $0x118] sm:$0xff] %vm1040, %v1629
      %1645 = vst.msk [vmem:[#allocation4 + $0x120] sm:$0xff] %vm1040, %v1631
      %1646 = vst.msk [vmem:[#allocation4 + $0x128] sm:$0xff] %vm1040, %v1633
      %1647 = vst.msk [vmem:[#allocation4 + $0x130] sm:$0xff] %vm1040, %v1635
      %1648 = vrot.lane.b32.xlu0 %v1606, 64
      %v1649 = vpop.permute.xlu0 %1648
      %1650 = vrot.lane.b32.xlu0 %v1607, 64
      %v1651 = vpop.permute.xlu0 %1650
      %1652 = vrot.lane.b32.xlu0 %v1608, 64
      %v1653 = vpop.permute.xlu0 %1652
      %1654 = vrot.lane.b32.xlu0 %v1609, 64
      %v1655 = vpop.permute.xlu0 %1654
      %1656 = vrot.lane.b32.xlu0 %v1610, 64
      %v1657 = vpop.permute.xlu0 %1656
      %1658 = vrot.lane.b32.xlu0 %v1611, 64
      %v1659 = vpop.permute.xlu0 %1658
      %1666 = vst.msk [vmem:[#allocation4 + $0x107] sm:$0xff] %vm1065, %v1649
      %1667 = vst.msk [vmem:[#allocation4 + $0x10f] sm:$0xff] %vm1065, %v1651
      %1668 = vst.msk [vmem:[#allocation4 + $0x117] sm:$0xff] %vm1065, %v1653
      %1669 = vst.msk [vmem:[#allocation4 + $0x11f] sm:$0xff] %vm1065, %v1655
      %1670 = vst.msk [vmem:[#allocation4 + $0x127] sm:$0xff] %vm1065, %v1657
      %1671 = vst.msk [vmem:[#allocation4 + $0x12f] sm:$0xff] %vm1065, %v1659
      %v1672 = vld [vmem:[#allocation2 + $0x120] sm:$0xff]
      %v1673 = vld [vmem:[#allocation2 + $0x128] sm:$0xff]
      %v1674 = vld [vmem:[#allocation2 + $0x130] sm:$0xff]
      %v1675 = vld [vmem:[#allocation2 + $0x138] sm:$0xff]
      %v1676 = vld [vmem:[#allocation2 + $0x140] sm:$0xff]
      %v1677 = vld [vmem:[#allocation2 + $0x148] sm:$0xff]
      %v1678 = vadd.f32 %v1672, %v936
      %v1679 = vadd.f32 %v1673, %v936
      %v1680 = vadd.f32 %v1674, %v936
      %v1681 = vadd.f32 %v1675, %v936
      %v1682 = vadd.f32 %v1676, %v936
      %v1683 = vadd.f32 %v1677, %v936
      %v1684 = vsub.f32 0.0, %v1678
      %v1685 = vsub.f32 0.0, %v1679
      %v1686 = vsub.f32 0.0, %v1680
      %v1687 = vsub.f32 0.0, %v1681
      %v1688 = vsub.f32 0.0, %v1682
      %v1689 = vsub.f32 0.0, %v1683
      %v1690 = vmul.f32 %v1684, 1.442695
      %v1691 = vpow.pop %v1690
      %v1692 = vmul.f32 %v1685, 1.442695
      %v1693 = vpow.pop %v1692
      %v1694 = vmul.f32 %v1686, 1.442695
      %v1695 = vpow.pop %v1694
      %v1696 = vmul.f32 %v1687, 1.442695
      %v1697 = vpow.pop %v1696
      %v1698 = vmul.f32 %v1688, 1.442695
      %v1699 = vpow.pop %v1698
      %v1700 = vmul.f32 %v1689, 1.442695
      %v1701 = vpow.pop %v1700
      %v1702 = vadd.f32 %v1691, 1.0
      %v1703 = vadd.f32 %v1693, 1.0
      %v1704 = vadd.f32 %v1695, 1.0
      %v1705 = vadd.f32 %v1697, 1.0
      %v1706 = vadd.f32 %v1699, 1.0
      %v1707 = vadd.f32 %v1701, 1.0
      %v1708 = vrcp.pop %v1702
      %v1709 = vrcp.pop %v1703
      %v1710 = vrcp.pop %v1704
      %v1711 = vrcp.pop %v1705
      %v1712 = vrcp.pop %v1706
      %v1713 = vrcp.pop %v1707
      %v1714 = vmul.f32 %v1678, %v1708
      %v1715 = vmul.f32 %v1679, %v1709
      %v1716 = vmul.f32 %v1680, %v1710
      %v1717 = vmul.f32 %v1681, %v1711
      %v1718 = vmul.f32 %v1682, %v1712
      %v1719 = vmul.f32 %v1683, %v1713
      %v1720 = vadd.f32 %v1714, %v984
      %v1721 = vadd.f32 %v1715, %v984
      %v1722 = vadd.f32 %v1716, %v984
      %v1723 = vadd.f32 %v1717, %v984
      %v1724 = vadd.f32 %v1718, %v984
      %v1725 = vadd.f32 %v1719, %v984
      %v1726 = vsel %vm998, %v1720, 0.0
      %v1727 = vsel %vm999, %v1721, 0.0
      %v1728 = vsel %vm1000, %v1722, 0.0
      %v1729 = vsel %vm1001, %v1723, 0.0
      %v1730 = vsel %vm1002, %v1724, 0.0
      %v1731 = vsel %vm1003, %v1725, 0.0
      %1732 = vst.msk [vmem:[#allocation4 + $0x139] sm:$0xff] %vm766, %v1726
      %1733 = vst.msk [vmem:[#allocation4 + $0x141] sm:$0xff] %vm766, %v1727
      %1734 = vst.msk [vmem:[#allocation4 + $0x149] sm:$0xff] %vm766, %v1728
      %1735 = vst.msk [vmem:[#allocation4 + $0x151] sm:$0xff] %vm766, %v1729
      %1736 = vst.msk [vmem:[#allocation4 + $0x159] sm:$0xff] %vm766, %v1730
      %1737 = vst.msk [vmem:[#allocation4 + $0x161] sm:$0xff] %vm766, %v1731
      %1744 = vrot.lane.b32.xlu0 %v1726, 32
      %v1745 = vpop.permute.xlu0 %1744
      %1746 = vrot.lane.b32.xlu0 %v1727, 32
      %v1747 = vpop.permute.xlu0 %1746
      %1748 = vrot.lane.b32.xlu0 %v1728, 32
      %v1749 = vpop.permute.xlu0 %1748
      %1750 = vrot.lane.b32.xlu0 %v1729, 32
      %v1751 = vpop.permute.xlu0 %1750
      %1752 = vrot.lane.b32.xlu0 %v1730, 32
      %v1753 = vpop.permute.xlu0 %1752
      %1754 = vrot.lane.b32.xlu0 %v1731, 32
      %v1755 = vpop.permute.xlu0 %1754
      %1762 = vst.msk [vmem:[#allocation4 + $0x138] sm:$0xff] %vm1040, %v1745
      %1763 = vst.msk [vmem:[#allocation4 + $0x140] sm:$0xff] %vm1040, %v1747
      %1764 = vst.msk [vmem:[#allocation4 + $0x148] sm:$0xff] %vm1040, %v1749
      %1765 = vst.msk [vmem:[#allocation4 + $0x150] sm:$0xff] %vm1040, %v1751
      %1766 = vst.msk [vmem:[#allocation4 + $0x158] sm:$0xff] %vm1040, %v1753
      %1767 = vst.msk [vmem:[#allocation4 + $0x160] sm:$0xff] %vm1040, %v1755
      %1768 = vrot.lane.b32.xlu0 %v1726, 64
      %v1769 = vpop.permute.xlu0 %1768
      %1770 = vrot.lane.b32.xlu0 %v1727, 64
      %v1771 = vpop.permute.xlu0 %1770
      %1772 = vrot.lane.b32.xlu0 %v1728, 64
      %v1773 = vpop.permute.xlu0 %1772
      %1774 = vrot.lane.b32.xlu0 %v1729, 64
      %v1775 = vpop.permute.xlu0 %1774
      %1776 = vrot.lane.b32.xlu0 %v1730, 64
      %v1777 = vpop.permute.xlu0 %1776
      %1778 = vrot.lane.b32.xlu0 %v1731, 64
      %v1779 = vpop.permute.xlu0 %1778
      %1786 = vst.msk [vmem:[#allocation4 + $0x137] sm:$0xff] %vm1065, %v1769
      %1787 = vst.msk [vmem:[#allocation4 + $0x13f] sm:$0xff] %vm1065, %v1771
      %1788 = vst.msk [vmem:[#allocation4 + $0x147] sm:$0xff] %vm1065, %v1773
      %1789 = vst.msk [vmem:[#allocation4 + $0x14f] sm:$0xff] %vm1065, %v1775
      %1790 = vst.msk [vmem:[#allocation4 + $0x157] sm:$0xff] %vm1065, %v1777
      %1791 = vst.msk [vmem:[#allocation4 + $0x15f] sm:$0xff] %vm1065, %v1779
      %v1792 = vld [vmem:[#allocation2 + $0x150] sm:$0xff]
      %v1793 = vld [vmem:[#allocation2 + $0x158] sm:$0xff]
      %v1794 = vld [vmem:[#allocation2 + $0x160] sm:$0xff]
      %v1795 = vld [vmem:[#allocation2 + $0x168] sm:$0xff]
      %v1796 = vld [vmem:[#allocation2 + $0x170] sm:$0xff]
      %v1797 = vld [vmem:[#allocation2 + $0x178] sm:$0xff]
      %v1798 = vadd.f32 %v1792, %v936
      %v1799 = vadd.f32 %v1793, %v936
      %v1800 = vadd.f32 %v1794, %v936
      %v1801 = vadd.f32 %v1795, %v936
      %v1802 = vadd.f32 %v1796, %v936
      %v1803 = vadd.f32 %v1797, %v936
      %v1804 = vsub.f32 0.0, %v1798
      %v1805 = vsub.f32 0.0, %v1799
      %v1806 = vsub.f32 0.0, %v1800
      %v1807 = vsub.f32 0.0, %v1801
      %v1808 = vsub.f32 0.0, %v1802
      %v1809 = vsub.f32 0.0, %v1803
      %v1810 = vmul.f32 %v1804, 1.442695
      %v1811 = vpow.pop %v1810
      %v1812 = vmul.f32 %v1805, 1.442695
      %v1813 = vpow.pop %v1812
      %v1814 = vmul.f32 %v1806, 1.442695
      %v1815 = vpow.pop %v1814
      %v1816 = vmul.f32 %v1807, 1.442695
      %v1817 = vpow.pop %v1816
      %v1818 = vmul.f32 %v1808, 1.442695
      %v1819 = vpow.pop %v1818
      %v1820 = vmul.f32 %v1809, 1.442695
      %v1821 = vpow.pop %v1820
      %v1822 = vadd.f32 %v1811, 1.0
      %v1823 = vadd.f32 %v1813, 1.0
      %v1824 = vadd.f32 %v1815, 1.0
      %v1825 = vadd.f32 %v1817, 1.0
      %v1826 = vadd.f32 %v1819, 1.0
      %v1827 = vadd.f32 %v1821, 1.0
      %v1828 = vrcp.pop %v1822
      %v1829 = vrcp.pop %v1823
      %v1830 = vrcp.pop %v1824
      %v1831 = vrcp.pop %v1825
      %v1832 = vrcp.pop %v1826
      %v1833 = vrcp.pop %v1827
      %v1834 = vmul.f32 %v1798, %v1828
      %v1835 = vmul.f32 %v1799, %v1829
      %v1836 = vmul.f32 %v1800, %v1830
      %v1837 = vmul.f32 %v1801, %v1831
      %v1838 = vmul.f32 %v1802, %v1832
      %v1839 = vmul.f32 %v1803, %v1833
      %v1840 = vadd.f32 %v1834, %v984
      %v1841 = vadd.f32 %v1835, %v984
      %v1842 = vadd.f32 %v1836, %v984
      %v1843 = vadd.f32 %v1837, %v984
      %v1844 = vadd.f32 %v1838, %v984
      %v1845 = vadd.f32 %v1839, %v984
      %v1846 = vsel %vm998, %v1840, 0.0
      %v1847 = vsel %vm999, %v1841, 0.0
      %v1848 = vsel %vm1000, %v1842, 0.0
      %v1849 = vsel %vm1001, %v1843, 0.0
      %v1850 = vsel %vm1002, %v1844, 0.0
      %v1851 = vsel %vm1003, %v1845, 0.0
      %1852 = vst.msk [vmem:[#allocation4 + $0x169] sm:$0xff] %vm766, %v1846
      %1853 = vst.msk [vmem:[#allocation4 + $0x171] sm:$0xff] %vm766, %v1847
      %1854 = vst.msk [vmem:[#allocation4 + $0x179] sm:$0xff] %vm766, %v1848
      %1855 = vst.msk [vmem:[#allocation4 + $0x181] sm:$0xff] %vm766, %v1849
      %1856 = vst.msk [vmem:[#allocation4 + $0x189] sm:$0xff] %vm766, %v1850
      %1857 = vst.msk [vmem:[#allocation4 + $0x191] sm:$0xff] %vm766, %v1851
      %1864 = vrot.lane.b32.xlu0 %v1846, 32
      %v1865 = vpop.permute.xlu0 %1864
      %1866 = vrot.lane.b32.xlu0 %v1847, 32
      %v1867 = vpop.permute.xlu0 %1866
      %1868 = vrot.lane.b32.xlu0 %v1848, 32
      %v1869 = vpop.permute.xlu0 %1868
      %1870 = vrot.lane.b32.xlu0 %v1849, 32
      %v1871 = vpop.permute.xlu0 %1870
      %1872 = vrot.lane.b32.xlu0 %v1850, 32
      %v1873 = vpop.permute.xlu0 %1872
      %1874 = vrot.lane.b32.xlu0 %v1851, 32
      %v1875 = vpop.permute.xlu0 %1874
      %1882 = vst.msk [vmem:[#allocation4 + $0x168] sm:$0xff] %vm1040, %v1865
      %1883 = vst.msk [vmem:[#allocation4 + $0x170] sm:$0xff] %vm1040, %v1867
      %1884 = vst.msk [vmem:[#allocation4 + $0x178] sm:$0xff] %vm1040, %v1869
      %1885 = vst.msk [vmem:[#allocation4 + $0x180] sm:$0xff] %vm1040, %v1871
      %1886 = vst.msk [vmem:[#allocation4 + $0x188] sm:$0xff] %vm1040, %v1873
      %1887 = vst.msk [vmem:[#allocation4 + $0x190] sm:$0xff] %vm1040, %v1875
      %1888 = vrot.lane.b32.xlu0 %v1846, 64
      %v1889 = vpop.permute.xlu0 %1888
      %1890 = vrot.lane.b32.xlu0 %v1847, 64
      %v1891 = vpop.permute.xlu0 %1890
      %1892 = vrot.lane.b32.xlu0 %v1848, 64
      %v1893 = vpop.permute.xlu0 %1892
      %1894 = vrot.lane.b32.xlu0 %v1849, 64
      %v1895 = vpop.permute.xlu0 %1894
      %1896 = vrot.lane.b32.xlu0 %v1850, 64
      %v1897 = vpop.permute.xlu0 %1896
      %1898 = vrot.lane.b32.xlu0 %v1851, 64
      %v1899 = vpop.permute.xlu0 %1898
      %1906 = vst.msk [vmem:[#allocation4 + $0x167] sm:$0xff] %vm1065, %v1889
      %1907 = vst.msk [vmem:[#allocation4 + $0x16f] sm:$0xff] %vm1065, %v1891
      %1908 = vst.msk [vmem:[#allocation4 + $0x177] sm:$0xff] %vm1065, %v1893
      %1909 = vst.msk [vmem:[#allocation4 + $0x17f] sm:$0xff] %vm1065, %v1895
      %1910 = vst.msk [vmem:[#allocation4 + $0x187] sm:$0xff] %vm1065, %v1897
      %1911 = vst.msk [vmem:[#allocation4 + $0x18f] sm:$0xff] %vm1065, %v1899
      %v1912 = vld [vmem:[#allocation4] sm:$0xff]
      %v1913 = vld [vmem:[#allocation4 + $0x8] sm:$0xff]
      %v1914 = vld [vmem:[#allocation4 + $0x10] sm:$0xff]
      %v1915 = vld [vmem:[#allocation4 + $0x18] sm:$0xff]
      %v1916 = vld [vmem:[#allocation4 + $0x20] sm:$0xff]
      %v1917 = vld [vmem:[#allocation4 + $0x28] sm:$0xff]
      %v1918 = vld [vmem:[#allocation4 + $0x30] sm:$0xff]
      %v1919 = vld [vmem:[#allocation4 + $0x38] sm:$0xff]
      %v1920 = vld [vmem:[#allocation4 + $0x40] sm:$0xff]
      %v1921 = vld [vmem:[#allocation4 + $0x48] sm:$0xff]
      %v1922 = vld [vmem:[#allocation4 + $0x50] sm:$0xff]
      %v1923 = vld [vmem:[#allocation4 + $0x58] sm:$0xff]
      %v1924 = vld [vmem:[#allocation4 + $0x60] sm:$0xff]
      %v1925 = vld [vmem:[#allocation4 + $0x68] sm:$0xff]
      %v1926 = vld [vmem:[#allocation4 + $0x70] sm:$0xff]
      %v1927 = vld [vmem:[#allocation4 + $0x78] sm:$0xff]
      %v1928 = vld [vmem:[#allocation4 + $0x80] sm:$0xff]
      %v1929 = vld [vmem:[#allocation4 + $0x88] sm:$0xff]
      %v1930 = vld [vmem:[#allocation4 + $0x90] sm:$0xff]
      %v1931 = vld [vmem:[#allocation4 + $0x98] sm:$0xff]
      %v1932 = vld [vmem:[#allocation4 + $0xa0] sm:$0xff]
      %v1933 = vld [vmem:[#allocation4 + $0xa8] sm:$0xff]
      %v1934 = vld [vmem:[#allocation4 + $0xb0] sm:$0xff]
      %v1935 = vld [vmem:[#allocation4 + $0xb8] sm:$0xff]
      %v1936 = vld [vmem:[#allocation4 + $0xc0] sm:$0xff]
      %v1937 = vld [vmem:[#allocation4 + $0xc8] sm:$0xff]
      %v1938 = vld [vmem:[#allocation4 + $0xd0] sm:$0xff]
      %v1939 = vld [vmem:[#allocation4 + $0xd8] sm:$0xff]
      %v1940 = vld [vmem:[#allocation4 + $0xe0] sm:$0xff]
      %v1941 = vld [vmem:[#allocation4 + $0xe8] sm:$0xff]
      %v1942 = vld [vmem:[#allocation4 + $0xf0] sm:$0xff]
      %v1943 = vld [vmem:[#allocation4 + $0xf8] sm:$0xff]
      %v1944 = vld [vmem:[#allocation4 + $0x100] sm:$0xff]
      %v1945 = vld [vmem:[#allocation4 + $0x108] sm:$0xff]
      %v1946 = vld [vmem:[#allocation4 + $0x110] sm:$0xff]
      %v1947 = vld [vmem:[#allocation4 + $0x118] sm:$0xff]
      %v1948 = vld [vmem:[#allocation4 + $0x120] sm:$0xff]
      %v1949 = vld [vmem:[#allocation4 + $0x128] sm:$0xff]
      %v1950 = vld [vmem:[#allocation4 + $0x130] sm:$0xff]
      %v1951 = vld [vmem:[#allocation4 + $0x138] sm:$0xff]
      %v1952 = vld [vmem:[#allocation4 + $0x140] sm:$0xff]
      %v1953 = vld [vmem:[#allocation4 + $0x148] sm:$0xff]
      %v1954 = vld [vmem:[#allocation4 + $0x150] sm:$0xff]
      %v1955 = vld [vmem:[#allocation4 + $0x158] sm:$0xff]
      %v1956 = vld [vmem:[#allocation4 + $0x160] sm:$0xff]
      %v1957 = vld [vmem:[#allocation4 + $0x168] sm:$0xff]
      %v1958 = vld [vmem:[#allocation4 + $0x170] sm:$0xff]
      %v1959 = vld [vmem:[#allocation4 + $0x178] sm:$0xff]
      %v1960 = vld [vmem:[#allocation4 + $0x180] sm:$0xff]
      %v1961 = vld [vmem:[#allocation4 + $0x188] sm:$0xff]
      %v1962 = vld [vmem:[#allocation4 + $0x190] sm:$0xff]
      %v1963 = vld [vmem:[#allocation4 + $0x198] sm:$0xff]
      %v1964 = vld [vmem:[#allocation4 + $0x1a0] sm:$0xff]
      %v1965 = vld [vmem:[#allocation4 + $0x1a8] sm:$0xff]
      %v1966 = vpack.c.bf16 %v1913, %v1912
      %v1967 = vpack.c.bf16 %v1915, %v1914
      %v1968 = vpack.c.bf16 %v1917, %v1916
      %v1969 = vpack.c.bf16 %v1919, %v1918
      %v1970 = vpack.c.bf16 %v1921, %v1920
      %v1971 = vpack.c.bf16 %v1923, %v1922
      %v1972 = vpack.c.bf16 %v1925, %v1924
      %v1973 = vpack.c.bf16 %v1927, %v1926
      %v1974 = vpack.c.bf16 %v1929, %v1928
      %v1975 = vpack.c.bf16 %v1931, %v1930
      %v1976 = vpack.c.bf16 %v1933, %v1932
      %v1977 = vpack.c.bf16 %v1935, %v1934
      %v1978 = vpack.c.bf16 %v1937, %v1936
      %v1979 = vpack.c.bf16 %v1939, %v1938
      %v1980 = vpack.c.bf16 %v1941, %v1940
      %v1981 = vpack.c.bf16 %v1943, %v1942
      %v1982 = vpack.c.bf16 %v1945, %v1944
      %v1983 = vpack.c.bf16 %v1947, %v1946
      %v1984 = vpack.c.bf16 %v1949, %v1948
      %v1985 = vpack.c.bf16 %v1951, %v1950
      %v1986 = vpack.c.bf16 %v1953, %v1952
      %v1987 = vpack.c.bf16 %v1955, %v1954
      %v1988 = vpack.c.bf16 %v1957, %v1956
      %v1989 = vpack.c.bf16 %v1959, %v1958
      %v1990 = vpack.c.bf16 %v1961, %v1960
      %v1991 = vpack.c.bf16 %v1963, %v1962
      %v1992 = vpack.c.bf16 %v1965, %v1964
      %v1993 = vld [vmem:[%s4] sm:$0xf]
      %v1994 = vld [vmem:[%s4 + $0x4] sm:$0xf]
      %v1995 = vld [vmem:[%s4 + $0x8] sm:$0xf]
      %v1996 = vld [vmem:[%s4 + $0xc] sm:$0xf]
      %v1997 = vld [vmem:[%s4 + $0x10] sm:$0xf]
      %v1998 = vld [vmem:[%s4 + $0x14] sm:$0xf]
      %v1999 = vld [vmem:[%s4 + $0x18] sm:$0xf]
      %v2000 = vld [vmem:[%s4 + $0x1c] sm:$0xf]
      %v2001 = vld [vmem:[%s4 + $0x20] sm:$0xf]
      %v2002 = vld [vmem:[%s4 + $0x24] sm:$0xf]
      %v2003 = vld [vmem:[%s4 + $0x28] sm:$0xf]
      %v2004 = vld [vmem:[%s4 + $0x2c] sm:$0xf]
      %v2017 = vunpack.c.l.b16 %v1993
      %v2018 = vunpack.c.l.b16 %v1994
      %v2019 = vunpack.c.l.b16 %v1995
      %v2020 = vunpack.c.l.b16 %v1996
      %v2021 = vunpack.c.l.b16 %v1997
      %v2022 = vunpack.c.l.b16 %v1998
      %v2023 = vunpack.c.l.b16 %v1999
      %v2024 = vunpack.c.l.b16 %v2000
      %v2025 = vunpack.c.l.b16 %v2001
      %v2026 = vunpack.c.l.b16 %v2002
      %v2027 = vunpack.c.l.b16 %v2003
      %v2028 = vunpack.c.l.b16 %v2004
      %v2029 = vpack.c.b16 %v2018, %v2017
      %v2030 = vpack.c.b16 %v2020, %v2019
      %v2031 = vpack.c.b16 %v2022, %v2021
      %v2032 = vpack.c.b16 %v2024, %v2023
      %v2033 = vpack.c.b16 %v2026, %v2025
      %v2034 = vpack.c.b16 %v2028, %v2027
      %v2042 = vsel %vm267, %v1966, 0
      %v2045 = vsel %vm267, %v1967, 0
      %v2048 = vsel %vm267, %v1968, 0
      %v2051 = vsel %vm267, %v1969, 0
      %v2054 = vsel %vm267, %v1970, 0
      %v2057 = vsel %vm267, %v1971, 0
      %v2060 = vsel %vm267, %v1972, 0
      %v2063 = vsel %vm267, %v1973, 0
      %v2066 = vsel %vm267, %v1974, 0
      %v2069 = vsel %vm267, %v1975, 0
      %v2072 = vsel %vm267, %v1976, 0
      %v2075 = vsel %vm267, %v1977, 0
      %v2078 = vsel %vm267, %v1978, 0
      %v2081 = vsel %vm267, %v1979, 0
      %v2084 = vsel %vm267, %v1980, 0
      %v2087 = vsel %vm267, %v1981, 0
      %v2090 = vsel %vm267, %v1982, 0
      %v2093 = vsel %vm267, %v1983, 0
      %v2096 = vsel %vm267, %v1984, 0
      %v2099 = vsel %vm267, %v1985, 0
      %v2102 = vsel %vm267, %v1986, 0
      %v2105 = vsel %vm267, %v1987, 0
      %v2108 = vsel %vm267, %v1988, 0
      %v2111 = vsel %vm267, %v1989, 0
      %v2114 = vsel %vm267, %v1990, 0
      %v2117 = vsel %vm267, %v1991, 0
      %v2120 = vsel %vm267, %v1992, 0
      %2122 = vmatprep.subr.bf16.mxu0 0
      %2123 = vmatpush1.bf16.msra.mxu0 0
      %2124 = vmatprep.subr.bf16.mxu0 0
      %2125 = vmatpush1.bf16.msra.mxu0 0
      %2126 = vmatprep.subr.bf16.mxu0 0
      %2127 = vmatpush1.bf16.msra.mxu0 %v2034
      %2128 = vmatprep.subr.bf16.mxu0 0
      %2129 = vmatpush1.bf16.msra.mxu0 %v2033
      %2130 = vmatprep.subr.bf16.mxu0 0
      %2131 = vmatpush1.bf16.msra.mxu0 %v2032
      %2132 = vmatprep.subr.bf16.mxu0 0
      %2133 = vmatpush1.bf16.msra.mxu0 %v2031
      %2134 = vmatprep.subr.bf16.mxu0 0
      %2135 = vmatpush1.bf16.msra.mxu0 %v2030
      %2136 = vmatprep.subr.bf16.mxu0 0
      %2137 = vmatpush1.bf16.msra.mxu0 %v2029
      %2138 = vmatprep.subr.bf16.mxu0 0
      %2139 = vmatpush2.bf16.msra.mxu0 0
      %2140 = vmatprep.subr.bf16.mxu0 0
      %2141 = vmatpush2.bf16.msra.mxu0 0
      %2142 = vmatprep.subr.bf16.mxu0 0
      %2143 = vmatpush2.bf16.msra.mxu0 0
      %2144 = vmatprep.subr.bf16.mxu0 0
      %2145 = vmatpush2.bf16.msra.mxu0 0
      %2146 = vmatprep.subr.bf16.mxu0 0
      %2147 = vmatpush2.bf16.msra.mxu0 0
      %2148 = vmatprep.subr.bf16.mxu0 0
      %2149 = vmatpush2.bf16.msra.mxu0 0
      %2150 = vmatprep.subr.bf16.mxu0 0
      %2151 = vmatpush2.bf16.msra.mxu0 0
      %2152 = vmatprep.subr.bf16.mxu0 0
      %2153 = vmatpush2.bf16.msra.mxu0 0
      %2154 = vmatprep.mubr.bf16.mxu0 0
      %2155 = vmatmul.mubr.bf16.gmra.mxu0 %v2042
      %v2156 = vpop.f32.mrf.mxu0
      %v2157 = vadd.f32 0.0, %v2156
      %v2158 = vpop.f32.mrf.mxu0
      %v2159 = vpop.f32.mrf.mxu0
      %v2160 = vadd.f32 0.0, %v2159
      %v2161 = vpop.f32.mrf.mxu0
      %2162 = vmatprep.mubr.bf16.mxu0 0
      %2163 = vmatmul.mubr.bf16.gmra.mxu0 %v2045
      %v2164 = vpop.f32.mrf.mxu0
      %v2165 = vadd.f32 0.0, %v2164
      %v2166 = vpop.f32.mrf.mxu0
      %v2167 = vpop.f32.mrf.mxu0
      %v2168 = vadd.f32 0.0, %v2167
      %v2169 = vpop.f32.mrf.mxu0
      %2170 = vmatprep.mubr.bf16.mxu0 0
      %2171 = vmatmul.mubr.bf16.gmra.mxu0 %v2048
      %v2172 = vpop.f32.mrf.mxu0
      %v2173 = vadd.f32 0.0, %v2172
      %v2174 = vpop.f32.mrf.mxu0
      %v2175 = vpop.f32.mrf.mxu0
      %v2176 = vadd.f32 0.0, %v2175
      %v2177 = vpop.f32.mrf.mxu0
      %2178 = vmatprep.mubr.bf16.mxu0 0
      %2179 = vmatmul.mubr.bf16.gmra.mxu0 %v2051
      %v2180 = vpop.f32.mrf.mxu0
      %v2181 = vadd.f32 0.0, %v2180
      %v2182 = vpop.f32.mrf.mxu0
      %v2183 = vpop.f32.mrf.mxu0
      %v2184 = vadd.f32 0.0, %v2183
      %v2185 = vpop.f32.mrf.mxu0
      %2186 = vmatprep.mubr.bf16.mxu0 0
      %2187 = vmatmul.mubr.bf16.gmra.mxu0 %v2054
      %v2188 = vpop.f32.mrf.mxu0
      %v2189 = vadd.f32 0.0, %v2188
      %v2190 = vpop.f32.mrf.mxu0
      %v2191 = vpop.f32.mrf.mxu0
      %v2192 = vadd.f32 0.0, %v2191
      %v2193 = vpop.f32.mrf.mxu0
      %2194 = vmatprep.mubr.bf16.mxu0 0
      %2195 = vmatmul.mubr.bf16.gmra.mxu0 %v2057
      %v2196 = vpop.f32.mrf.mxu0
      %v2197 = vadd.f32 0.0, %v2196
      %v2198 = vpop.f32.mrf.mxu0
      %v2199 = vpop.f32.mrf.mxu0
      %v2200 = vadd.f32 0.0, %v2199
      %v2201 = vpop.f32.mrf.mxu0
      %2202 = vmatprep.mubr.bf16.mxu0 0
      %2203 = vmatmul.mubr.bf16.gmra.mxu0 %v2060
      %v2204 = vpop.f32.mrf.mxu0
      %v2205 = vadd.f32 0.0, %v2204
      %v2206 = vpop.f32.mrf.mxu0
      %v2207 = vpop.f32.mrf.mxu0
      %v2208 = vadd.f32 0.0, %v2207
      %v2209 = vpop.f32.mrf.mxu0
      %2210 = vmatprep.mubr.bf16.mxu0 0
      %2211 = vmatmul.mubr.bf16.gmra.mxu0 %v2063
      %v2212 = vpop.f32.mrf.mxu0
      %v2213 = vadd.f32 0.0, %v2212
      %v2214 = vpop.f32.mrf.mxu0
      %v2215 = vpop.f32.mrf.mxu0
      %v2216 = vadd.f32 0.0, %v2215
      %v2217 = vpop.f32.mrf.mxu0
      %2218 = vmatprep.mubr.bf16.mxu0 0
      %2219 = vmatmul.mubr.bf16.gmra.mxu0 %v2066
      %v2220 = vpop.f32.mrf.mxu0
      %v2221 = vadd.f32 0.0, %v2220
      %v2222 = vpop.f32.mrf.mxu0
      %v2223 = vpop.f32.mrf.mxu0
      %v2224 = vadd.f32 0.0, %v2223
      %v2225 = vpop.f32.mrf.mxu0
      %2226 = vmatprep.mubr.bf16.mxu0 0
      %2227 = vmatmul.mubr.bf16.gmra.mxu0 %v2069
      %v2228 = vpop.f32.mrf.mxu0
      %v2229 = vadd.f32 0.0, %v2228
      %v2230 = vpop.f32.mrf.mxu0
      %v2231 = vpop.f32.mrf.mxu0
      %v2232 = vadd.f32 0.0, %v2231
      %v2233 = vpop.f32.mrf.mxu0
      %2234 = vmatprep.mubr.bf16.mxu0 0
      %2235 = vmatmul.mubr.bf16.gmra.mxu0 %v2072
      %v2236 = vpop.f32.mrf.mxu0
      %v2237 = vadd.f32 0.0, %v2236
      %v2238 = vpop.f32.mrf.mxu0
      %v2239 = vpop.f32.mrf.mxu0
      %v2240 = vadd.f32 0.0, %v2239
      %v2241 = vpop.f32.mrf.mxu0
      %2242 = vmatprep.mubr.bf16.mxu0 0
      %2243 = vmatmul.mubr.bf16.gmra.mxu0 %v2075
      %v2244 = vpop.f32.mrf.mxu0
      %v2245 = vadd.f32 0.0, %v2244
      %v2246 = vpop.f32.mrf.mxu0
      %v2247 = vpop.f32.mrf.mxu0
      %v2248 = vadd.f32 0.0, %v2247
      %v2249 = vpop.f32.mrf.mxu0
      %2250 = vmatprep.mubr.bf16.mxu0 0
      %2251 = vmatmul.mubr.bf16.gmra.mxu0 %v2078
      %v2252 = vpop.f32.mrf.mxu0
      %v2253 = vadd.f32 0.0, %v2252
      %v2254 = vpop.f32.mrf.mxu0
      %v2255 = vpop.f32.mrf.mxu0
      %v2256 = vadd.f32 0.0, %v2255
      %v2257 = vpop.f32.mrf.mxu0
      %2258 = vmatprep.mubr.bf16.mxu0 0
      %2259 = vmatmul.mubr.bf16.gmra.mxu0 %v2081
      %v2260 = vpop.f32.mrf.mxu0
      %v2261 = vadd.f32 0.0, %v2260
      %v2262 = vpop.f32.mrf.mxu0
      %v2263 = vpop.f32.mrf.mxu0
      %v2264 = vadd.f32 0.0, %v2263
      %v2265 = vpop.f32.mrf.mxu0
      %2266 = vmatprep.mubr.bf16.mxu0 0
      %2267 = vmatmul.mubr.bf16.gmra.mxu0 %v2084
      %v2268 = vpop.f32.mrf.mxu0
      %v2269 = vadd.f32 0.0, %v2268
      %v2270 = vpop.f32.mrf.mxu0
      %v2271 = vpop.f32.mrf.mxu0
      %v2272 = vadd.f32 0.0, %v2271
      %v2273 = vpop.f32.mrf.mxu0
      %2274 = vmatprep.mubr.bf16.mxu0 0
      %2275 = vmatmul.mubr.bf16.gmra.mxu0 %v2087
      %v2276 = vpop.f32.mrf.mxu0
      %v2277 = vadd.f32 0.0, %v2276
      %v2278 = vpop.f32.mrf.mxu0
      %v2279 = vpop.f32.mrf.mxu0
      %v2280 = vadd.f32 0.0, %v2279
      %v2281 = vpop.f32.mrf.mxu0
      %2282 = vmatprep.mubr.bf16.mxu0 0
      %2283 = vmatmul.mubr.bf16.gmra.mxu0 %v2090
      %v2284 = vpop.f32.mrf.mxu0
      %v2285 = vadd.f32 0.0, %v2284
      %v2286 = vpop.f32.mrf.mxu0
      %v2287 = vpop.f32.mrf.mxu0
      %v2288 = vadd.f32 0.0, %v2287
      %v2289 = vpop.f32.mrf.mxu0
      %2290 = vmatprep.mubr.bf16.mxu0 0
      %2291 = vmatmul.mubr.bf16.gmra.mxu0 %v2093
      %v2292 = vpop.f32.mrf.mxu0
      %v2293 = vadd.f32 0.0, %v2292
      %v2294 = vpop.f32.mrf.mxu0
      %v2295 = vpop.f32.mrf.mxu0
      %v2296 = vadd.f32 0.0, %v2295
      %v2297 = vpop.f32.mrf.mxu0
      %2298 = vmatprep.mubr.bf16.mxu0 0
      %2299 = vmatmul.mubr.bf16.gmra.mxu0 %v2096
      %v2300 = vpop.f32.mrf.mxu0
      %v2301 = vadd.f32 0.0, %v2300
      %v2302 = vpop.f32.mrf.mxu0
      %v2303 = vpop.f32.mrf.mxu0
      %v2304 = vadd.f32 0.0, %v2303
      %v2305 = vpop.f32.mrf.mxu0
      %2306 = vmatprep.mubr.bf16.mxu0 0
      %2307 = vmatmul.mubr.bf16.gmra.mxu0 %v2099
      %v2308 = vpop.f32.mrf.mxu0
      %v2309 = vadd.f32 0.0, %v2308
      %v2310 = vpop.f32.mrf.mxu0
      %v2311 = vpop.f32.mrf.mxu0
      %v2312 = vadd.f32 0.0, %v2311
      %v2313 = vpop.f32.mrf.mxu0
      %2314 = vmatprep.mubr.bf16.mxu0 0
      %2315 = vmatmul.mubr.bf16.gmra.mxu0 %v2102
      %v2316 = vpop.f32.mrf.mxu0
      %v2317 = vadd.f32 0.0, %v2316
      %v2318 = vpop.f32.mrf.mxu0
      %v2319 = vpop.f32.mrf.mxu0
      %v2320 = vadd.f32 0.0, %v2319
      %v2321 = vpop.f32.mrf.mxu0
      %2322 = vmatprep.mubr.bf16.mxu0 0
      %2323 = vmatmul.mubr.bf16.gmra.mxu0 %v2105
      %v2324 = vpop.f32.mrf.mxu0
      %v2325 = vadd.f32 0.0, %v2324
      %v2326 = vpop.f32.mrf.mxu0
      %v2327 = vpop.f32.mrf.mxu0
      %v2328 = vadd.f32 0.0, %v2327
      %v2329 = vpop.f32.mrf.mxu0
      %2330 = vmatprep.mubr.bf16.mxu0 0
      %2331 = vmatmul.mubr.bf16.gmra.mxu0 %v2108
      %v2332 = vpop.f32.mrf.mxu0
      %v2333 = vadd.f32 0.0, %v2332
      %v2334 = vpop.f32.mrf.mxu0
      %v2335 = vpop.f32.mrf.mxu0
      %v2336 = vadd.f32 0.0, %v2335
      %v2337 = vpop.f32.mrf.mxu0
      %2338 = vmatprep.mubr.bf16.mxu0 0
      %2339 = vmatmul.mubr.bf16.gmra.mxu0 %v2111
      %v2340 = vpop.f32.mrf.mxu0
      %v2341 = vadd.f32 0.0, %v2340
      %v2342 = vpop.f32.mrf.mxu0
      %v2343 = vpop.f32.mrf.mxu0
      %v2344 = vadd.f32 0.0, %v2343
      %v2345 = vpop.f32.mrf.mxu0
      %2346 = vmatprep.mubr.bf16.mxu0 0
      %2347 = vmatmul.mubr.bf16.gmra.mxu0 %v2114
      %v2348 = vpop.f32.mrf.mxu0
      %v2349 = vadd.f32 0.0, %v2348
      %v2350 = vpop.f32.mrf.mxu0
      %v2351 = vpop.f32.mrf.mxu0
      %v2352 = vadd.f32 0.0, %v2351
      %v2353 = vpop.f32.mrf.mxu0
      %2354 = vmatprep.mubr.bf16.mxu0 0
      %2355 = vmatmul.mubr.bf16.gmra.mxu0 %v2117
      %v2356 = vpop.f32.mrf.mxu0
      %v2357 = vadd.f32 0.0, %v2356
      %v2358 = vpop.f32.mrf.mxu0
      %v2359 = vpop.f32.mrf.mxu0
      %v2360 = vadd.f32 0.0, %v2359
      %v2361 = vpop.f32.mrf.mxu0
      %2362 = vmatprep.mubr.bf16.mxu0 0
      %2363 = vmatmul.mubr.bf16.gmra.mxu0 %v2120
      %v2364 = vpop.f32.mrf.mxu0
      %v2365 = vadd.f32 0.0, %v2364
      %v2366 = vpop.f32.mrf.mxu0
      %v2367 = vpop.f32.mrf.mxu0
      %v2368 = vadd.f32 0.0, %v2367
      %v2369 = vpop.f32.mrf.mxu0
      %2370 = vdwg.mxu0
      %2371 = vst.msk [vmem:[#allocation3] sm:$0xff] %vm267, %v2157
      %2372 = vst.msk [vmem:[#allocation3 + $0x8] sm:$0xff] %vm267, %v2160
      %2373 = vst.msk [vmem:[#allocation3 + $0x10] sm:$0xff] %vm267, %v2165
      %2374 = vst.msk [vmem:[#allocation3 + $0x18] sm:$0xff] %vm267, %v2168
      %2375 = vst.msk [vmem:[#allocation3 + $0x20] sm:$0xff] %vm267, %v2173
      %2376 = vst.msk [vmem:[#allocation3 + $0x28] sm:$0xff] %vm267, %v2176
      %2377 = vst.msk [vmem:[#allocation3 + $0x30] sm:$0xff] %vm267, %v2181
      %2378 = vst.msk [vmem:[#allocation3 + $0x38] sm:$0xff] %vm267, %v2184
      %2379 = vst.msk [vmem:[#allocation3 + $0x40] sm:$0xff] %vm267, %v2189
      %2380 = vst.msk [vmem:[#allocation3 + $0x48] sm:$0xff] %vm267, %v2192
      %2381 = vst.msk [vmem:[#allocation3 + $0x50] sm:$0xff] %vm267, %v2197
      %2382 = vst.msk [vmem:[#allocation3 + $0x58] sm:$0xff] %vm267, %v2200
      %2383 = vst.msk [vmem:[#allocation3 + $0x60] sm:$0xff] %vm267, %v2205
      %2384 = vst.msk [vmem:[#allocation3 + $0x68] sm:$0xff] %vm267, %v2208
      %2385 = vst.msk [vmem:[#allocation3 + $0x70] sm:$0xff] %vm267, %v2213
      %2386 = vst.msk [vmem:[#allocation3 + $0x78] sm:$0xff] %vm267, %v2216
      %2387 = vst.msk [vmem:[#allocation3 + $0x80] sm:$0xff] %vm267, %v2221
      %2388 = vst.msk [vmem:[#allocation3 + $0x88] sm:$0xff] %vm267, %v2224
      %2389 = vst.msk [vmem:[#allocation3 + $0x90] sm:$0xff] %vm267, %v2229
      %2390 = vst.msk [vmem:[#allocation3 + $0x98] sm:$0xff] %vm267, %v2232
      %2391 = vst.msk [vmem:[#allocation3 + $0xa0] sm:$0xff] %vm267, %v2237
      %2392 = vst.msk [vmem:[#allocation3 + $0xa8] sm:$0xff] %vm267, %v2240
      %2393 = vst.msk [vmem:[#allocation3 + $0xb0] sm:$0xff] %vm267, %v2245
      %2394 = vst.msk [vmem:[#allocation3 + $0xb8] sm:$0xff] %vm267, %v2248
      %2395 = vst.msk [vmem:[#allocation3 + $0xc0] sm:$0xff] %vm267, %v2253
      %2396 = vst.msk [vmem:[#allocation3 + $0xc8] sm:$0xff] %vm267, %v2256
      %2397 = vst.msk [vmem:[#allocation3 + $0xd0] sm:$0xff] %vm267, %v2261
      %2398 = vst.msk [vmem:[#allocation3 + $0xd8] sm:$0xff] %vm267, %v2264
      %2399 = vst.msk [vmem:[#allocation3 + $0xe0] sm:$0xff] %vm267, %v2269
      %2400 = vst.msk [vmem:[#allocation3 + $0xe8] sm:$0xff] %vm267, %v2272
      %2401 = vst.msk [vmem:[#allocation3 + $0xf0] sm:$0xff] %vm267, %v2277
      %2402 = vst.msk [vmem:[#allocation3 + $0xf8] sm:$0xff] %vm267, %v2280
      %2403 = vst.msk [vmem:[#allocation3 + $0x100] sm:$0xff] %vm267, %v2285
      %2404 = vst.msk [vmem:[#allocation3 + $0x108] sm:$0xff] %vm267, %v2288
      %2405 = vst.msk [vmem:[#allocation3 + $0x110] sm:$0xff] %vm267, %v2293
      %2406 = vst.msk [vmem:[#allocation3 + $0x118] sm:$0xff] %vm267, %v2296
      %2407 = vst.msk [vmem:[#allocation3 + $0x120] sm:$0xff] %vm267, %v2301
      %2408 = vst.msk [vmem:[#allocation3 + $0x128] sm:$0xff] %vm267, %v2304
      %2409 = vst.msk [vmem:[#allocation3 + $0x130] sm:$0xff] %vm267, %v2309
      %2410 = vst.msk [vmem:[#allocation3 + $0x138] sm:$0xff] %vm267, %v2312
      %2411 = vst.msk [vmem:[#allocation3 + $0x140] sm:$0xff] %vm267, %v2317
      %2412 = vst.msk [vmem:[#allocation3 + $0x148] sm:$0xff] %vm267, %v2320
      %2413 = vst.msk [vmem:[#allocation3 + $0x150] sm:$0xff] %vm267, %v2325
      %2414 = vst.msk [vmem:[#allocation3 + $0x158] sm:$0xff] %vm267, %v2328
      %2415 = vst.msk [vmem:[#allocation3 + $0x160] sm:$0xff] %vm267, %v2333
      %2416 = vst.msk [vmem:[#allocation3 + $0x168] sm:$0xff] %vm267, %v2336
      %2417 = vst.msk [vmem:[#allocation3 + $0x170] sm:$0xff] %vm267, %v2341
      %2418 = vst.msk [vmem:[#allocation3 + $0x178] sm:$0xff] %vm267, %v2344
      %2419 = vst.msk [vmem:[#allocation3 + $0x180] sm:$0xff] %vm267, %v2349
      %2420 = vst.msk [vmem:[#allocation3 + $0x188] sm:$0xff] %vm267, %v2352
      %2421 = vst.msk [vmem:[#allocation3 + $0x190] sm:$0xff] %vm267, %v2357
      %2422 = vst.msk [vmem:[#allocation3 + $0x198] sm:$0xff] %vm267, %v2360
      %2423 = vst.msk [vmem:[#allocation3 + $0x1a0] sm:$0xff] %vm267, %v2365
      %2424 = vst.msk [vmem:[#allocation3 + $0x1a8] sm:$0xff] %vm267, %v2368
      %v2425 = vld [vmem:[%s5] sm:$0x1]
      %v2426 = vld [vmem:[#allocation3] sm:$0xff]
      %v2427 = vld [vmem:[#allocation3 + $0x8] sm:$0xff]
      %v2428 = vld [vmem:[#allocation3 + $0x18] sm:$0xff]
      %v2429 = vld [vmem:[#allocation3 + $0x20] sm:$0xff]
      %v2430 = vld [vmem:[#allocation3 + $0x30] sm:$0xff]
      %v2431 = vld [vmem:[#allocation3 + $0x38] sm:$0xff]
      %2436 = vrot.lane.b32.xlu0 %v2428, 96
      %v2437 = vpop.permute.xlu0 %2436
      %2438 = vrot.lane.b32.xlu0 %v2429, 96
      %v2439 = vpop.permute.xlu0 %2438
      %2440 = vrot.lane.b32.xlu0 %v2430, 96
      %v2441 = vpop.permute.xlu0 %2440
      %2442 = vrot.lane.b32.xlu0 %v2431, 96
      %v2443 = vpop.permute.xlu0 %2442
      %v2448 = vadd.f32 %v2426, %v2437
      %v2449 = vadd.f32 %v2427, %v2439
      %v2450 = vadd.f32 %v2428, %v2441
      %v2451 = vadd.f32 %v2429, %v2443
      %v2452 = vld [vmem:[#allocation3 + $0x48] sm:$0xff]
      %v2453 = vld [vmem:[#allocation3 + $0x50] sm:$0xff]
      %2456 = vrot.lane.b32.xlu0 %v2430, 64
      %v2457 = vpop.permute.xlu0 %2456
      %2458 = vrot.lane.b32.xlu0 %v2431, 64
      %v2459 = vpop.permute.xlu0 %2458
      %2460 = vrot.lane.b32.xlu0 %v2452, 64
      %v2461 = vpop.permute.xlu0 %2460
      %2462 = vrot.lane.b32.xlu0 %v2453, 64
      %v2463 = vpop.permute.xlu0 %2462
      %v2468 = vadd.f32 %v2448, %v2457
      %v2469 = vadd.f32 %v2449, %v2459
      %v2470 = vadd.f32 %v2450, %v2461
      %v2471 = vadd.f32 %v2451, %v2463
      %v2472 = vld [vmem:[#allocation4 + $0x18] sm:$0xff]
      %v2473 = vld [vmem:[#allocation4 + $0x20] sm:$0xff]
      %v2474 = vld [vmem:[#allocation4 + $0x30] sm:$0xff]
      %v2475 = vld [vmem:[#allocation4 + $0x38] sm:$0xff]
      %v2477 = vlaneseq
      %v2478 = vshrl.u32 %v2477, 7
      %v2479 = vsub.s32 0, %v2478
      %v2480 = vrot.slane %v2425, %v2479
      %v2482 = vadd.f32 %v2468, %v2480
      %v2483 = vadd.f32 %v2469, %v2480
      %v2484 = vadd.f32 %v2470, %v2480
      %v2485 = vadd.f32 %v2471, %v2480
      %2490 = vrot.lane.b32.xlu0 %v2472, 96
      %v2491 = vpop.permute.xlu0 %2490
      %2492 = vrot.lane.b32.xlu0 %v2473, 96
      %v2493 = vpop.permute.xlu0 %2492
      %2494 = vrot.lane.b32.xlu0 %v2474, 96
      %v2495 = vpop.permute.xlu0 %2494
      %2496 = vrot.lane.b32.xlu0 %v2475, 96
      %v2497 = vpop.permute.xlu0 %2496
      %v2502 = vadd.f32 %v2482, %v2491
      %v2503 = vadd.f32 %v2483, %v2493
      %v2504 = vadd.f32 %v2484, %v2495
      %v2505 = vadd.f32 %v2485, %v2497
      %v2506 = vsub.f32 0.0, %v2502
      %v2507 = vsub.f32 0.0, %v2503
      %v2508 = vsub.f32 0.0, %v2504
      %v2509 = vsub.f32 0.0, %v2505
      %v2510 = vmul.f32 %v2506, 1.442695
      %v2511 = vpow.pop %v2510
      %v2512 = vmul.f32 %v2507, 1.442695
      %v2513 = vpow.pop %v2512
      %v2514 = vmul.f32 %v2508, 1.442695
      %v2515 = vpow.pop %v2514
      %v2516 = vmul.f32 %v2509, 1.442695
      %v2517 = vpow.pop %v2516
      %v2518 = vadd.f32 %v2511, 1.0
      %v2519 = vadd.f32 %v2513, 1.0
      %v2520 = vadd.f32 %v2515, 1.0
      %v2521 = vadd.f32 %v2517, 1.0
      %v2522 = vrcp.pop %v2518
      %v2523 = vrcp.pop %v2519
      %v2524 = vrcp.pop %v2520
      %v2525 = vrcp.pop %v2521
      %v2526 = vmul.f32 %v2502, %v2522
      %v2527 = vmul.f32 %v2503, %v2523
      %v2528 = vmul.f32 %v2504, %v2524
      %v2529 = vmul.f32 %v2505, %v2525
      %v2530 = vmax.f32 %v2526, %v2528
      %v2531 = vmax.f32 %v2527, %v2529
      %2532 = vst.msk [vmem:[%s265] sm:$0xff] %vm766, %v2530
      %2533 = vst.msk [vmem:[%s265 + $0x8] sm:$0xff] %vm766, %v2531
      %v2534 = vld [vmem:[#allocation3 + $0x30] sm:$0xff]
      %v2535 = vld [vmem:[#allocation3 + $0x38] sm:$0xff]
      %v2536 = vld [vmem:[#allocation3 + $0x48] sm:$0xff]
      %v2537 = vld [vmem:[#allocation3 + $0x50] sm:$0xff]
      %v2538 = vld [vmem:[#allocation3 + $0x60] sm:$0xff]
      %v2539 = vld [vmem:[#allocation3 + $0x68] sm:$0xff]
      %2544 = vrot.lane.b32.xlu0 %v2536, 96
      %v2545 = vpop.permute.xlu0 %2544
      %2546 = vrot.lane.b32.xlu0 %v2537, 96
      %v2547 = vpop.permute.xlu0 %2546
      %2548 = vrot.lane.b32.xlu0 %v2538, 96
      %v2549 = vpop.permute.xlu0 %2548
      %2550 = vrot.lane.b32.xlu0 %v2539, 96
      %v2551 = vpop.permute.xlu0 %2550
      %v2556 = vadd.f32 %v2534, %v2545
      %v2557 = vadd.f32 %v2535, %v2547
      %v2558 = vadd.f32 %v2536, %v2549
      %v2559 = vadd.f32 %v2537, %v2551
      %v2560 = vld [vmem:[#allocation3 + $0x78] sm:$0xff]
      %v2561 = vld [vmem:[#allocation3 + $0x80] sm:$0xff]
      %2564 = vrot.lane.b32.xlu0 %v2538, 64
      %v2565 = vpop.permute.xlu0 %2564
      %2566 = vrot.lane.b32.xlu0 %v2539, 64
      %v2567 = vpop.permute.xlu0 %2566
      %2568 = vrot.lane.b32.xlu0 %v2560, 64
      %v2569 = vpop.permute.xlu0 %2568
      %2570 = vrot.lane.b32.xlu0 %v2561, 64
      %v2571 = vpop.permute.xlu0 %2570
      %v2576 = vadd.f32 %v2556, %v2565
      %v2577 = vadd.f32 %v2557, %v2567
      %v2578 = vadd.f32 %v2558, %v2569
      %v2579 = vadd.f32 %v2559, %v2571
      %v2580 = vld [vmem:[#allocation4 + $0x48] sm:$0xff]
      %v2581 = vld [vmem:[#allocation4 + $0x50] sm:$0xff]
      %v2582 = vld [vmem:[#allocation4 + $0x60] sm:$0xff]
      %v2583 = vld [vmem:[#allocation4 + $0x68] sm:$0xff]
      %v2584 = vadd.f32 %v2576, %v2480
      %v2585 = vadd.f32 %v2577, %v2480
      %v2586 = vadd.f32 %v2578, %v2480
      %v2587 = vadd.f32 %v2579, %v2480
      %2592 = vrot.lane.b32.xlu0 %v2580, 96
      %v2593 = vpop.permute.xlu0 %2592
      %2594 = vrot.lane.b32.xlu0 %v2581, 96
      %v2595 = vpop.permute.xlu0 %2594
      %2596 = vrot.lane.b32.xlu0 %v2582, 96
      %v2597 = vpop.permute.xlu0 %2596
      %2598 = vrot.lane.b32.xlu0 %v2583, 96
      %v2599 = vpop.permute.xlu0 %2598
      %v2604 = vadd.f32 %v2584, %v2593
      %v2605 = vadd.f32 %v2585, %v2595
      %v2606 = vadd.f32 %v2586, %v2597
      %v2607 = vadd.f32 %v2587, %v2599
      %v2608 = vsub.f32 0.0, %v2604
      %v2609 = vsub.f32 0.0, %v2605
      %v2610 = vsub.f32 0.0, %v2606
      %v2611 = vsub.f32 0.0, %v2607
      %v2612 = vmul.f32 %v2608, 1.442695
      %v2613 = vpow.pop %v2612
      %v2614 = vmul.f32 %v2609, 1.442695
      %v2615 = vpow.pop %v2614
      %v2616 = vmul.f32 %v2610, 1.442695
      %v2617 = vpow.pop %v2616
      %v2618 = vmul.f32 %v2611, 1.442695
      %v2619 = vpow.pop %v2618
      %v2620 = vadd.f32 %v2613, 1.0
      %v2621 = vadd.f32 %v2615, 1.0
      %v2622 = vadd.f32 %v2617, 1.0
      %v2623 = vadd.f32 %v2619, 1.0
      %v2624 = vrcp.pop %v2620
      %v2625 = vrcp.pop %v2621
      %v2626 = vrcp.pop %v2622
      %v2627 = vrcp.pop %v2623
      %v2628 = vmul.f32 %v2604, %v2624
      %v2629 = vmul.f32 %v2605, %v2625
      %v2630 = vmul.f32 %v2606, %v2626
      %v2631 = vmul.f32 %v2607, %v2627
      %v2632 = vmax.f32 %v2628, %v2630
      %v2633 = vmax.f32 %v2629, %v2631
      %2634 = vst.msk [vmem:[%s265 + $0x10] sm:$0xff] %vm766, %v2632
      %2635 = vst.msk [vmem:[%s265 + $0x18] sm:$0xff] %vm766, %v2633
      %v2636 = vld [vmem:[#allocation3 + $0x60] sm:$0xff]
      %v2637 = vld [vmem:[#allocation3 + $0x68] sm:$0xff]
      %v2638 = vld [vmem:[#allocation3 + $0x78] sm:$0xff]
      %v2639 = vld [vmem:[#allocation3 + $0x80] sm:$0xff]
      %v2640 = vld [vmem:[#allocation3 + $0x90] sm:$0xff]
      %v2641 = vld [vmem:[#allocation3 + $0x98] sm:$0xff]
      %2646 = vrot.lane.b32.xlu0 %v2638, 96
      %v2647 = vpop.permute.xlu0 %2646
      %2648 = vrot.lane.b32.xlu0 %v2639, 96
      %v2649 = vpop.permute.xlu0 %2648
      %2650 = vrot.lane.b32.xlu0 %v2640, 96
      %v2651 = vpop.permute.xlu0 %2650
      %2652 = vrot.lane.b32.xlu0 %v2641, 96
      %v2653 = vpop.permute.xlu0 %2652
      %v2658 = vadd.f32 %v2636, %v2647
      %v2659 = vadd.f32 %v2637, %v2649
      %v2660 = vadd.f32 %v2638, %v2651
      %v2661 = vadd.f32 %v2639, %v2653
      %v2662 = vld [vmem:[#allocation3 + $0xa8] sm:$0xff]
      %v2663 = vld [vmem:[#allocation3 + $0xb0] sm:$0xff]
      %2666 = vrot.lane.b32.xlu0 %v2640, 64
      %v2667 = vpop.permute.xlu0 %2666
      %2668 = vrot.lane.b32.xlu0 %v2641, 64
      %v2669 = vpop.permute.xlu0 %2668
      %2670 = vrot.lane.b32.xlu0 %v2662, 64
      %v2671 = vpop.permute.xlu0 %2670
      %2672 = vrot.lane.b32.xlu0 %v2663, 64
      %v2673 = vpop.permute.xlu0 %2672
      %v2678 = vadd.f32 %v2658, %v2667
      %v2679 = vadd.f32 %v2659, %v2669
      %v2680 = vadd.f32 %v2660, %v2671
      %v2681 = vadd.f32 %v2661, %v2673
      %v2682 = vld [vmem:[#allocation4 + $0x78] sm:$0xff]
      %v2683 = vld [vmem:[#allocation4 + $0x80] sm:$0xff]
      %v2684 = vld [vmem:[#allocation4 + $0x90] sm:$0xff]
      %v2685 = vld [vmem:[#allocation4 + $0x98] sm:$0xff]
      %v2686 = vadd.f32 %v2678, %v2480
      %v2687 = vadd.f32 %v2679, %v2480
      %v2688 = vadd.f32 %v2680, %v2480
      %v2689 = vadd.f32 %v2681, %v2480
      %2694 = vrot.lane.b32.xlu0 %v2682, 96
      %v2695 = vpop.permute.xlu0 %2694
      %2696 = vrot.lane.b32.xlu0 %v2683, 96
      %v2697 = vpop.permute.xlu0 %2696
      %2698 = vrot.lane.b32.xlu0 %v2684, 96
      %v2699 = vpop.permute.xlu0 %2698
      %2700 = vrot.lane.b32.xlu0 %v2685, 96
      %v2701 = vpop.permute.xlu0 %2700
      %v2706 = vadd.f32 %v2686, %v2695
      %v2707 = vadd.f32 %v2687, %v2697
      %v2708 = vadd.f32 %v2688, %v2699
      %v2709 = vadd.f32 %v2689, %v2701
      %v2710 = vsub.f32 0.0, %v2706
      %v2711 = vsub.f32 0.0, %v2707
      %v2712 = vsub.f32 0.0, %v2708
      %v2713 = vsub.f32 0.0, %v2709
      %v2714 = vmul.f32 %v2710, 1.442695
      %v2715 = vpow.pop %v2714
      %v2716 = vmul.f32 %v2711, 1.442695
      %v2717 = vpow.pop %v2716
      %v2718 = vmul.f32 %v2712, 1.442695
      %v2719 = vpow.pop %v2718
      %v2720 = vmul.f32 %v2713, 1.442695
      %v2721 = vpow.pop %v2720
      %v2722 = vadd.f32 %v2715, 1.0
      %v2723 = vadd.f32 %v2717, 1.0
      %v2724 = vadd.f32 %v2719, 1.0
      %v2725 = vadd.f32 %v2721, 1.0
      %v2726 = vrcp.pop %v2722
      %v2727 = vrcp.pop %v2723
      %v2728 = vrcp.pop %v2724
      %v2729 = vrcp.pop %v2725
      %v2730 = vmul.f32 %v2706, %v2726
      %v2731 = vmul.f32 %v2707, %v2727
      %v2732 = vmul.f32 %v2708, %v2728
      %v2733 = vmul.f32 %v2709, %v2729
      %v2734 = vmax.f32 %v2730, %v2732
      %v2735 = vmax.f32 %v2731, %v2733
      %2736 = vst.msk [vmem:[%s265 + $0x20] sm:$0xff] %vm766, %v2734
      %2737 = vst.msk [vmem:[%s265 + $0x28] sm:$0xff] %vm766, %v2735
      %v2738 = vld [vmem:[#allocation3 + $0x90] sm:$0xff]
      %v2739 = vld [vmem:[#allocation3 + $0x98] sm:$0xff]
      %v2740 = vld [vmem:[#allocation3 + $0xa8] sm:$0xff]
      %v2741 = vld [vmem:[#allocation3 + $0xb0] sm:$0xff]
      %v2742 = vld [vmem:[#allocation3 + $0xc0] sm:$0xff]
      %v2743 = vld [vmem:[#allocation3 + $0xc8] sm:$0xff]
      %2748 = vrot.lane.b32.xlu0 %v2740, 96
      %v2749 = vpop.permute.xlu0 %2748
      %2750 = vrot.lane.b32.xlu0 %v2741, 96
      %v2751 = vpop.permute.xlu0 %2750
      %2752 = vrot.lane.b32.xlu0 %v2742, 96
      %v2753 = vpop.permute.xlu0 %2752
      %2754 = vrot.lane.b32.xlu0 %v2743, 96
      %v2755 = vpop.permute.xlu0 %2754
      %v2760 = vadd.f32 %v2738, %v2749
      %v2761 = vadd.f32 %v2739, %v2751
      %v2762 = vadd.f32 %v2740, %v2753
      %v2763 = vadd.f32 %v2741, %v2755
      %v2764 = vld [vmem:[#allocation3 + $0xd8] sm:$0xff]
      %v2765 = vld [vmem:[#allocation3 + $0xe0] sm:$0xff]
      %2768 = vrot.lane.b32.xlu0 %v2742, 64
      %v2769 = vpop.permute.xlu0 %2768
      %2770 = vrot.lane.b32.xlu0 %v2743, 64
      %v2771 = vpop.permute.xlu0 %2770
      %2772 = vrot.lane.b32.xlu0 %v2764, 64
      %v2773 = vpop.permute.xlu0 %2772
      %2774 = vrot.lane.b32.xlu0 %v2765, 64
      %v2775 = vpop.permute.xlu0 %2774
      %v2780 = vadd.f32 %v2760, %v2769
      %v2781 = vadd.f32 %v2761, %v2771
      %v2782 = vadd.f32 %v2762, %v2773
      %v2783 = vadd.f32 %v2763, %v2775
      %v2784 = vld [vmem:[#allocation4 + $0xa8] sm:$0xff]
      %v2785 = vld [vmem:[#allocation4 + $0xb0] sm:$0xff]
      %v2786 = vld [vmem:[#allocation4 + $0xc0] sm:$0xff]
      %v2787 = vld [vmem:[#allocation4 + $0xc8] sm:$0xff]
      %v2788 = vadd.f32 %v2780, %v2480
      %v2789 = vadd.f32 %v2781, %v2480
      %v2790 = vadd.f32 %v2782, %v2480
      %v2791 = vadd.f32 %v2783, %v2480
      %2796 = vrot.lane.b32.xlu0 %v2784, 96
      %v2797 = vpop.permute.xlu0 %2796
      %2798 = vrot.lane.b32.xlu0 %v2785, 96
      %v2799 = vpop.permute.xlu0 %2798
      %2800 = vrot.lane.b32.xlu0 %v2786, 96
      %v2801 = vpop.permute.xlu0 %2800
      %2802 = vrot.lane.b32.xlu0 %v2787, 96
      %v2803 = vpop.permute.xlu0 %2802
      %v2808 = vadd.f32 %v2788, %v2797
      %v2809 = vadd.f32 %v2789, %v2799
      %v2810 = vadd.f32 %v2790, %v2801
      %v2811 = vadd.f32 %v2791, %v2803
      %v2812 = vsub.f32 0.0, %v2808
      %v2813 = vsub.f32 0.0, %v2809
      %v2814 = vsub.f32 0.0, %v2810
      %v2815 = vsub.f32 0.0, %v2811
      %v2816 = vmul.f32 %v2812, 1.442695
      %v2817 = vpow.pop %v2816
      %v2818 = vmul.f32 %v2813, 1.442695
      %v2819 = vpow.pop %v2818
      %v2820 = vmul.f32 %v2814, 1.442695
      %v2821 = vpow.pop %v2820
      %v2822 = vmul.f32 %v2815, 1.442695
      %v2823 = vpow.pop %v2822
      %v2824 = vadd.f32 %v2817, 1.0
      %v2825 = vadd.f32 %v2819, 1.0
      %v2826 = vadd.f32 %v2821, 1.0
      %v2827 = vadd.f32 %v2823, 1.0
      %v2828 = vrcp.pop %v2824
      %v2829 = vrcp.pop %v2825
      %v2830 = vrcp.pop %v2826
      %v2831 = vrcp.pop %v2827
      %v2832 = vmul.f32 %v2808, %v2828
      %v2833 = vmul.f32 %v2809, %v2829
      %v2834 = vmul.f32 %v2810, %v2830
      %v2835 = vmul.f32 %v2811, %v2831
      %v2836 = vmax.f32 %v2832, %v2834
      %v2837 = vmax.f32 %v2833, %v2835
      %2838 = vst.msk [vmem:[%s265 + $0x30] sm:$0xff] %vm766, %v2836
      %2839 = vst.msk [vmem:[%s265 + $0x38] sm:$0xff] %vm766, %v2837
      %v2840 = vld [vmem:[#allocation3 + $0xc0] sm:$0xff]
      %v2841 = vld [vmem:[#allocation3 + $0xc8] sm:$0xff]
      %v2842 = vld [vmem:[#allocation3 + $0xd8] sm:$0xff]
      %v2843 = vld [vmem:[#allocation3 + $0xe0] sm:$0xff]
      %v2844 = vld [vmem:[#allocation3 + $0xf0] sm:$0xff]
      %v2845 = vld [vmem:[#allocation3 + $0xf8] sm:$0xff]
      %2850 = vrot.lane.b32.xlu0 %v2842, 96
      %v2851 = vpop.permute.xlu0 %2850
      %2852 = vrot.lane.b32.xlu0 %v2843, 96
      %v2853 = vpop.permute.xlu0 %2852
      %2854 = vrot.lane.b32.xlu0 %v2844, 96
      %v2855 = vpop.permute.xlu0 %2854
      %2856 = vrot.lane.b32.xlu0 %v2845, 96
      %v2857 = vpop.permute.xlu0 %2856
      %v2862 = vadd.f32 %v2840, %v2851
      %v2863 = vadd.f32 %v2841, %v2853
      %v2864 = vadd.f32 %v2842, %v2855
      %v2865 = vadd.f32 %v2843, %v2857
      %v2866 = vld [vmem:[#allocation3 + $0x108] sm:$0xff]
      %v2867 = vld [vmem:[#allocation3 + $0x110] sm:$0xff]
      %2870 = vrot.lane.b32.xlu0 %v2844, 64
      %v2871 = vpop.permute.xlu0 %2870
      %2872 = vrot.lane.b32.xlu0 %v2845, 64
      %v2873 = vpop.permute.xlu0 %2872
      %2874 = vrot.lane.b32.xlu0 %v2866, 64
      %v2875 = vpop.permute.xlu0 %2874
      %2876 = vrot.lane.b32.xlu0 %v2867, 64
      %v2877 = vpop.permute.xlu0 %2876
      %v2882 = vadd.f32 %v2862, %v2871
      %v2883 = vadd.f32 %v2863, %v2873
      %v2884 = vadd.f32 %v2864, %v2875
      %v2885 = vadd.f32 %v2865, %v2877
      %v2886 = vld [vmem:[#allocation4 + $0xd8] sm:$0xff]
      %v2887 = vld [vmem:[#allocation4 + $0xe0] sm:$0xff]
      %v2888 = vld [vmem:[#allocation4 + $0xf0] sm:$0xff]
      %v2889 = vld [vmem:[#allocation4 + $0xf8] sm:$0xff]
      %v2890 = vadd.f32 %v2882, %v2480
      %v2891 = vadd.f32 %v2883, %v2480
      %v2892 = vadd.f32 %v2884, %v2480
      %v2893 = vadd.f32 %v2885, %v2480
      %2898 = vrot.lane.b32.xlu0 %v2886, 96
      %v2899 = vpop.permute.xlu0 %2898
      %2900 = vrot.lane.b32.xlu0 %v2887, 96
      %v2901 = vpop.permute.xlu0 %2900
      %2902 = vrot.lane.b32.xlu0 %v2888, 96
      %v2903 = vpop.permute.xlu0 %2902
      %2904 = vrot.lane.b32.xlu0 %v2889, 96
      %v2905 = vpop.permute.xlu0 %2904
      %v2910 = vadd.f32 %v2890, %v2899
      %v2911 = vadd.f32 %v2891, %v2901
      %v2912 = vadd.f32 %v2892, %v2903
      %v2913 = vadd.f32 %v2893, %v2905
      %v2914 = vsub.f32 0.0, %v2910
      %v2915 = vsub.f32 0.0, %v2911
      %v2916 = vsub.f32 0.0, %v2912
      %v2917 = vsub.f32 0.0, %v2913
      %v2918 = vmul.f32 %v2914, 1.442695
      %v2919 = vpow.pop %v2918
      %v2920 = vmul.f32 %v2915, 1.442695
      %v2921 = vpow.pop %v2920
      %v2922 = vmul.f32 %v2916, 1.442695
      %v2923 = vpow.pop %v2922
      %v2924 = vmul.f32 %v2917, 1.442695
      %v2925 = vpow.pop %v2924
      %v2926 = vadd.f32 %v2919, 1.0
      %v2927 = vadd.f32 %v2921, 1.0
      %v2928 = vadd.f32 %v2923, 1.0
      %v2929 = vadd.f32 %v2925, 1.0
      %v2930 = vrcp.pop %v2926
      %v2931 = vrcp.pop %v2927
      %v2932 = vrcp.pop %v2928
      %v2933 = vrcp.pop %v2929
      %v2934 = vmul.f32 %v2910, %v2930
      %v2935 = vmul.f32 %v2911, %v2931
      %v2936 = vmul.f32 %v2912, %v2932
      %v2937 = vmul.f32 %v2913, %v2933
      %v2938 = vmax.f32 %v2934, %v2936
      %v2939 = vmax.f32 %v2935, %v2937
      %2940 = vst.msk [vmem:[%s265 + $0x40] sm:$0xff] %vm766, %v2938
      %2941 = vst.msk [vmem:[%s265 + $0x48] sm:$0xff] %vm766, %v2939
      %v2942 = vld [vmem:[#allocation3 + $0xf0] sm:$0xff]
      %v2943 = vld [vmem:[#allocation3 + $0xf8] sm:$0xff]
      %v2944 = vld [vmem:[#allocation3 + $0x108] sm:$0xff]
      %v2945 = vld [vmem:[#allocation3 + $0x110] sm:$0xff]
      %v2946 = vld [vmem:[#allocation3 + $0x120] sm:$0xff]
      %v2947 = vld [vmem:[#allocation3 + $0x128] sm:$0xff]
      %2952 = vrot.lane.b32.xlu0 %v2944, 96
      %v2953 = vpop.permute.xlu0 %2952
      %2954 = vrot.lane.b32.xlu0 %v2945, 96
      %v2955 = vpop.permute.xlu0 %2954
      %2956 = vrot.lane.b32.xlu0 %v2946, 96
      %v2957 = vpop.permute.xlu0 %2956
      %2958 = vrot.lane.b32.xlu0 %v2947, 96
      %v2959 = vpop.permute.xlu0 %2958
      %v2964 = vadd.f32 %v2942, %v2953
      %v2965 = vadd.f32 %v2943, %v2955
      %v2966 = vadd.f32 %v2944, %v2957
      %v2967 = vadd.f32 %v2945, %v2959
      %v2968 = vld [vmem:[#allocation3 + $0x138] sm:$0xff]
      %v2969 = vld [vmem:[#allocation3 + $0x140] sm:$0xff]
      %2972 = vrot.lane.b32.xlu0 %v2946, 64
      %v2973 = vpop.permute.xlu0 %2972
      %2974 = vrot.lane.b32.xlu0 %v2947, 64
      %v2975 = vpop.permute.xlu0 %2974
      %2976 = vrot.lane.b32.xlu0 %v2968, 64
      %v2977 = vpop.permute.xlu0 %2976
      %2978 = vrot.lane.b32.xlu0 %v2969, 64
      %v2979 = vpop.permute.xlu0 %2978
      %v2984 = vadd.f32 %v2964, %v2973
      %v2985 = vadd.f32 %v2965, %v2975
      %v2986 = vadd.f32 %v2966, %v2977
      %v2987 = vadd.f32 %v2967, %v2979
      %v2988 = vld [vmem:[#allocation4 + $0x108] sm:$0xff]
      %v2989 = vld [vmem:[#allocation4 + $0x110] sm:$0xff]
      %v2990 = vld [vmem:[#allocation4 + $0x120] sm:$0xff]
      %v2991 = vld [vmem:[#allocation4 + $0x128] sm:$0xff]
      %v2992 = vadd.f32 %v2984, %v2480
      %v2993 = vadd.f32 %v2985, %v2480
      %v2994 = vadd.f32 %v2986, %v2480
      %v2995 = vadd.f32 %v2987, %v2480
      %3000 = vrot.lane.b32.xlu0 %v2988, 96
      %v3001 = vpop.permute.xlu0 %3000
      %3002 = vrot.lane.b32.xlu0 %v2989, 96
      %v3003 = vpop.permute.xlu0 %3002
      %3004 = vrot.lane.b32.xlu0 %v2990, 96
      %v3005 = vpop.permute.xlu0 %3004
      %3006 = vrot.lane.b32.xlu0 %v2991, 96
      %v3007 = vpop.permute.xlu0 %3006
      %v3012 = vadd.f32 %v2992, %v3001
      %v3013 = vadd.f32 %v2993, %v3003
      %v3014 = vadd.f32 %v2994, %v3005
      %v3015 = vadd.f32 %v2995, %v3007
      %v3016 = vsub.f32 0.0, %v3012
      %v3017 = vsub.f32 0.0, %v3013
      %v3018 = vsub.f32 0.0, %v3014
      %v3019 = vsub.f32 0.0, %v3015
      %v3020 = vmul.f32 %v3016, 1.442695
      %v3021 = vpow.pop %v3020
      %v3022 = vmul.f32 %v3017, 1.442695
      %v3023 = vpow.pop %v3022
      %v3024 = vmul.f32 %v3018, 1.442695
      %v3025 = vpow.pop %v3024
      %v3026 = vmul.f32 %v3019, 1.442695
      %v3027 = vpow.pop %v3026
      %v3028 = vadd.f32 %v3021, 1.0
      %v3029 = vadd.f32 %v3023, 1.0
      %v3030 = vadd.f32 %v3025, 1.0
      %v3031 = vadd.f32 %v3027, 1.0
      %v3032 = vrcp.pop %v3028
      %v3033 = vrcp.pop %v3029
      %v3034 = vrcp.pop %v3030
      %v3035 = vrcp.pop %v3031
      %v3036 = vmul.f32 %v3012, %v3032
      %v3037 = vmul.f32 %v3013, %v3033
      %v3038 = vmul.f32 %v3014, %v3034
      %v3039 = vmul.f32 %v3015, %v3035
      %v3040 = vmax.f32 %v3036, %v3038
      %v3041 = vmax.f32 %v3037, %v3039
      %3042 = vst.msk [vmem:[%s265 + $0x50] sm:$0xff] %vm766, %v3040
      %3043 = vst.msk [vmem:[%s265 + $0x58] sm:$0xff] %vm766, %v3041
      %v3044 = vld [vmem:[#allocation3 + $0x120] sm:$0xff]
      %v3045 = vld [vmem:[#allocation3 + $0x128] sm:$0xff]
      %v3046 = vld [vmem:[#allocation3 + $0x138] sm:$0xff]
      %v3047 = vld [vmem:[#allocation3 + $0x140] sm:$0xff]
      %v3048 = vld [vmem:[#allocation3 + $0x150] sm:$0xff]
      %v3049 = vld [vmem:[#allocation3 + $0x158] sm:$0xff]
      %3054 = vrot.lane.b32.xlu0 %v3046, 96
      %v3055 = vpop.permute.xlu0 %3054
      %3056 = vrot.lane.b32.xlu0 %v3047, 96
      %v3057 = vpop.permute.xlu0 %3056
      %3058 = vrot.lane.b32.xlu0 %v3048, 96
      %v3059 = vpop.permute.xlu0 %3058
      %3060 = vrot.lane.b32.xlu0 %v3049, 96
      %v3061 = vpop.permute.xlu0 %3060
      %v3066 = vadd.f32 %v3044, %v3055
      %v3067 = vadd.f32 %v3045, %v3057
      %v3068 = vadd.f32 %v3046, %v3059
      %v3069 = vadd.f32 %v3047, %v3061
      %v3070 = vld [vmem:[#allocation3 + $0x168] sm:$0xff]
      %v3071 = vld [vmem:[#allocation3 + $0x170] sm:$0xff]
      %3074 = vrot.lane.b32.xlu0 %v3048, 64
      %v3075 = vpop.permute.xlu0 %3074
      %3076 = vrot.lane.b32.xlu0 %v3049, 64
      %v3077 = vpop.permute.xlu0 %3076
      %3078 = vrot.lane.b32.xlu0 %v3070, 64
      %v3079 = vpop.permute.xlu0 %3078
      %3080 = vrot.lane.b32.xlu0 %v3071, 64
      %v3081 = vpop.permute.xlu0 %3080
      %v3086 = vadd.f32 %v3066, %v3075
      %v3087 = vadd.f32 %v3067, %v3077
      %v3088 = vadd.f32 %v3068, %v3079
      %v3089 = vadd.f32 %v3069, %v3081
      %v3090 = vld [vmem:[#allocation4 + $0x138] sm:$0xff]
      %v3091 = vld [vmem:[#allocation4 + $0x140] sm:$0xff]
      %v3092 = vld [vmem:[#allocation4 + $0x150] sm:$0xff]
      %v3093 = vld [vmem:[#allocation4 + $0x158] sm:$0xff]
      %v3094 = vadd.f32 %v3086, %v2480
      %v3095 = vadd.f32 %v3087, %v2480
      %v3096 = vadd.f32 %v3088, %v2480
      %v3097 = vadd.f32 %v3089, %v2480
      %3102 = vrot.lane.b32.xlu0 %v3090, 96
      %v3103 = vpop.permute.xlu0 %3102
      %3104 = vrot.lane.b32.xlu0 %v3091, 96
      %v3105 = vpop.permute.xlu0 %3104
      %3106 = vrot.lane.b32.xlu0 %v3092, 96
      %v3107 = vpop.permute.xlu0 %3106
      %3108 = vrot.lane.b32.xlu0 %v3093, 96
      %v3109 = vpop.permute.xlu0 %3108
      %v3114 = vadd.f32 %v3094, %v3103
      %v3115 = vadd.f32 %v3095, %v3105
      %v3116 = vadd.f32 %v3096, %v3107
      %v3117 = vadd.f32 %v3097, %v3109
      %v3118 = vsub.f32 0.0, %v3114
      %v3119 = vsub.f32 0.0, %v3115
      %v3120 = vsub.f32 0.0, %v3116
      %v3121 = vsub.f32 0.0, %v3117
      %v3122 = vmul.f32 %v3118, 1.442695
      %v3123 = vpow.pop %v3122
      %v3124 = vmul.f32 %v3119, 1.442695
      %v3125 = vpow.pop %v3124
      %v3126 = vmul.f32 %v3120, 1.442695
      %v3127 = vpow.pop %v3126
      %v3128 = vmul.f32 %v3121, 1.442695
      %v3129 = vpow.pop %v3128
      %v3130 = vadd.f32 %v3123, 1.0
      %v3131 = vadd.f32 %v3125, 1.0
      %v3132 = vadd.f32 %v3127, 1.0
      %v3133 = vadd.f32 %v3129, 1.0
      %v3134 = vrcp.pop %v3130
      %v3135 = vrcp.pop %v3131
      %v3136 = vrcp.pop %v3132
      %v3137 = vrcp.pop %v3133
      %v3138 = vmul.f32 %v3114, %v3134
      %v3139 = vmul.f32 %v3115, %v3135
      %v3140 = vmul.f32 %v3116, %v3136
      %v3141 = vmul.f32 %v3117, %v3137
      %v3142 = vmax.f32 %v3138, %v3140
      %v3143 = vmax.f32 %v3139, %v3141
      %3144 = vst.msk [vmem:[%s265 + $0x60] sm:$0xff] %vm766, %v3142
      %3145 = vst.msk [vmem:[%s265 + $0x68] sm:$0xff] %vm766, %v3143
      %v3146 = vld [vmem:[#allocation3 + $0x150] sm:$0xff]
      %v3147 = vld [vmem:[#allocation3 + $0x158] sm:$0xff]
      %v3148 = vld [vmem:[#allocation3 + $0x168] sm:$0xff]
      %v3149 = vld [vmem:[#allocation3 + $0x170] sm:$0xff]
      %v3150 = vld [vmem:[#allocation3 + $0x180] sm:$0xff]
      %v3151 = vld [vmem:[#allocation3 + $0x188] sm:$0xff]
      %3156 = vrot.lane.b32.xlu0 %v3148, 96
      %v3157 = vpop.permute.xlu0 %3156
      %3158 = vrot.lane.b32.xlu0 %v3149, 96
      %v3159 = vpop.permute.xlu0 %3158
      %3160 = vrot.lane.b32.xlu0 %v3150, 96
      %v3161 = vpop.permute.xlu0 %3160
      %3162 = vrot.lane.b32.xlu0 %v3151, 96
      %v3163 = vpop.permute.xlu0 %3162
      %v3168 = vadd.f32 %v3146, %v3157
      %v3169 = vadd.f32 %v3147, %v3159
      %v3170 = vadd.f32 %v3148, %v3161
      %v3171 = vadd.f32 %v3149, %v3163
      %v3172 = vld [vmem:[#allocation3 + $0x198] sm:$0xff]
      %v3173 = vld [vmem:[#allocation3 + $0x1a0] sm:$0xff]
      %3176 = vrot.lane.b32.xlu0 %v3150, 64
      %v3177 = vpop.permute.xlu0 %3176
      %3178 = vrot.lane.b32.xlu0 %v3151, 64
      %v3179 = vpop.permute.xlu0 %3178
      %3180 = vrot.lane.b32.xlu0 %v3172, 64
      %v3181 = vpop.permute.xlu0 %3180
      %3182 = vrot.lane.b32.xlu0 %v3173, 64
      %v3183 = vpop.permute.xlu0 %3182
      %v3188 = vadd.f32 %v3168, %v3177
      %v3189 = vadd.f32 %v3169, %v3179
      %v3190 = vadd.f32 %v3170, %v3181
      %v3191 = vadd.f32 %v3171, %v3183
      %v3192 = vld [vmem:[#allocation4 + $0x168] sm:$0xff]
      %v3193 = vld [vmem:[#allocation4 + $0x170] sm:$0xff]
      %v3194 = vld [vmem:[#allocation4 + $0x180] sm:$0xff]
      %v3195 = vld [vmem:[#allocation4 + $0x188] sm:$0xff]
      %v3196 = vadd.f32 %v3188, %v2480
      %v3197 = vadd.f32 %v3189, %v2480
      %v3198 = vadd.f32 %v3190, %v2480
      %v3199 = vadd.f32 %v3191, %v2480
      %3204 = vrot.lane.b32.xlu0 %v3192, 96
      %v3205 = vpop.permute.xlu0 %3204
      %3206 = vrot.lane.b32.xlu0 %v3193, 96
      %v3207 = vpop.permute.xlu0 %3206
      %3208 = vrot.lane.b32.xlu0 %v3194, 96
      %v3209 = vpop.permute.xlu0 %3208
      %3210 = vrot.lane.b32.xlu0 %v3195, 96
      %v3211 = vpop.permute.xlu0 %3210
      %v3216 = vadd.f32 %v3196, %v3205
      %v3217 = vadd.f32 %v3197, %v3207
      %v3218 = vadd.f32 %v3198, %v3209
      %v3219 = vadd.f32 %v3199, %v3211
      %v3220 = vsub.f32 0.0, %v3216
      %v3221 = vsub.f32 0.0, %v3217
      %v3222 = vsub.f32 0.0, %v3218
      %v3223 = vsub.f32 0.0, %v3219
      %v3224 = vmul.f32 %v3220, 1.442695
      %v3225 = vpow.pop %v3224
      %v3226 = vmul.f32 %v3221, 1.442695
      %v3227 = vpow.pop %v3226
      %v3228 = vmul.f32 %v3222, 1.442695
      %v3229 = vpow.pop %v3228
      %v3230 = vmul.f32 %v3223, 1.442695
      %v3231 = vpow.pop %v3230
      %v3232 = vadd.f32 %v3225, 1.0
      %v3233 = vadd.f32 %v3227, 1.0
      %v3234 = vadd.f32 %v3229, 1.0
      %v3235 = vadd.f32 %v3231, 1.0
      %v3236 = vrcp.pop %v3232
      %v3237 = vrcp.pop %v3233
      %v3238 = vrcp.pop %v3234
      %v3239 = vrcp.pop %v3235
      %v3240 = vmul.f32 %v3216, %v3236
      %v3241 = vmul.f32 %v3217, %v3237
      %v3242 = vmul.f32 %v3218, %v3238
      %v3243 = vmul.f32 %v3219, %v3239
      %v3244 = vmax.f32 %v3240, %v3242
      %v3245 = vmax.f32 %v3241, %v3243
      %3246 = vst.msk [vmem:[%s265 + $0x70] sm:$0xff] %vm766, %v3244
      %3247 = vst.msk [vmem:[%s265 + $0x78] sm:$0xff] %vm766, %v3245
      %p3248 = scmp.lt.s32.totalorder %s17, 1
      %s3249 = scalar_select %p3248, %s17, 1
      %s3250 = smul.addr %s3249, 16
      %s3251 = smul.addr %s3250, 8
      %s3252 = scalar_lea.vmem %s6, %s3251
      // Predicated region
      $region45: #{tpu_custom_call.1} parent=43 // pred_check
        %p3253 = pneg %p171
      $region46: #{tpu_custom_call.1} parent=43 // pred_check_branch
        %3255 = sbr.rel (%p3253) target = $region48
      $region47: #{tpu_custom_call.1} parent=43 // pred_region
        _
      $region48: #{tpu_custom_call.1} parent=43 // pred_fallthru
        _
    $region44: #{tpu_custom_call.1} parent=5 // pred_fallthru
      _
    %p3256 = scmp.le.s32.totalorder 2, %s12
    // Predicated region
    $region49: #{tpu_custom_call.1} parent=5 // pred_check
      %p3257 = pneg %p3256
    $region50: #{tpu_custom_call.1} parent=5 // pred_check_branch
      %3259 = sbr.rel (%p3257) target = $region52
    $region51: #{tpu_custom_call.1} parent=5 // pred_region
      %s3260 = ssub.s32 %s12, 2
      // Predicated region
      $region53: #{tpu_custom_call.1} parent=51 // pred_check
        %p3261 = pneg %p177
      $region54: #{tpu_custom_call.1} parent=51 // pred_check_branch
        %3263 = sbr.rel (%p3261) target = $region56
      $region55: #{tpu_custom_call.1} parent=51 // pred_region
        %p3264 = scmp.lt.s32.totalorder %s18, 1
        %s3265 = scalar_select %p3264, %s18, 1
        %s3266 = smul.addr %s3265, 16
        %s3267 = smul.addr %s3266, 8
        %s3268 = scalar_lea.vmem %s6, %s3267
      $region56: #{tpu_custom_call.1} parent=51 // pred_fallthru
        _
    $region52: #{tpu_custom_call.1} parent=5 // pred_fallthru
      _
  $region6: #{tpu_custom_call.1} parent=0 // loop_footer
    %s16 = sadd.s32 1, %s12
  $region7: #{tpu_custom_call.1} parent=0 // loop_footer_branch
    %11 = sbr.rel target = $region3
  $region8: #{tpu_custom_call.1} parent=0 // loop_exit
    _

</llo_original>
